<compile_context>
chip_gen: v7x
topology: tpu7x:2x2x1
jax: 0.10.0
libtpu: 0.0.40
codegen_flags: <defaults>
</compile_context>

<pallas_src>
import jax
import jax.numpy as jnp
from jax.experimental import pallas as pl
from jax.experimental.pallas import tpu as pltpu

HIDDEN = 512
N_HIDDEN_LAYERS = 6
OUT_PAD = 128          # lane-dense classifier output width (padded from n_classes)


def _round_up(n, m):
    return ((n + m - 1) // m) * m


def _grain_sh_kernel(x_ref,
                     w1, b1, w2, b2, w3, b3, w4, b4, w5, b5, w6, b6,
                     wc, bc,
                     out_ref):
    """One batch tile: 6x [Linear+ReLU] + lane-padded classifier Linear.

    Weights are bf16 (half the HBM->VMEM traffic, native MXU rate); activations,
    bias-add and ReLU stay in f32; every matmul accumulates in f32 on the MXU.
    """
    h = x_ref[...]                                             # (TB, F) f32
    for w_ref, b_ref in ((w1, b1), (w2, b2), (w3, b3),
                         (w4, b4), (w5, b5), (w6, b6)):
        z = jnp.dot(h.astype(jnp.bfloat16), w_ref[...],
                    preferred_element_type=jnp.float32)
        h = jnp.maximum(z + b_ref[...], 0.0)                   # (1,512) bias broadcast
    out_ref[...] = jnp.dot(h.astype(jnp.bfloat16), wc[...],
                           preferred_element_type=jnp.float32) + bc[...]


def init_params(key, l_max, n_classes):
    """PyTorch-style U(-1/sqrt(fan_in), 1/sqrt(fan_in)) init; weights stored (in, out)."""
    in_features = (l_max + 1) ** 2
    dims = [in_features] + [HIDDEN] * N_HIDDEN_LAYERS + [n_classes]
    params = []
    for i in range(len(dims) - 1):
        fan_in, fan_out = dims[i], dims[i + 1]
        key, kw, kb = jax.random.split(key, 3)
        bound = 1.0 / jnp.sqrt(float(fan_in))
        w = jax.random.uniform(kw, (fan_in, fan_out), jnp.float32,
                               minval=-bound, maxval=bound)
        b = jax.random.uniform(kb, (fan_out,), jnp.float32,
                               minval=-bound, maxval=bound)
        params.append((w, b))
    return params


def prepare_params(params, out_pad=OUT_PAD):
    """One-time parameter prep (hoisted out of the per-call path).

    * weights -> bf16, stored (in, out)
    * biases  -> f32, shape (1, out)
    * classifier weight/bias zero-padded to `out_pad` lanes (lane-dense stores)
    Returns (flat_args, n_classes).
    """
    n_classes = params[-1][1].shape[-1]
    n_pad = max(out_pad, _round_up(n_classes, 128))
    flat = []
    for i, (w, b) in enumerate(params):
        if i == len(params) - 1:
            w = jnp.pad(w, ((0, 0), (0, n_pad - n_classes)))
            b = jnp.pad(b, (0, n_pad - n_classes))
        flat.append(jnp.asarray(w, jnp.bfloat16))
        flat.append(jnp.asarray(b, jnp.float32).reshape(1, -1))
    return flat, n_classes


def grain_classifier_sh(x, flat_params, n_classes, *, tb_max=512):
    """x: (B, ...) -> flattened to (B, (l_max+1)**2) like nn.Flatten."""
    B = x.shape[0]
    x2 = x.reshape(B, -1).astype(jnp.float32)
    F = x2.shape[1]

    # Batch tile: multiple of 8 sublanes; TB<=512 keeps bf16 weights (~2.7 MB)
    # plus double-buffered x/out tiles and live (TB,512) f32 activations well
    # inside the scoped-VMEM budget on every generation (v7x: 64 MiB physical).
    TB = min(tb_max, _round_up(B, 8))
    B_pad = _round_up(B, TB)
    if B_pad != B:
        x2 = jnp.pad(x2, ((0, B_pad - B), (0, 0)))

    n_out_pad = flat_params[-1].shape[-1]

    def full_spec(arr):
        # Full-array block, constant block index -> fetched once, stays resident.
        return pl.BlockSpec(arr.shape, lambda i: (0,) * arr.ndim)

    grid_spec = pltpu.PrefetchScalarGridSpec(
        num_scalar_prefetch=0,
        grid=(B_pad // TB,),
        in_specs=[pl.BlockSpec((TB, F), lambda i: (i, 0))]        # pipelined x tile
                 + [full_spec(a) for a in flat_params],           # resident weights
        out_specs=pl.BlockSpec((TB, n_out_pad), lambda i: (i, 0)))

    out = pl.pallas_call(
        _grain_sh_kernel,
        out_shape=jax.ShapeDtypeStruct((B_pad, n_out_pad), jnp.float32),
        grid_spec=grid_spec,
        compiler_params=pltpu.CompilerParams(
            dimension_semantics=("parallel",),    # shard batch over TCs (v7x megacore)
            vmem_limit_bytes=32 * 1024 * 1024),
    )(x2, *flat_params)

    return out[:B, :n_classes]


def _reference(x, params):
    """Pure-JAX reference emulating the kernel's bf16-matmul / f32-accumulate path."""
    h = x.reshape(x.shape[0], -1).astype(jnp.float32)
    for w, b in params[:-1]:
        z = jnp.dot(h.astype(jnp.bfloat16), w.astype(jnp.bfloat16),
                    preferred_element_type=jnp.float32)
        h = jnp.maximum(z + b, 0.0)
    w, b = params[-1]
    return jnp.dot(h.astype(jnp.bfloat16), w.astype(jnp.bfloat16),
                   preferred_element_type=jnp.float32) + b


if __name__ == "__main__":
    l_max = 3          # -> (l_max+1)**2 = 16 input SH coefficients
    n_classes = 4

    params = init_params(jax.random.PRNGKey(0), l_max, n_classes)
    flat_params, n_cls = prepare_params(params)

    key = jax.random.PRNGKey(0)

    # Test 1: small batch, single grid step.
    key, kx = jax.random.split(key)
    x = jax.random.normal(kx, (8, (l_max + 1) ** 2), jnp.float32)
    out = jax.block_until_ready(grain_classifier_sh(x, flat_params, n_cls))
    ref = _reference(x, params)
    assert out.shape == (8, n_classes)
    assert jnp.allclose(out, ref, atol=2e-2, rtol=2e-2)

    # Test 2: batch not a multiple of the tile -> exercises grid > 1 + padding.
    key, kx = jax.random.split(key)
    x2 = jax.random.normal(kx, (20, (l_max + 1) ** 2), jnp.float32)
    out2 = jax.block_until_ready(
        grain_classifier_sh(x2, flat_params, n_cls, tb_max=8))
    ref2 = _reference(x2, params)
    assert out2.shape == (20, n_classes)
    assert jnp.allclose(out2, ref2, atol=2e-2, rtol=2e-2)

    print("KERNEL_OK")
</pallas_src>

<mosaic_0001>
module attributes {stable_mosaic.version = 11 : i64} {
  func.func @_grain_sh_kernel(%arg0: i32, %arg1: memref<8x16xf32, #tpu.memory_space<vmem>>, %arg2: memref<16x512xbf16, #tpu.memory_space<vmem>>, %arg3: memref<1x512xf32, #tpu.memory_space<vmem>>, %arg4: memref<512x512xbf16, #tpu.memory_space<vmem>>, %arg5: memref<1x512xf32, #tpu.memory_space<vmem>>, %arg6: memref<512x512xbf16, #tpu.memory_space<vmem>>, %arg7: memref<1x512xf32, #tpu.memory_space<vmem>>, %arg8: memref<512x512xbf16, #tpu.memory_space<vmem>>, %arg9: memref<1x512xf32, #tpu.memory_space<vmem>>, %arg10: memref<512x512xbf16, #tpu.memory_space<vmem>>, %arg11: memref<1x512xf32, #tpu.memory_space<vmem>>, %arg12: memref<512x512xbf16, #tpu.memory_space<vmem>>, %arg13: memref<1x512xf32, #tpu.memory_space<vmem>>, %arg14: memref<512x128xbf16, #tpu.memory_space<vmem>>, %arg15: memref<1x128xf32, #tpu.memory_space<vmem>>, %arg16: memref<8x128xf32, #tpu.memory_space<vmem>>) attributes {dimension_semantics = [#tpu.dimension_semantics<parallel>], iteration_bounds = array<i64: 1>, scalar_prefetch = 0 : i64, scratch_operands = 0 : i64, tpu.core_type = #tpu.core_type<tc>, window_params = [{transform_indices = @transform_0, window_bounds = array<i64: 8, 16>}, {pipeline_mode = #tpu.pipeline_mode<synchronous>, transform_indices = @transform_1, window_bounds = array<i64: 16, 512>}, {pipeline_mode = #tpu.pipeline_mode<synchronous>, transform_indices = @transform_2, window_bounds = array<i64: 1, 512>}, {pipeline_mode = #tpu.pipeline_mode<synchronous>, transform_indices = @transform_3, window_bounds = array<i64: 512, 512>}, {pipeline_mode = #tpu.pipeline_mode<synchronous>, transform_indices = @transform_4, window_bounds = array<i64: 1, 512>}, {pipeline_mode = #tpu.pipeline_mode<synchronous>, transform_indices = @transform_5, window_bounds = array<i64: 512, 512>}, {pipeline_mode = #tpu.pipeline_mode<synchronous>, transform_indices = @transform_6, window_bounds = array<i64: 1, 512>}, {pipeline_mode = #tpu.pipeline_mode<synchronous>, transform_indices = @transform_7, window_bounds = array<i64: 512, 512>}, {pipeline_mode = #tpu.pipeline_mode<synchronous>, transform_indices = @transform_8, window_bounds = array<i64: 1, 512>}, {pipeline_mode = #tpu.pipeline_mode<synchronous>, transform_indices = @transform_9, window_bounds = array<i64: 512, 512>}, {pipeline_mode = #tpu.pipeline_mode<synchronous>, transform_indices = @transform_10, window_bounds = array<i64: 1, 512>}, {pipeline_mode = #tpu.pipeline_mode<synchronous>, transform_indices = @transform_11, window_bounds = array<i64: 512, 512>}, {pipeline_mode = #tpu.pipeline_mode<synchronous>, transform_indices = @transform_12, window_bounds = array<i64: 1, 512>}, {pipeline_mode = #tpu.pipeline_mode<synchronous>, transform_indices = @transform_13, window_bounds = array<i64: 512, 128>}, {pipeline_mode = #tpu.pipeline_mode<synchronous>, transform_indices = @transform_14, window_bounds = array<i64: 1, 128>}, {transform_indices = @transform_15, window_bounds = array<i64: 8, 128>}]} {
    %c0 = arith.constant 0 : index
    %c0_0 = arith.constant 0 : index
    %0 = vector.load %arg1[%c0, %c0_0] : memref<8x16xf32, #tpu.memory_space<vmem>>, vector<8x16xf32>
    %1 = arith.truncf %0 : vector<8x16xf32> to vector<8x16xbf16>
    %c0_1 = arith.constant 0 : index
    %c0_2 = arith.constant 0 : index
    %2 = vector.load %arg2[%c0_1, %c0_2] : memref<16x512xbf16, #tpu.memory_space<vmem>>, vector<16x512xbf16>
    %cst = arith.constant dense<0.000000e+00> : vector<8x512xf32>
    %3 = tpu.matmul %1, %2, %cst {dimension_numbers = #tpu.dot_dimension_numbers<[1], [0], [0], [1], [0, 0, 1, 1], [], []>} : vector<8x16xbf16>, vector<16x512xbf16>, vector<8x512xf32> -> vector<8x512xf32>
    %c0_3 = arith.constant 0 : index
    %c0_4 = arith.constant 0 : index
    %4 = vector.load %arg3[%c0_3, %c0_4] : memref<1x512xf32, #tpu.memory_space<vmem>>, vector<1x512xf32>
    %5 = vector.broadcast %4 : vector<1x512xf32> to vector<8x512xf32>
    %6 = arith.addf %3, %5 : vector<8x512xf32>
    %cst_5 = arith.constant 0.000000e+00 : f32
    %7 = vector.broadcast %cst_5 : f32 to vector<8x512xf32>
    %8 = arith.maximumf %6, %7 : vector<8x512xf32>
    %9 = arith.truncf %8 : vector<8x512xf32> to vector<8x512xbf16>
    %c0_6 = arith.constant 0 : index
    %c0_7 = arith.constant 0 : index
    %10 = vector.load %arg4[%c0_6, %c0_7] : memref<512x512xbf16, #tpu.memory_space<vmem>>, vector<512x512xbf16>
    %cst_8 = arith.constant dense<0.000000e+00> : vector<8x512xf32>
    %11 = tpu.matmul %9, %10, %cst_8 {dimension_numbers = #tpu.dot_dimension_numbers<[1], [0], [0], [1], [0, 0, 1, 1], [], []>} : vector<8x512xbf16>, vector<512x512xbf16>, vector<8x512xf32> -> vector<8x512xf32>
    %c0_9 = arith.constant 0 : index
    %c0_10 = arith.constant 0 : index
    %12 = vector.load %arg5[%c0_9, %c0_10] : memref<1x512xf32, #tpu.memory_space<vmem>>, vector<1x512xf32>
    %13 = vector.broadcast %12 : vector<1x512xf32> to vector<8x512xf32>
    %14 = arith.addf %11, %13 : vector<8x512xf32>
    %cst_11 = arith.constant 0.000000e+00 : f32
    %15 = vector.broadcast %cst_11 : f32 to vector<8x512xf32>
    %16 = arith.maximumf %14, %15 : vector<8x512xf32>
    %17 = arith.truncf %16 : vector<8x512xf32> to vector<8x512xbf16>
    %c0_12 = arith.constant 0 : index
    %c0_13 = arith.constant 0 : index
    %18 = vector.load %arg6[%c0_12, %c0_13] : memref<512x512xbf16, #tpu.memory_space<vmem>>, vector<512x512xbf16>
    %cst_14 = arith.constant dense<0.000000e+00> : vector<8x512xf32>
    %19 = tpu.matmul %17, %18, %cst_14 {dimension_numbers = #tpu.dot_dimension_numbers<[1], [0], [0], [1], [0, 0, 1, 1], [], []>} : vector<8x512xbf16>, vector<512x512xbf16>, vector<8x512xf32> -> vector<8x512xf32>
    %c0_15 = arith.constant 0 : index
    %c0_16 = arith.constant 0 : index
    %20 = vector.load %arg7[%c0_15, %c0_16] : memref<1x512xf32, #tpu.memory_space<vmem>>, vector<1x512xf32>
    %21 = vector.broadcast %20 : vector<1x512xf32> to vector<8x512xf32>
    %22 = arith.addf %19, %21 : vector<8x512xf32>
    %cst_17 = arith.constant 0.000000e+00 : f32
    %23 = vector.broadcast %cst_17 : f32 to vector<8x512xf32>
    %24 = arith.maximumf %22, %23 : vector<8x512xf32>
    %25 = arith.truncf %24 : vector<8x512xf32> to vector<8x512xbf16>
    %c0_18 = arith.constant 0 : index
    %c0_19 = arith.constant 0 : index
    %26 = vector.load %arg8[%c0_18, %c0_19] : memref<512x512xbf16, #tpu.memory_space<vmem>>, vector<512x512xbf16>
    %cst_20 = arith.constant dense<0.000000e+00> : vector<8x512xf32>
    %27 = tpu.matmul %25, %26, %cst_20 {dimension_numbers = #tpu.dot_dimension_numbers<[1], [0], [0], [1], [0, 0, 1, 1], [], []>} : vector<8x512xbf16>, vector<512x512xbf16>, vector<8x512xf32> -> vector<8x512xf32>
    %c0_21 = arith.constant 0 : index
    %c0_22 = arith.constant 0 : index
    %28 = vector.load %arg9[%c0_21, %c0_22] : memref<1x512xf32, #tpu.memory_space<vmem>>, vector<1x512xf32>
    %29 = vector.broadcast %28 : vector<1x512xf32> to vector<8x512xf32>
    %30 = arith.addf %27, %29 : vector<8x512xf32>
    %cst_23 = arith.constant 0.000000e+00 : f32
    %31 = vector.broadcast %cst_23 : f32 to vector<8x512xf32>
    %32 = arith.maximumf %30, %31 : vector<8x512xf32>
    %33 = arith.truncf %32 : vector<8x512xf32> to vector<8x512xbf16>
    %c0_24 = arith.constant 0 : index
    %c0_25 = arith.constant 0 : index
    %34 = vector.load %arg10[%c0_24, %c0_25] : memref<512x512xbf16, #tpu.memory_space<vmem>>, vector<512x512xbf16>
    %cst_26 = arith.constant dense<0.000000e+00> : vector<8x512xf32>
    %35 = tpu.matmul %33, %34, %cst_26 {dimension_numbers = #tpu.dot_dimension_numbers<[1], [0], [0], [1], [0, 0, 1, 1], [], []>} : vector<8x512xbf16>, vector<512x512xbf16>, vector<8x512xf32> -> vector<8x512xf32>
    %c0_27 = arith.constant 0 : index
    %c0_28 = arith.constant 0 : index
    %36 = vector.load %arg11[%c0_27, %c0_28] : memref<1x512xf32, #tpu.memory_space<vmem>>, vector<1x512xf32>
    %37 = vector.broadcast %36 : vector<1x512xf32> to vector<8x512xf32>
    %38 = arith.addf %35, %37 : vector<8x512xf32>
    %cst_29 = arith.constant 0.000000e+00 : f32
    %39 = vector.broadcast %cst_29 : f32 to vector<8x512xf32>
    %40 = arith.maximumf %38, %39 : vector<8x512xf32>
    %41 = arith.truncf %40 : vector<8x512xf32> to vector<8x512xbf16>
    %c0_30 = arith.constant 0 : index
    %c0_31 = arith.constant 0 : index
    %42 = vector.load %arg12[%c0_30, %c0_31] : memref<512x512xbf16, #tpu.memory_space<vmem>>, vector<512x512xbf16>
    %cst_32 = arith.constant dense<0.000000e+00> : vector<8x512xf32>
    %43 = tpu.matmul %41, %42, %cst_32 {dimension_numbers = #tpu.dot_dimension_numbers<[1], [0], [0], [1], [0, 0, 1, 1], [], []>} : vector<8x512xbf16>, vector<512x512xbf16>, vector<8x512xf32> -> vector<8x512xf32>
    %c0_33 = arith.constant 0 : index
    %c0_34 = arith.constant 0 : index
    %44 = vector.load %arg13[%c0_33, %c0_34] : memref<1x512xf32, #tpu.memory_space<vmem>>, vector<1x512xf32>
    %45 = vector.broadcast %44 : vector<1x512xf32> to vector<8x512xf32>
    %46 = arith.addf %43, %45 : vector<8x512xf32>
    %cst_35 = arith.constant 0.000000e+00 : f32
    %47 = vector.broadcast %cst_35 : f32 to vector<8x512xf32>
    %48 = arith.maximumf %46, %47 : vector<8x512xf32>
    %49 = arith.truncf %48 : vector<8x512xf32> to vector<8x512xbf16>
    %c0_36 = arith.constant 0 : index
    %c0_37 = arith.constant 0 : index
    %50 = vector.load %arg14[%c0_36, %c0_37] : memref<512x128xbf16, #tpu.memory_space<vmem>>, vector<512x128xbf16>
    %cst_38 = arith.constant dense<0.000000e+00> : vector<8x128xf32>
    %51 = tpu.matmul %49, %50, %cst_38 {dimension_numbers = #tpu.dot_dimension_numbers<[1], [0], [0], [1], [0, 0, 1, 1], [], []>} : vector<8x512xbf16>, vector<512x128xbf16>, vector<8x128xf32> -> vector<8x128xf32>
    %c0_39 = arith.constant 0 : index
    %c0_40 = arith.constant 0 : index
    %52 = vector.load %arg15[%c0_39, %c0_40] : memref<1x128xf32, #tpu.memory_space<vmem>>, vector<1x128xf32>
    %53 = vector.broadcast %52 : vector<1x128xf32> to vector<8x128xf32>
    %54 = arith.addf %51, %53 : vector<8x128xf32>
    %c0_41 = arith.constant 0 : index
    %c0_42 = arith.constant 0 : index
    %55 = vector.load %arg16[%c0_41, %c0_42] : memref<8x128xf32, #tpu.memory_space<vmem>>, vector<8x128xf32>
    tpu.vector_store %arg16[%c0_41, %c0_42], %54 {strides = array<i32>} : memref<8x128xf32, #tpu.memory_space<vmem>>, vector<8x128xf32>,
    return
  }
  func.func @transform_0(%arg0: i32) -> (i32, i32) {
    %c0_i32 = arith.constant 0 : i32
    %c0_i32_0 = arith.constant 0 : i32
    return %arg0, %c0_i32 : i32, i32
  }
  func.func @transform_1(%arg0: i32) -> (i32, i32) {
    %c0_i32 = arith.constant 0 : i32
    %c0_i32_0 = arith.constant 0 : i32
    %c0_i32_1 = arith.constant 0 : i32
    return %c0_i32, %c0_i32_0 : i32, i32
  }
  func.func @transform_2(%arg0: i32) -> (i32, i32) {
    %c0_i32 = arith.constant 0 : i32
    %c0_i32_0 = arith.constant 0 : i32
    %c0_i32_1 = arith.constant 0 : i32
    return %c0_i32, %c0_i32_0 : i32, i32
  }
  func.func @transform_3(%arg0: i32) -> (i32, i32) {
    %c0_i32 = arith.constant 0 : i32
    %c0_i32_0 = arith.constant 0 : i32
    %c0_i32_1 = arith.constant 0 : i32
    return %c0_i32, %c0_i32_0 : i32, i32
  }
  func.func @transform_4(%arg0: i32) -> (i32, i32) {
    %c0_i32 = arith.constant 0 : i32
    %c0_i32_0 = arith.constant 0 : i32
    %c0_i32_1 = arith.constant 0 : i32
    return %c0_i32, %c0_i32_0 : i32, i32
  }
  func.func @transform_5(%arg0: i32) -> (i32, i32) {
    %c0_i32 = arith.constant 0 : i32
    %c0_i32_0 = arith.constant 0 : i32
    %c0_i32_1 = arith.constant 0 : i32
    return %c0_i32, %c0_i32_0 : i32, i32
  }
  func.func @transform_6(%arg0: i32) -> (i32, i32) {
    %c0_i32 = arith.constant 0 : i32
    %c0_i32_0 = arith.constant 0 : i32
    %c0_i32_1 = arith.constant 0 : i32
    return %c0_i32, %c0_i32_0 : i32, i32
  }
  func.func @transform_7(%arg0: i32) -> (i32, i32) {
    %c0_i32 = arith.constant 0 : i32
    %c0_i32_0 = arith.constant 0 : i32
    %c0_i32_1 = arith.constant 0 : i32
    return %c0_i32, %c0_i32_0 : i32, i32
  }
  func.func @transform_8(%arg0: i32) -> (i32, i32) {
    %c0_i32 = arith.constant 0 : i32
    %c0_i32_0 = arith.constant 0 : i32
    %c0_i32_1 = arith.constant 0 : i32
    return %c0_i32, %c0_i32_0 : i32, i32
  }
  func.func @transform_9(%arg0: i32) -> (i32, i32) {
    %c0_i32 = arith.constant 0 : i32
    %c0_i32_0 = arith.constant 0 : i32
    %c0_i32_1 = arith.constant 0 : i32
    return %c0_i32, %c0_i32_0 : i32, i32
  }
  func.func @transform_10(%arg0: i32) -> (i32, i32) {
    %c0_i32 = arith.constant 0 : i32
    %c0_i32_0 = arith.constant 0 : i32
    %c0_i32_1 = arith.constant 0 : i32
    return %c0_i32, %c0_i32_0 : i32, i32
  }
  func.func @transform_11(%arg0: i32) -> (i32, i32) {
    %c0_i32 = arith.constant 0 : i32
    %c0_i32_0 = arith.constant 0 : i32
    %c0_i32_1 = arith.constant 0 : i32
    return %c0_i32, %c0_i32_0 : i32, i32
  }
  func.func @transform_12(%arg0: i32) -> (i32, i32) {
    %c0_i32 = arith.constant 0 : i32
    %c0_i32_0 = arith.constant 0 : i32
    %c0_i32_1 = arith.constant 0 : i32
    return %c0_i32, %c0_i32_0 : i32, i32
  }
  func.func @transform_13(%arg0: i32) -> (i32, i32) {
    %c0_i32 = arith.constant 0 : i32
    %c0_i32_0 = arith.constant 0 : i32
    %c0_i32_1 = arith.constant 0 : i32
    return %c0_i32, %c0_i32_0 : i32, i32
  }
  func.func @transform_14(%arg0: i32) -> (i32, i32) {
    %c0_i32 = arith.constant 0 : i32
    %c0_i32_0 = arith.constant 0 : i32
    %c0_i32_1 = arith.constant 0 : i32
    return %c0_i32, %c0_i32_0 : i32, i32
  }
  func.func @transform_15(%arg0: i32) -> (i32, i32) {
    %c0_i32 = arith.constant 0 : i32
    %c0_i32_0 = arith.constant 0 : i32
    return %arg0, %c0_i32 : i32, i32
  }
}

</mosaic_0001>

<llo_original>
// kernel: tpu_custom_call.1
$region0: #{tpu_custom_call.1}
  #allocation0 [shape = 'u32[]', space=smem, size = 0x4, offset = 0x4, fixed_abs, tag = 'smem constant byte address 0x4 - core index']
  #allocation1 [shape = 'u32[144,128]{1,0:T(1,128)}', space=vmem, size = 0x12000, scoped, tag = 'internal scratch']
  %s0 = inlined_call_operand.hbm [shape: f32[8,16], index: 0, kind: input, shape index: {}]
  %s1 = inlined_call_operand.hbm [shape: bf16[16,512], index: 1, kind: input, shape index: {}]
  %s2 = inlined_call_operand.vmem [shape: f32[1,512], index: 2, kind: input, shape index: {}]
  %s3 = inlined_call_operand.hbm [shape: bf16[512,512], index: 3, kind: input, shape index: {}]
  %s4 = inlined_call_operand.vmem [shape: f32[1,512], index: 4, kind: input, shape index: {}]
  %s5 = inlined_call_operand.hbm [shape: bf16[512,512], index: 5, kind: input, shape index: {}]
  %s6 = inlined_call_operand.vmem [shape: f32[1,512], index: 6, kind: input, shape index: {}]
  %s7 = inlined_call_operand.hbm [shape: bf16[512,512], index: 7, kind: input, shape index: {}]
  %s8 = inlined_call_operand.vmem [shape: f32[1,512], index: 8, kind: input, shape index: {}]
  %s9 = inlined_call_operand.hbm [shape: bf16[512,512], index: 9, kind: input, shape index: {}]
  %s10 = inlined_call_operand.vmem [shape: f32[1,512], index: 10, kind: input, shape index: {}]
  %s11 = inlined_call_operand.hbm [shape: bf16[512,512], index: 11, kind: input, shape index: {}]
  %s12 = inlined_call_operand.vmem [shape: f32[1,512], index: 12, kind: input, shape index: {}]
  %s13 = inlined_call_operand.hbm [shape: bf16[512,128], index: 13, kind: input, shape index: {}]
  %s14 = inlined_call_operand.vmem [shape: f32[1,128], index: 14, kind: input, shape index: {}]
  %s15 = inlined_call_operand.hbm [shape: f32[8,128], index: 15, kind: output, shape index: {}]
  %s16 = sld [smem:[#allocation0]]
  $region102: #{tpu_custom_call.1} parent=0
    _
  %s18 = ssub.s32 1, %s16
  %s19 = scalar_select 0, %s18, %s16
  $region1: #{tpu_custom_call.1} parent=0
    #allocation2 [shape = 'u8[4096]{0}', space=vmem, size = 0x1000, scoped, tag = 'input window, operand 0, single buffered']
    #allocation3 [shape = 's32[1]{0}', space=sflag, size = 0x4, scoped, tag = 'scoped memory for tpu_custom_call.1']
    #allocation4 [shape = 's32[1]{0}', space=sflag, size = 0x4, scoped, tag = 'scoped memory for tpu_custom_call.1']
    #allocation5 [shape = 'u8[16384]{0}', space=vmem, size = 0x4000, scoped, tag = 'input window, operand 1, single buffered']
    #allocation6 [shape = 's32[1]{0}', space=sflag, size = 0x4, scoped, tag = 'scoped memory for tpu_custom_call.1']
    #allocation7 [shape = 'u8[524288]{0}', space=vmem, size = 0x80000, scoped, tag = 'input window, operand 3, single buffered']
    #allocation8 [shape = 'u8[524288]{0}', space=vmem, size = 0x80000, scoped, tag = 'input window, operand 5, single buffered']
    #allocation9 [shape = 's32[1]{0}', space=sflag, size = 0x4, scoped, tag = 'scoped memory for tpu_custom_call.1']
    #allocation10 [shape = 'u8[524288]{0}', space=vmem, size = 0x80000, scoped, tag = 'input window, operand 7, single buffered']
    #allocation11 [shape = 'u8[524288]{0}', space=vmem, size = 0x80000, scoped, tag = 'input window, operand 9, single buffered']
    #allocation12 [shape = 's32[1]{0}', space=sflag, size = 0x4, scoped, tag = 'scoped memory for tpu_custom_call.1']
    #allocation13 [shape = 'u8[524288]{0}', space=vmem, size = 0x80000, scoped, tag = 'input window, operand 11, single buffered']
    #allocation14 [shape = 'u8[131072]{0}', space=vmem, size = 0x20000, scoped, tag = 'input window, operand 13, single buffered']
    #allocation15 [shape = 's32[1]{0}', space=sflag, size = 0x4, scoped, tag = 'scoped memory for tpu_custom_call.1']
    #allocation16 [shape = 'u8[4096]{0}', space=vmem, size = 0x1000, scoped, tag = 'output window, operand 0, single buffered']
    %20 = vsyncpa [#allocation3], 0
    %21 = vsyncpa [#allocation6], 0
    %22 = vsyncpa [#allocation9], 0
    %23 = vsyncpa [#allocation12], 0
    %24 = vsyncpa [#allocation15], 0
    %25 = vsyncpa [#allocation4], 0
    // Predicated region
    $region2: #{tpu_custom_call.1} parent=1 // pred_check
      _
    $region3: #{tpu_custom_call.1} parent=1 // pred_check_branch
      %27 = sbr.rel (0) target = $region5
    $region4: #{tpu_custom_call.1} parent=1 // pred_region
      %s29 = ssub.s32 128, 128
      %30 = vsyncadd [#allocation3], %s29
      %s32 = sshll.u32 [#allocation2], 4
      %s33 = int_to_ptr.vmem [resolvable:$true] %s32
      %35 = dma.hbm_to_vmem [thread:$0]  %s0, 128, %s33, [#allocation3]
    $region5: #{tpu_custom_call.1} parent=1 // pred_fallthru
      _
    // Predicated region
    $region6: #{tpu_custom_call.1} parent=1 // pred_check
      _
    $region7: #{tpu_custom_call.1} parent=1 // pred_check_branch
      %37 = sbr.rel (0) target = $region9
    $region8: #{tpu_custom_call.1} parent=1 // pred_region
      %s39 = ssub.s32 512, 512
      %40 = vsyncadd [#allocation6], %s39
      %s41 = sshll.u32 [#allocation5], 4
      %s42 = int_to_ptr.vmem [resolvable:$true] %s41
      %47 = dma.hbm_to_vmem [thread:$0]  %s1, 512, %s42, [#allocation6], 256, 256, 16
    $region9: #{tpu_custom_call.1} parent=1 // pred_fallthru
      _
    // Predicated region
    $region10: #{tpu_custom_call.1} parent=1 // pred_check
      _
    $region11: #{tpu_custom_call.1} parent=1 // pred_check_branch
      %49 = sbr.rel (0) target = $region13
    $region12: #{tpu_custom_call.1} parent=1 // pred_region
      _
    $region13: #{tpu_custom_call.1} parent=1 // pred_fallthru
      _
    // Predicated region
    $region14: #{tpu_custom_call.1} parent=1 // pred_check
      _
    $region15: #{tpu_custom_call.1} parent=1 // pred_check_branch
      %51 = sbr.rel (0) target = $region17
    $region16: #{tpu_custom_call.1} parent=1 // pred_region
      %s53 = ssub.s32 16384, 16384
      %54 = vsyncadd [#allocation6], %s53
      %s55 = sshll.u32 [#allocation7], 4
      %s56 = int_to_ptr.vmem [resolvable:$true] %s55
      %61 = dma.hbm_to_vmem [thread:$0]  %s3, 16384, %s56, [#allocation6], 256, 256, 16
    $region17: #{tpu_custom_call.1} parent=1 // pred_fallthru
      _
    // Predicated region
    $region18: #{tpu_custom_call.1} parent=1 // pred_check
      _
    $region19: #{tpu_custom_call.1} parent=1 // pred_check_branch
      %63 = sbr.rel (0) target = $region21
    $region20: #{tpu_custom_call.1} parent=1 // pred_region
      _
    $region21: #{tpu_custom_call.1} parent=1 // pred_fallthru
      _
    // Predicated region
    $region22: #{tpu_custom_call.1} parent=1 // pred_check
      _
    $region23: #{tpu_custom_call.1} parent=1 // pred_check_branch
      %65 = sbr.rel (0) target = $region25
    $region24: #{tpu_custom_call.1} parent=1 // pred_region
      %s67 = ssub.s32 16384, 16384
      %68 = vsyncadd [#allocation9], %s67
      %s69 = sshll.u32 [#allocation8], 4
      %s70 = int_to_ptr.vmem [resolvable:$true] %s69
      %75 = dma.hbm_to_vmem [thread:$0]  %s5, 16384, %s70, [#allocation9], 256, 256, 16
    $region25: #{tpu_custom_call.1} parent=1 // pred_fallthru
      _
    // Predicated region
    $region26: #{tpu_custom_call.1} parent=1 // pred_check
      _
    $region27: #{tpu_custom_call.1} parent=1 // pred_check_branch
      %77 = sbr.rel (0) target = $region29
    $region28: #{tpu_custom_call.1} parent=1 // pred_region
      _
    $region29: #{tpu_custom_call.1} parent=1 // pred_fallthru
      _
    // Predicated region
    $region30: #{tpu_custom_call.1} parent=1 // pred_check
      _
    $region31: #{tpu_custom_call.1} parent=1 // pred_check_branch
      %79 = sbr.rel (0) target = $region33
    $region32: #{tpu_custom_call.1} parent=1 // pred_region
      %s81 = ssub.s32 16384, 16384
      %82 = vsyncadd [#allocation9], %s81
      %s83 = sshll.u32 [#allocation10], 4
      %s84 = int_to_ptr.vmem [resolvable:$true] %s83
      %89 = dma.hbm_to_vmem [thread:$0]  %s7, 16384, %s84, [#allocation9], 256, 256, 16
    $region33: #{tpu_custom_call.1} parent=1 // pred_fallthru
      _
    // Predicated region
    $region34: #{tpu_custom_call.1} parent=1 // pred_check
      _
    $region35: #{tpu_custom_call.1} parent=1 // pred_check_branch
      %91 = sbr.rel (0) target = $region37
    $region36: #{tpu_custom_call.1} parent=1 // pred_region
      _
    $region37: #{tpu_custom_call.1} parent=1 // pred_fallthru
      _
    // Predicated region
    $region38: #{tpu_custom_call.1} parent=1 // pred_check
      _
    $region39: #{tpu_custom_call.1} parent=1 // pred_check_branch
      %93 = sbr.rel (0) target = $region41
    $region40: #{tpu_custom_call.1} parent=1 // pred_region
      %s95 = ssub.s32 16384, 16384
      %96 = vsyncadd [#allocation12], %s95
      %s97 = sshll.u32 [#allocation11], 4
      %s98 = int_to_ptr.vmem [resolvable:$true] %s97
      %103 = dma.hbm_to_vmem [thread:$0]  %s9, 16384, %s98, [#allocation12], 256, 256, 16
    $region41: #{tpu_custom_call.1} parent=1 // pred_fallthru
      _
    // Predicated region
    $region42: #{tpu_custom_call.1} parent=1 // pred_check
      _
    $region43: #{tpu_custom_call.1} parent=1 // pred_check_branch
      %105 = sbr.rel (0) target = $region45
    $region44: #{tpu_custom_call.1} parent=1 // pred_region
      _
    $region45: #{tpu_custom_call.1} parent=1 // pred_fallthru
      _
    // Predicated region
    $region46: #{tpu_custom_call.1} parent=1 // pred_check
      _
    $region47: #{tpu_custom_call.1} parent=1 // pred_check_branch
      %107 = sbr.rel (0) target = $region49
    $region48: #{tpu_custom_call.1} parent=1 // pred_region
      %s109 = ssub.s32 16384, 16384
      %110 = vsyncadd [#allocation12], %s109
      %s111 = sshll.u32 [#allocation13], 4
      %s112 = int_to_ptr.vmem [resolvable:$true] %s111
      %117 = dma.hbm_to_vmem [thread:$0]  %s11, 16384, %s112, [#allocation12], 256, 256, 16
    $region49: #{tpu_custom_call.1} parent=1 // pred_fallthru
      _
    // Predicated region
    $region50: #{tpu_custom_call.1} parent=1 // pred_check
      _
    $region51: #{tpu_custom_call.1} parent=1 // pred_check_branch
      %119 = sbr.rel (0) target = $region53
    $region52: #{tpu_custom_call.1} parent=1 // pred_region
      _
    $region53: #{tpu_custom_call.1} parent=1 // pred_fallthru
      _
    // Predicated region
    $region54: #{tpu_custom_call.1} parent=1 // pred_check
      _
    $region55: #{tpu_custom_call.1} parent=1 // pred_check_branch
      %121 = sbr.rel (0) target = $region57
    $region56: #{tpu_custom_call.1} parent=1 // pred_region
      %s123 = ssub.s32 4096, 4096
      %124 = vsyncadd [#allocation15], %s123
      %s125 = sshll.u32 [#allocation14], 4
      %s126 = int_to_ptr.vmem [resolvable:$true] %s125
      %131 = dma.hbm_to_vmem [thread:$0]  %s13, 4096, %s126, [#allocation15], 64, 64, 4
    $region57: #{tpu_custom_call.1} parent=1 // pred_fallthru
      _
    // Predicated region
    $region58: #{tpu_custom_call.1} parent=1 // pred_check
      _
    $region59: #{tpu_custom_call.1} parent=1 // pred_check_branch
      %133 = sbr.rel (0) target = $region61
    $region60: #{tpu_custom_call.1} parent=1 // pred_region
      _
    $region61: #{tpu_custom_call.1} parent=1 // pred_fallthru
      _
    // Predicated region
    $region62: #{tpu_custom_call.1} parent=1 // pred_check
      _
    $region63: #{tpu_custom_call.1} parent=1 // pred_check_branch
      %135 = sbr.rel (0) target = $region65
    $region64: #{tpu_custom_call.1} parent=1 // pred_region
      %136 = dma.done [#allocation3], 128
    $region65: #{tpu_custom_call.1} parent=1 // pred_fallthru
      _
    // Predicated region
    $region66: #{tpu_custom_call.1} parent=1 // pred_check
      _
    $region67: #{tpu_custom_call.1} parent=1 // pred_check_branch
      %138 = sbr.rel (0) target = $region69
    $region68: #{tpu_custom_call.1} parent=1 // pred_region
      %139 = dma.done [#allocation6], 512
    $region69: #{tpu_custom_call.1} parent=1 // pred_fallthru
      _
    // Predicated region
    $region70: #{tpu_custom_call.1} parent=1 // pred_check
      _
    $region71: #{tpu_custom_call.1} parent=1 // pred_check_branch
      %141 = sbr.rel (0) target = $region73
    $region72: #{tpu_custom_call.1} parent=1 // pred_region
      %142 = dma.done [#allocation6], 16384
    $region73: #{tpu_custom_call.1} parent=1 // pred_fallthru
      _
    // Predicated region
    $region74: #{tpu_custom_call.1} parent=1 // pred_check
      _
    $region75: #{tpu_custom_call.1} parent=1 // pred_check_branch
      %144 = sbr.rel (0) target = $region77
    $region76: #{tpu_custom_call.1} parent=1 // pred_region
      %145 = dma.done [#allocation9], 16384
    $region77: #{tpu_custom_call.1} parent=1 // pred_fallthru
      _
    // Predicated region
    $region78: #{tpu_custom_call.1} parent=1 // pred_check
      _
    $region79: #{tpu_custom_call.1} parent=1 // pred_check_branch
      %147 = sbr.rel (0) target = $region81
    $region80: #{tpu_custom_call.1} parent=1 // pred_region
      %148 = dma.done [#allocation9], 16384
    $region81: #{tpu_custom_call.1} parent=1 // pred_fallthru
      _
    // Predicated region
    $region82: #{tpu_custom_call.1} parent=1 // pred_check
      _
    $region83: #{tpu_custom_call.1} parent=1 // pred_check_branch
      %150 = sbr.rel (0) target = $region85
    $region84: #{tpu_custom_call.1} parent=1 // pred_region
      %151 = dma.done [#allocation12], 16384
    $region85: #{tpu_custom_call.1} parent=1 // pred_fallthru
      _
    // Predicated region
    $region86: #{tpu_custom_call.1} parent=1 // pred_check
      _
    $region87: #{tpu_custom_call.1} parent=1 // pred_check_branch
      %153 = sbr.rel (0) target = $region89
    $region88: #{tpu_custom_call.1} parent=1 // pred_region
      %154 = dma.done [#allocation12], 16384
    $region89: #{tpu_custom_call.1} parent=1 // pred_fallthru
      _
    // Predicated region
    $region90: #{tpu_custom_call.1} parent=1 // pred_check
      _
    $region91: #{tpu_custom_call.1} parent=1 // pred_check_branch
      %156 = sbr.rel (0) target = $region93
    $region92: #{tpu_custom_call.1} parent=1 // pred_region
      %157 = dma.done [#allocation15], 4096
    $region93: #{tpu_custom_call.1} parent=1 // pred_fallthru
      _
    %v159 = vld [vmem:[#allocation2] sm:$0xff]
    %v160 = vpack.c.bf16 %v159, %v159
    %v161 = vld [vmem:[#allocation5] sm:$0xff]
    %v162 = vld [vmem:[#allocation5 + $0x8] sm:$0xff]
    %v163 = vld [vmem:[#allocation5 + $0x10] sm:$0xff]
    %v164 = vld [vmem:[#allocation5 + $0x18] sm:$0xff]
    %v165 = vld [vmem:[%s2] sm:$0xf]
    %v167 = vlaneseq
    %v168 = vshrl.u32 %v167, 7
    %v169 = vsub.s32 0, %v168
    %v170 = vrot.slane %v165, %v169
    %v171 = vlaneseq
    %v172 = vshrl.u32 %v171, 7
    %v173 = vsub.s32 1, %v172
    %v174 = vrot.slane %v165, %v173
    %v175 = vlaneseq
    %v176 = vshrl.u32 %v175, 7
    %v177 = vsub.s32 2, %v176
    %v178 = vrot.slane %v165, %v177
    %v179 = vlaneseq
    %v180 = vshrl.u32 %v179, 7
    %v181 = vsub.s32 3, %v180
    %v182 = vrot.slane %v165, %v181
    %v191 = vunpack.c.l.b16 %v161
    %v192 = vunpack.c.h.b16 %v161
    %v193 = vunpack.c.l.b16 %v162
    %v194 = vunpack.c.h.b16 %v162
    %v195 = vunpack.c.l.b16 %v163
    %v196 = vunpack.c.h.b16 %v163
    %v197 = vunpack.c.l.b16 %v164
    %v198 = vunpack.c.h.b16 %v164
    %v199 = vpack.c.b16 %v195, %v191
    %v200 = vpack.c.b16 %v196, %v192
    %v201 = vpack.c.b16 %v197, %v193
    %v202 = vpack.c.b16 %v198, %v194
    %vm207 = vcmask 130048
    %v209 = vsel %vm207, %v160, 0
    %211 = vmatprep.subr.bf16.mxu0 %v200
    %212 = vmatpush1.bf16.msra.mxu0 %v199
    %213 = vmatprep.subr.bf16.mxu0 0
    %214 = vmatpush1.bf16.msra.mxu0 0
    %215 = vmatprep.subr.bf16.mxu0 0
    %216 = vmatpush1.bf16.msra.mxu0 0
    %217 = vmatprep.subr.bf16.mxu0 0
    %218 = vmatpush1.bf16.msra.mxu0 0
    %219 = vmatprep.subr.bf16.mxu0 0
    %220 = vmatpush1.bf16.msra.mxu0 0
    %221 = vmatprep.subr.bf16.mxu0 0
    %222 = vmatpush1.bf16.msra.mxu0 0
    %223 = vmatprep.subr.bf16.mxu0 0
    %224 = vmatpush1.bf16.msra.mxu0 0
    %225 = vmatprep.subr.bf16.mxu0 0
    %226 = vmatpush1.bf16.msra.mxu0 0
    %227 = vmatprep.subr.bf16.mxu0 0
    %228 = vmatpush1.bf16.msra.mxu0 0
    %229 = vmatprep.subr.bf16.mxu0 0
    %230 = vmatpush1.bf16.msra.mxu0 0
    %231 = vmatprep.subr.bf16.mxu0 0
    %232 = vmatpush1.bf16.msra.mxu0 0
    %233 = vmatprep.subr.bf16.mxu0 0
    %234 = vmatpush1.bf16.msra.mxu0 0
    %235 = vmatprep.subr.bf16.mxu0 0
    %236 = vmatpush1.bf16.msra.mxu0 0
    %237 = vmatprep.subr.bf16.mxu0 0
    %238 = vmatpush1.bf16.msra.mxu0 0
    %239 = vmatprep.subr.bf16.mxu0 0
    %240 = vmatpush1.bf16.msra.mxu0 0
    %241 = vmatprep.subr.bf16.mxu0 0
    %242 = vmatpush1.bf16.msra.mxu0 0
    %243 = vmatprep.mubr.bf16.mxu0 0
    %244 = vmatmul.mubr.bf16.gmra.mrb[0].mxu0 %v209
    %v245 = vpop.f32.mrb[0].mxu0
    %v246 = vadd.f32 %v170, %v245
    %v247 = vpop.f32.mrb[0].mxu0
    %v248 = vadd.f32 %v174, %v247
    %v249 = vpop.f32.mrb[0].mxu0
    %v250 = vpop.f32.mrb[0].mxu0
    %251 = vdwg.mxu0
    %252 = vmatprep.subr.bf16.mxu0 %v202
    %253 = vmatpush1.bf16.msra.mxu0 %v201
    %254 = vmatprep.subr.bf16.mxu0 0
    %255 = vmatpush1.bf16.msra.mxu0 0
    %256 = vmatprep.subr.bf16.mxu0 0
    %257 = vmatpush1.bf16.msra.mxu0 0
    %258 = vmatprep.subr.bf16.mxu0 0
    %259 = vmatpush1.bf16.msra.mxu0 0
    %260 = vmatprep.subr.bf16.mxu0 0
    %261 = vmatpush1.bf16.msra.mxu0 0
    %262 = vmatprep.subr.bf16.mxu0 0
    %263 = vmatpush1.bf16.msra.mxu0 0
    %264 = vmatprep.subr.bf16.mxu0 0
    %265 = vmatpush1.bf16.msra.mxu0 0
    %266 = vmatprep.subr.bf16.mxu0 0
    %267 = vmatpush1.bf16.msra.mxu0 0
    %268 = vmatprep.subr.bf16.mxu0 0
    %269 = vmatpush1.bf16.msra.mxu0 0
    %270 = vmatprep.subr.bf16.mxu0 0
    %271 = vmatpush1.bf16.msra.mxu0 0
    %272 = vmatprep.subr.bf16.mxu0 0
    %273 = vmatpush1.bf16.msra.mxu0 0
    %274 = vmatprep.subr.bf16.mxu0 0
    %275 = vmatpush1.bf16.msra.mxu0 0
    %276 = vmatprep.subr.bf16.mxu0 0
    %277 = vmatpush1.bf16.msra.mxu0 0
    %278 = vmatprep.subr.bf16.mxu0 0
    %279 = vmatpush1.bf16.msra.mxu0 0
    %280 = vmatprep.subr.bf16.mxu0 0
    %281 = vmatpush1.bf16.msra.mxu0 0
    %282 = vmatprep.subr.bf16.mxu0 0
    %283 = vmatpush1.bf16.msra.mxu0 0
    %284 = vmatprep.mubr.bf16.mxu0 0
    %285 = vmatmul.mubr.bf16.gmra.mrb[0].mxu0 %v209
    %v286 = vpop.f32.mrb[0].mxu0
    %v287 = vadd.f32 %v178, %v286
    %v288 = vpop.f32.mrb[0].mxu0
    %v289 = vadd.f32 %v182, %v288
    %v290 = vpop.f32.mrb[0].mxu0
    %v291 = vpop.f32.mrb[0].mxu0
    %292 = vdwg.mxu0
    %v293 = vmax.f32 %v246, 0.0
    %v294 = vmax.f32 %v248, 0.0
    %v295 = vmax.f32 %v287, 0.0
    %v296 = vmax.f32 %v289, 0.0
    %v297 = vpack.c.bf16 %v293, %v293
    %v298 = vpack.c.bf16 %v294, %v294
    %v299 = vpack.c.bf16 %v295, %v295
    %v300 = vpack.c.bf16 %v296, %v296
    %v301 = vld [vmem:[#allocation7] sm:$0xff]
    %v302 = vld [vmem:[#allocation7 + $0x8] sm:$0xff]
    %v303 = vld [vmem:[#allocation7 + $0x10] sm:$0xff]
    %v304 = vld [vmem:[#allocation7 + $0x18] sm:$0xff]
    %v305 = vld [vmem:[#allocation7 + $0x20] sm:$0xff]
    %v306 = vld [vmem:[#allocation7 + $0x28] sm:$0xff]
    %v307 = vld [vmem:[#allocation7 + $0x30] sm:$0xff]
    %v308 = vld [vmem:[#allocation7 + $0x38] sm:$0xff]
    %v309 = vld [vmem:[#allocation7 + $0x40] sm:$0xff]
    %v310 = vld [vmem:[#allocation7 + $0x48] sm:$0xff]
    %v311 = vld [vmem:[#allocation7 + $0x50] sm:$0xff]
    %v312 = vld [vmem:[#allocation7 + $0x58] sm:$0xff]
    %v313 = vld [vmem:[#allocation7 + $0x60] sm:$0xff]
    %v314 = vld [vmem:[#allocation7 + $0x68] sm:$0xff]
    %v315 = vld [vmem:[#allocation7 + $0x70] sm:$0xff]
    %v316 = vld [vmem:[#allocation7 + $0x78] sm:$0xff]
    %v317 = vld [vmem:[#allocation7 + $0x80] sm:$0xff]
    %v318 = vld [vmem:[#allocation7 + $0x88] sm:$0xff]
    %v319 = vld [vmem:[#allocation7 + $0x90] sm:$0xff]
    %v320 = vld [vmem:[#allocation7 + $0x98] sm:$0xff]
    %v321 = vld [vmem:[#allocation7 + $0xa0] sm:$0xff]
    %v322 = vld [vmem:[#allocation7 + $0xa8] sm:$0xff]
    %v323 = vld [vmem:[#allocation7 + $0xb0] sm:$0xff]
    %v324 = vld [vmem:[#allocation7 + $0xb8] sm:$0xff]
    %v325 = vld [vmem:[#allocation7 + $0xc0] sm:$0xff]
    %v326 = vld [vmem:[#allocation7 + $0xc8] sm:$0xff]
    %v327 = vld [vmem:[#allocation7 + $0xd0] sm:$0xff]
    %v328 = vld [vmem:[#allocation7 + $0xd8] sm:$0xff]
    %v329 = vld [vmem:[#allocation7 + $0xe0] sm:$0xff]
    %v330 = vld [vmem:[#allocation7 + $0xe8] sm:$0xff]
    %v331 = vld [vmem:[#allocation7 + $0xf0] sm:$0xff]
    %v332 = vld [vmem:[#allocation7 + $0xf8] sm:$0xff]
    %v333 = vld [vmem:[#allocation7 + $0x100] sm:$0xff]
    %v334 = vld [vmem:[#allocation7 + $0x108] sm:$0xff]
    %v335 = vld [vmem:[#allocation7 + $0x110] sm:$0xff]
    %v336 = vld [vmem:[#allocation7 + $0x118] sm:$0xff]
    %v337 = vld [vmem:[#allocation7 + $0x120] sm:$0xff]
    %v338 = vld [vmem:[#allocation7 + $0x128] sm:$0xff]
    %v339 = vld [vmem:[#allocation7 + $0x130] sm:$0xff]
    %v340 = vld [vmem:[#allocation7 + $0x138] sm:$0xff]
    %v341 = vld [vmem:[#allocation7 + $0x140] sm:$0xff]
    %v342 = vld [vmem:[#allocation7 + $0x148] sm:$0xff]
    %v343 = vld [vmem:[#allocation7 + $0x150] sm:$0xff]
    %v344 = vld [vmem:[#allocation7 + $0x158] sm:$0xff]
    %v345 = vld [vmem:[#allocation7 + $0x160] sm:$0xff]
    %v346 = vld [vmem:[#allocation7 + $0x168] sm:$0xff]
    %v347 = vld [vmem:[#allocation7 + $0x170] sm:$0xff]
    %v348 = vld [vmem:[#allocation7 + $0x178] sm:$0xff]
    %v349 = vld [vmem:[#allocation7 + $0x180] sm:$0xff]
    %v350 = vld [vmem:[#allocation7 + $0x188] sm:$0xff]
    %v351 = vld [vmem:[#allocation7 + $0x190] sm:$0xff]
    %v352 = vld [vmem:[#allocation7 + $0x198] sm:$0xff]
    %v353 = vld [vmem:[#allocation7 + $0x1a0] sm:$0xff]
    %v354 = vld [vmem:[#allocation7 + $0x1a8] sm:$0xff]
    %v355 = vld [vmem:[#allocation7 + $0x1b0] sm:$0xff]
    %v356 = vld [vmem:[#allocation7 + $0x1b8] sm:$0xff]
    %v357 = vld [vmem:[#allocation7 + $0x1c0] sm:$0xff]
    %v358 = vld [vmem:[#allocation7 + $0x1c8] sm:$0xff]
    %v359 = vld [vmem:[#allocation7 + $0x1d0] sm:$0xff]
    %v360 = vld [vmem:[#allocation7 + $0x1d8] sm:$0xff]
    %v361 = vld [vmem:[#allocation7 + $0x1e0] sm:$0xff]
    %v362 = vld [vmem:[#allocation7 + $0x1e8] sm:$0xff]
    %v363 = vld [vmem:[#allocation7 + $0x1f0] sm:$0xff]
    %v364 = vld [vmem:[#allocation7 + $0x1f8] sm:$0xff]
    %v365 = vld [vmem:[#allocation7 + $0x200] sm:$0xff]
    %v366 = vld [vmem:[#allocation7 + $0x208] sm:$0xff]
    %v367 = vld [vmem:[#allocation7 + $0x210] sm:$0xff]
    %v368 = vld [vmem:[#allocation7 + $0x218] sm:$0xff]
    %v369 = vld [vmem:[#allocation7 + $0x220] sm:$0xff]
    %v370 = vld [vmem:[#allocation7 + $0x228] sm:$0xff]
    %v371 = vld [vmem:[#allocation7 + $0x230] sm:$0xff]
    %v372 = vld [vmem:[#allocation7 + $0x238] sm:$0xff]
    %v373 = vld [vmem:[#allocation7 + $0x240] sm:$0xff]
    %v374 = vld [vmem:[#allocation7 + $0x248] sm:$0xff]
    %v375 = vld [vmem:[#allocation7 + $0x250] sm:$0xff]
    %v376 = vld [vmem:[#allocation7 + $0x258] sm:$0xff]
    %v377 = vld [vmem:[#allocation7 + $0x260] sm:$0xff]
    %v378 = vld [vmem:[#allocation7 + $0x268] sm:$0xff]
    %v379 = vld [vmem:[#allocation7 + $0x270] sm:$0xff]
    %v380 = vld [vmem:[#allocation7 + $0x278] sm:$0xff]
    %v381 = vld [vmem:[#allocation7 + $0x280] sm:$0xff]
    %v382 = vld [vmem:[#allocation7 + $0x288] sm:$0xff]
    %v383 = vld [vmem:[#allocation7 + $0x290] sm:$0xff]
    %v384 = vld [vmem:[#allocation7 + $0x298] sm:$0xff]
    %v385 = vld [vmem:[#allocation7 + $0x2a0] sm:$0xff]
    %v386 = vld [vmem:[#allocation7 + $0x2a8] sm:$0xff]
    %v387 = vld [vmem:[#allocation7 + $0x2b0] sm:$0xff]
    %v388 = vld [vmem:[#allocation7 + $0x2b8] sm:$0xff]
    %v389 = vld [vmem:[#allocation7 + $0x2c0] sm:$0xff]
    %v390 = vld [vmem:[#allocation7 + $0x2c8] sm:$0xff]
    %v391 = vld [vmem:[#allocation7 + $0x2d0] sm:$0xff]
    %v392 = vld [vmem:[#allocation7 + $0x2d8] sm:$0xff]
    %v393 = vld [vmem:[#allocation7 + $0x2e0] sm:$0xff]
    %v394 = vld [vmem:[#allocation7 + $0x2e8] sm:$0xff]
    %v395 = vld [vmem:[#allocation7 + $0x2f0] sm:$0xff]
    %v396 = vld [vmem:[#allocation7 + $0x2f8] sm:$0xff]
    %v397 = vld [vmem:[#allocation7 + $0x300] sm:$0xff]
    %v398 = vld [vmem:[#allocation7 + $0x308] sm:$0xff]
    %v399 = vld [vmem:[#allocation7 + $0x310] sm:$0xff]
    %v400 = vld [vmem:[#allocation7 + $0x318] sm:$0xff]
    %v401 = vld [vmem:[#allocation7 + $0x320] sm:$0xff]
    %v402 = vld [vmem:[#allocation7 + $0x328] sm:$0xff]
    %v403 = vld [vmem:[#allocation7 + $0x330] sm:$0xff]
    %v404 = vld [vmem:[#allocation7 + $0x338] sm:$0xff]
    %v405 = vld [vmem:[#allocation7 + $0x340] sm:$0xff]
    %v406 = vld [vmem:[#allocation7 + $0x348] sm:$0xff]
    %v407 = vld [vmem:[#allocation7 + $0x350] sm:$0xff]
    %v408 = vld [vmem:[#allocation7 + $0x358] sm:$0xff]
    %v409 = vld [vmem:[#allocation7 + $0x360] sm:$0xff]
    %v410 = vld [vmem:[#allocation7 + $0x368] sm:$0xff]
    %v411 = vld [vmem:[#allocation7 + $0x370] sm:$0xff]
    %v412 = vld [vmem:[#allocation7 + $0x378] sm:$0xff]
    %v413 = vld [vmem:[#allocation7 + $0x380] sm:$0xff]
    %v414 = vld [vmem:[#allocation7 + $0x388] sm:$0xff]
    %v415 = vld [vmem:[#allocation7 + $0x390] sm:$0xff]
    %v416 = vld [vmem:[#allocation7 + $0x398] sm:$0xff]
    %v417 = vld [vmem:[#allocation7 + $0x3a0] sm:$0xff]
    %v418 = vld [vmem:[#allocation7 + $0x3a8] sm:$0xff]
    %v419 = vld [vmem:[#allocation7 + $0x3b0] sm:$0xff]
    %v420 = vld [vmem:[#allocation7 + $0x3b8] sm:$0xff]
    %v421 = vld [vmem:[#allocation7 + $0x3c0] sm:$0xff]
    %v422 = vld [vmem:[#allocation7 + $0x3c8] sm:$0xff]
    %v423 = vld [vmem:[#allocation7 + $0x3d0] sm:$0xff]
    %v424 = vld [vmem:[#allocation7 + $0x3d8] sm:$0xff]
    %v425 = vld [vmem:[#allocation7 + $0x3e0] sm:$0xff]
    %v426 = vld [vmem:[#allocation7 + $0x3e8] sm:$0xff]
    %v427 = vld [vmem:[#allocation7 + $0x3f0] sm:$0xff]
    %v428 = vld [vmem:[#allocation7 + $0x3f8] sm:$0xff]
    %v429 = vld [vmem:[%s4] sm:$0xf]
    %v431 = vlaneseq
    %v432 = vshrl.u32 %v431, 7
    %v433 = vsub.s32 0, %v432
    %v434 = vrot.slane %v429, %v433
    %v435 = vlaneseq
    %v436 = vshrl.u32 %v435, 7
    %v437 = vsub.s32 1, %v436
    %v438 = vrot.slane %v429, %v437
    %v439 = vlaneseq
    %v440 = vshrl.u32 %v439, 7
    %v441 = vsub.s32 2, %v440
    %v442 = vrot.slane %v429, %v441
    %v443 = vlaneseq
    %v444 = vshrl.u32 %v443, 7
    %v445 = vsub.s32 3, %v444
    %v446 = vrot.slane %v429, %v445
    %v579 = vunpack.c.l.b16 %v301
    %v580 = vunpack.c.h.b16 %v301
    %v581 = vunpack.c.l.b16 %v302
    %v582 = vunpack.c.h.b16 %v302
    %v583 = vunpack.c.l.b16 %v303
    %v584 = vunpack.c.h.b16 %v303
    %v585 = vunpack.c.l.b16 %v304
    %v586 = vunpack.c.h.b16 %v304
    %v587 = vunpack.c.l.b16 %v305
    %v588 = vunpack.c.h.b16 %v305
    %v589 = vunpack.c.l.b16 %v306
    %v590 = vunpack.c.h.b16 %v306
    %v591 = vunpack.c.l.b16 %v307
    %v592 = vunpack.c.h.b16 %v307
    %v593 = vunpack.c.l.b16 %v308
    %v594 = vunpack.c.h.b16 %v308
    %v595 = vunpack.c.l.b16 %v309
    %v596 = vunpack.c.h.b16 %v309
    %v597 = vunpack.c.l.b16 %v310
    %v598 = vunpack.c.h.b16 %v310
    %v599 = vunpack.c.l.b16 %v311
    %v600 = vunpack.c.h.b16 %v311
    %v601 = vunpack.c.l.b16 %v312
    %v602 = vunpack.c.h.b16 %v312
    %v603 = vunpack.c.l.b16 %v313
    %v604 = vunpack.c.h.b16 %v313
    %v605 = vunpack.c.l.b16 %v314
    %v606 = vunpack.c.h.b16 %v314
    %v607 = vunpack.c.l.b16 %v315
    %v608 = vunpack.c.h.b16 %v315
    %v609 = vunpack.c.l.b16 %v316
    %v610 = vunpack.c.h.b16 %v316
    %v611 = vunpack.c.l.b16 %v317
    %v612 = vunpack.c.h.b16 %v317
    %v613 = vunpack.c.l.b16 %v318
    %v614 = vunpack.c.h.b16 %v318
    %v615 = vunpack.c.l.b16 %v319
    %v616 = vunpack.c.h.b16 %v319
    %v617 = vunpack.c.l.b16 %v320
    %v618 = vunpack.c.h.b16 %v320
    %v619 = vunpack.c.l.b16 %v321
    %v620 = vunpack.c.h.b16 %v321
    %v621 = vunpack.c.l.b16 %v322
    %v622 = vunpack.c.h.b16 %v322
    %v623 = vunpack.c.l.b16 %v323
    %v624 = vunpack.c.h.b16 %v323
    %v625 = vunpack.c.l.b16 %v324
    %v626 = vunpack.c.h.b16 %v324
    %v627 = vunpack.c.l.b16 %v325
    %v628 = vunpack.c.h.b16 %v325
    %v629 = vunpack.c.l.b16 %v326
    %v630 = vunpack.c.h.b16 %v326
    %v631 = vunpack.c.l.b16 %v327
    %v632 = vunpack.c.h.b16 %v327
    %v633 = vunpack.c.l.b16 %v328
    %v634 = vunpack.c.h.b16 %v328
    %v635 = vunpack.c.l.b16 %v329
    %v636 = vunpack.c.h.b16 %v329
    %v637 = vunpack.c.l.b16 %v330
    %v638 = vunpack.c.h.b16 %v330
    %v639 = vunpack.c.l.b16 %v331
    %v640 = vunpack.c.h.b16 %v331
    %v641 = vunpack.c.l.b16 %v332
    %v642 = vunpack.c.h.b16 %v332
    %v643 = vunpack.c.l.b16 %v333
    %v644 = vunpack.c.h.b16 %v333
    %v645 = vunpack.c.l.b16 %v334
    %v646 = vunpack.c.h.b16 %v334
    %v647 = vunpack.c.l.b16 %v335
    %v648 = vunpack.c.h.b16 %v335
    %v649 = vunpack.c.l.b16 %v336
    %v650 = vunpack.c.h.b16 %v336
    %v651 = vunpack.c.l.b16 %v337
    %v652 = vunpack.c.h.b16 %v337
    %v653 = vunpack.c.l.b16 %v338
    %v654 = vunpack.c.h.b16 %v338
    %v655 = vunpack.c.l.b16 %v339
    %v656 = vunpack.c.h.b16 %v339
    %v657 = vunpack.c.l.b16 %v340
    %v658 = vunpack.c.h.b16 %v340
    %v659 = vunpack.c.l.b16 %v341
    %v660 = vunpack.c.h.b16 %v341
    %v661 = vunpack.c.l.b16 %v342
    %v662 = vunpack.c.h.b16 %v342
    %v663 = vunpack.c.l.b16 %v343
    %v664 = vunpack.c.h.b16 %v343
    %v665 = vunpack.c.l.b16 %v344
    %v666 = vunpack.c.h.b16 %v344
    %v667 = vunpack.c.l.b16 %v345
    %v668 = vunpack.c.h.b16 %v345
    %v669 = vunpack.c.l.b16 %v346
    %v670 = vunpack.c.h.b16 %v346
    %v671 = vunpack.c.l.b16 %v347
    %v672 = vunpack.c.h.b16 %v347
    %v673 = vunpack.c.l.b16 %v348
    %v674 = vunpack.c.h.b16 %v348
    %v675 = vunpack.c.l.b16 %v349
    %v676 = vunpack.c.h.b16 %v349
    %v677 = vunpack.c.l.b16 %v350
    %v678 = vunpack.c.h.b16 %v350
    %v679 = vunpack.c.l.b16 %v351
    %v680 = vunpack.c.h.b16 %v351
    %v681 = vunpack.c.l.b16 %v352
    %v682 = vunpack.c.h.b16 %v352
    %v683 = vunpack.c.l.b16 %v353
    %v684 = vunpack.c.h.b16 %v353
    %v685 = vunpack.c.l.b16 %v354
    %v686 = vunpack.c.h.b16 %v354
    %v687 = vunpack.c.l.b16 %v355
    %v688 = vunpack.c.h.b16 %v355
    %v689 = vunpack.c.l.b16 %v356
    %v690 = vunpack.c.h.b16 %v356
    %v691 = vunpack.c.l.b16 %v357
    %v692 = vunpack.c.h.b16 %v357
    %v693 = vunpack.c.l.b16 %v358
    %v694 = vunpack.c.h.b16 %v358
    %v695 = vunpack.c.l.b16 %v359
    %v696 = vunpack.c.h.b16 %v359
    %v697 = vunpack.c.l.b16 %v360
    %v698 = vunpack.c.h.b16 %v360
    %v699 = vunpack.c.l.b16 %v361
    %v700 = vunpack.c.h.b16 %v361
    %v701 = vunpack.c.l.b16 %v362
    %v702 = vunpack.c.h.b16 %v362
    %v703 = vunpack.c.l.b16 %v363
    %v704 = vunpack.c.h.b16 %v363
    %v705 = vunpack.c.l.b16 %v364
    %v706 = vunpack.c.h.b16 %v364
    %v707 = vunpack.c.l.b16 %v365
    %v708 = vunpack.c.h.b16 %v365
    %v709 = vunpack.c.l.b16 %v366
    %v710 = vunpack.c.h.b16 %v366
    %v711 = vunpack.c.l.b16 %v367
    %v712 = vunpack.c.h.b16 %v367
    %v713 = vunpack.c.l.b16 %v368
    %v714 = vunpack.c.h.b16 %v368
    %v715 = vunpack.c.l.b16 %v369
    %v716 = vunpack.c.h.b16 %v369
    %v717 = vunpack.c.l.b16 %v370
    %v718 = vunpack.c.h.b16 %v370
    %v719 = vunpack.c.l.b16 %v371
    %v720 = vunpack.c.h.b16 %v371
    %v721 = vunpack.c.l.b16 %v372
    %v722 = vunpack.c.h.b16 %v372
    %v723 = vunpack.c.l.b16 %v373
    %v724 = vunpack.c.h.b16 %v373
    %v725 = vunpack.c.l.b16 %v374
    %v726 = vunpack.c.h.b16 %v374
    %v727 = vunpack.c.l.b16 %v375
    %v728 = vunpack.c.h.b16 %v375
    %v729 = vunpack.c.l.b16 %v376
    %v730 = vunpack.c.h.b16 %v376
    %v731 = vunpack.c.l.b16 %v377
    %v732 = vunpack.c.h.b16 %v377
    %v733 = vunpack.c.l.b16 %v378
    %v734 = vunpack.c.h.b16 %v378
    %v735 = vunpack.c.l.b16 %v379
    %v736 = vunpack.c.h.b16 %v379
    %v737 = vunpack.c.l.b16 %v380
    %v738 = vunpack.c.h.b16 %v380
    %v739 = vunpack.c.l.b16 %v381
    %v740 = vunpack.c.h.b16 %v381
    %v741 = vunpack.c.l.b16 %v382
    %v742 = vunpack.c.h.b16 %v382
    %v743 = vunpack.c.l.b16 %v383
    %v744 = vunpack.c.h.b16 %v383
    %v745 = vunpack.c.l.b16 %v384
    %v746 = vunpack.c.h.b16 %v384
    %v747 = vunpack.c.l.b16 %v385
    %v748 = vunpack.c.h.b16 %v385
    %v749 = vunpack.c.l.b16 %v386
    %v750 = vunpack.c.h.b16 %v386
    %v751 = vunpack.c.l.b16 %v387
    %v752 = vunpack.c.h.b16 %v387
    %v753 = vunpack.c.l.b16 %v388
    %v754 = vunpack.c.h.b16 %v388
    %v755 = vunpack.c.l.b16 %v389
    %v756 = vunpack.c.h.b16 %v389
    %v757 = vunpack.c.l.b16 %v390
    %v758 = vunpack.c.h.b16 %v390
    %v759 = vunpack.c.l.b16 %v391
    %v760 = vunpack.c.h.b16 %v391
    %v761 = vunpack.c.l.b16 %v392
    %v762 = vunpack.c.h.b16 %v392
    %v763 = vunpack.c.l.b16 %v393
    %v764 = vunpack.c.h.b16 %v393
    %v765 = vunpack.c.l.b16 %v394
    %v766 = vunpack.c.h.b16 %v394
    %v767 = vunpack.c.l.b16 %v395
    %v768 = vunpack.c.h.b16 %v395
    %v769 = vunpack.c.l.b16 %v396
    %v770 = vunpack.c.h.b16 %v396
    %v771 = vunpack.c.l.b16 %v397
    %v772 = vunpack.c.h.b16 %v397
    %v773 = vunpack.c.l.b16 %v398
    %v774 = vunpack.c.h.b16 %v398
    %v775 = vunpack.c.l.b16 %v399
    %v776 = vunpack.c.h.b16 %v399
    %v777 = vunpack.c.l.b16 %v400
    %v778 = vunpack.c.h.b16 %v400
    %v779 = vunpack.c.l.b16 %v401
    %v780 = vunpack.c.h.b16 %v401
    %v781 = vunpack.c.l.b16 %v402
    %v782 = vunpack.c.h.b16 %v402
    %v783 = vunpack.c.l.b16 %v403
    %v784 = vunpack.c.h.b16 %v403
    %v785 = vunpack.c.l.b16 %v404
    %v786 = vunpack.c.h.b16 %v404
    %v787 = vunpack.c.l.b16 %v405
    %v788 = vunpack.c.h.b16 %v405
    %v789 = vunpack.c.l.b16 %v406
    %v790 = vunpack.c.h.b16 %v406
    %v791 = vunpack.c.l.b16 %v407
    %v792 = vunpack.c.h.b16 %v407
    %v793 = vunpack.c.l.b16 %v408
    %v794 = vunpack.c.h.b16 %v408
    %v795 = vunpack.c.l.b16 %v409
    %v796 = vunpack.c.h.b16 %v409
    %v797 = vunpack.c.l.b16 %v410
    %v798 = vunpack.c.h.b16 %v410
    %v799 = vunpack.c.l.b16 %v411
    %v800 = vunpack.c.h.b16 %v411
    %v801 = vunpack.c.l.b16 %v412
    %v802 = vunpack.c.h.b16 %v412
    %v803 = vunpack.c.l.b16 %v413
    %v804 = vunpack.c.h.b16 %v413
    %v805 = vunpack.c.l.b16 %v414
    %v806 = vunpack.c.h.b16 %v414
    %v807 = vunpack.c.l.b16 %v415
    %v808 = vunpack.c.h.b16 %v415
    %v809 = vunpack.c.l.b16 %v416
    %v810 = vunpack.c.h.b16 %v416
    %v811 = vunpack.c.l.b16 %v417
    %v812 = vunpack.c.h.b16 %v417
    %v813 = vunpack.c.l.b16 %v418
    %v814 = vunpack.c.h.b16 %v418
    %v815 = vunpack.c.l.b16 %v419
    %v816 = vunpack.c.h.b16 %v419
    %v817 = vunpack.c.l.b16 %v420
    %v818 = vunpack.c.h.b16 %v420
    %v819 = vunpack.c.l.b16 %v421
    %v820 = vunpack.c.h.b16 %v421
    %v821 = vunpack.c.l.b16 %v422
    %v822 = vunpack.c.h.b16 %v422
    %v823 = vunpack.c.l.b16 %v423
    %v824 = vunpack.c.h.b16 %v423
    %v825 = vunpack.c.l.b16 %v424
    %v826 = vunpack.c.h.b16 %v424
    %v827 = vunpack.c.l.b16 %v425
    %v828 = vunpack.c.h.b16 %v425
    %v829 = vunpack.c.l.b16 %v426
    %v830 = vunpack.c.h.b16 %v426
    %v831 = vunpack.c.l.b16 %v427
    %v832 = vunpack.c.h.b16 %v427
    %v833 = vunpack.c.l.b16 %v428
    %v834 = vunpack.c.h.b16 %v428
    %v835 = vpack.c.b16 %v583, %v579
    %v836 = vpack.c.b16 %v584, %v580
    %v837 = vpack.c.b16 %v585, %v581
    %v838 = vpack.c.b16 %v586, %v582
    %v839 = vpack.c.b16 %v591, %v587
    %v840 = vpack.c.b16 %v592, %v588
    %v841 = vpack.c.b16 %v593, %v589
    %v842 = vpack.c.b16 %v594, %v590
    %v843 = vpack.c.b16 %v599, %v595
    %v844 = vpack.c.b16 %v600, %v596
    %v845 = vpack.c.b16 %v601, %v597
    %v846 = vpack.c.b16 %v602, %v598
    %v847 = vpack.c.b16 %v607, %v603
    %v848 = vpack.c.b16 %v608, %v604
    %v849 = vpack.c.b16 %v609, %v605
    %v850 = vpack.c.b16 %v610, %v606
    %v851 = vpack.c.b16 %v615, %v611
    %v852 = vpack.c.b16 %v616, %v612
    %v853 = vpack.c.b16 %v617, %v613
    %v854 = vpack.c.b16 %v618, %v614
    %v855 = vpack.c.b16 %v623, %v619
    %v856 = vpack.c.b16 %v624, %v620
    %v857 = vpack.c.b16 %v625, %v621
    %v858 = vpack.c.b16 %v626, %v622
    %v859 = vpack.c.b16 %v631, %v627
    %v860 = vpack.c.b16 %v632, %v628
    %v861 = vpack.c.b16 %v633, %v629
    %v862 = vpack.c.b16 %v634, %v630
    %v863 = vpack.c.b16 %v639, %v635
    %v864 = vpack.c.b16 %v640, %v636
    %v865 = vpack.c.b16 %v641, %v637
    %v866 = vpack.c.b16 %v642, %v638
    %v867 = vpack.c.b16 %v647, %v643
    %v868 = vpack.c.b16 %v648, %v644
    %v869 = vpack.c.b16 %v649, %v645
    %v870 = vpack.c.b16 %v650, %v646
    %v871 = vpack.c.b16 %v655, %v651
    %v872 = vpack.c.b16 %v656, %v652
    %v873 = vpack.c.b16 %v657, %v653
    %v874 = vpack.c.b16 %v658, %v654
    %v875 = vpack.c.b16 %v663, %v659
    %v876 = vpack.c.b16 %v664, %v660
    %v877 = vpack.c.b16 %v665, %v661
    %v878 = vpack.c.b16 %v666, %v662
    %v879 = vpack.c.b16 %v671, %v667
    %v880 = vpack.c.b16 %v672, %v668
    %v881 = vpack.c.b16 %v673, %v669
    %v882 = vpack.c.b16 %v674, %v670
    %v883 = vpack.c.b16 %v679, %v675
    %v884 = vpack.c.b16 %v680, %v676
    %v885 = vpack.c.b16 %v681, %v677
    %v886 = vpack.c.b16 %v682, %v678
    %v887 = vpack.c.b16 %v687, %v683
    %v888 = vpack.c.b16 %v688, %v684
    %v889 = vpack.c.b16 %v689, %v685
    %v890 = vpack.c.b16 %v690, %v686
    %v891 = vpack.c.b16 %v695, %v691
    %v892 = vpack.c.b16 %v696, %v692
    %v893 = vpack.c.b16 %v697, %v693
    %v894 = vpack.c.b16 %v698, %v694
    %v895 = vpack.c.b16 %v703, %v699
    %v896 = vpack.c.b16 %v704, %v700
    %v897 = vpack.c.b16 %v705, %v701
    %v898 = vpack.c.b16 %v706, %v702
    %v899 = vpack.c.b16 %v711, %v707
    %v900 = vpack.c.b16 %v712, %v708
    %v901 = vpack.c.b16 %v713, %v709
    %v902 = vpack.c.b16 %v714, %v710
    %v903 = vpack.c.b16 %v719, %v715
    %v904 = vpack.c.b16 %v720, %v716
    %v905 = vpack.c.b16 %v721, %v717
    %v906 = vpack.c.b16 %v722, %v718
    %v907 = vpack.c.b16 %v727, %v723
    %v908 = vpack.c.b16 %v728, %v724
    %v909 = vpack.c.b16 %v729, %v725
    %v910 = vpack.c.b16 %v730, %v726
    %v911 = vpack.c.b16 %v735, %v731
    %v912 = vpack.c.b16 %v736, %v732
    %v913 = vpack.c.b16 %v737, %v733
    %v914 = vpack.c.b16 %v738, %v734
    %v915 = vpack.c.b16 %v743, %v739
    %v916 = vpack.c.b16 %v744, %v740
    %v917 = vpack.c.b16 %v745, %v741
    %v918 = vpack.c.b16 %v746, %v742
    %v919 = vpack.c.b16 %v751, %v747
    %v920 = vpack.c.b16 %v752, %v748
    %v921 = vpack.c.b16 %v753, %v749
    %v922 = vpack.c.b16 %v754, %v750
    %v923 = vpack.c.b16 %v759, %v755
    %v924 = vpack.c.b16 %v760, %v756
    %v925 = vpack.c.b16 %v761, %v757
    %v926 = vpack.c.b16 %v762, %v758
    %v927 = vpack.c.b16 %v767, %v763
    %v928 = vpack.c.b16 %v768, %v764
    %v929 = vpack.c.b16 %v769, %v765
    %v930 = vpack.c.b16 %v770, %v766
    %v931 = vpack.c.b16 %v775, %v771
    %v932 = vpack.c.b16 %v776, %v772
    %v933 = vpack.c.b16 %v777, %v773
    %v934 = vpack.c.b16 %v778, %v774
    %v935 = vpack.c.b16 %v783, %v779
    %v936 = vpack.c.b16 %v784, %v780
    %v937 = vpack.c.b16 %v785, %v781
    %v938 = vpack.c.b16 %v786, %v782
    %v939 = vpack.c.b16 %v791, %v787
    %v940 = vpack.c.b16 %v792, %v788
    %v941 = vpack.c.b16 %v793, %v789
    %v942 = vpack.c.b16 %v794, %v790
    %v943 = vpack.c.b16 %v799, %v795
    %v944 = vpack.c.b16 %v800, %v796
    %v945 = vpack.c.b16 %v801, %v797
    %v946 = vpack.c.b16 %v802, %v798
    %v947 = vpack.c.b16 %v807, %v803
    %v948 = vpack.c.b16 %v808, %v804
    %v949 = vpack.c.b16 %v809, %v805
    %v950 = vpack.c.b16 %v810, %v806
    %v951 = vpack.c.b16 %v815, %v811
    %v952 = vpack.c.b16 %v816, %v812
    %v953 = vpack.c.b16 %v817, %v813
    %v954 = vpack.c.b16 %v818, %v814
    %v955 = vpack.c.b16 %v823, %v819
    %v956 = vpack.c.b16 %v824, %v820
    %v957 = vpack.c.b16 %v825, %v821
    %v958 = vpack.c.b16 %v826, %v822
    %v959 = vpack.c.b16 %v831, %v827
    %v960 = vpack.c.b16 %v832, %v828
    %v961 = vpack.c.b16 %v833, %v829
    %v962 = vpack.c.b16 %v834, %v830
    %1091 = vmatprep.subr.bf16.mxu0 %v836
    %1092 = vmatpush1.bf16.msra.mxu0 %v835
    %1093 = vmatprep.subr.bf16.mxu0 %v840
    %1094 = vmatpush1.bf16.msra.mxu0 %v839
    %1095 = vmatprep.subr.bf16.mxu0 %v844
    %1096 = vmatpush1.bf16.msra.mxu0 %v843
    %1097 = vmatprep.subr.bf16.mxu0 %v848
    %1098 = vmatpush1.bf16.msra.mxu0 %v847
    %1099 = vmatprep.subr.bf16.mxu0 %v852
    %1100 = vmatpush1.bf16.msra.mxu0 %v851
    %1101 = vmatprep.subr.bf16.mxu0 %v856
    %1102 = vmatpush1.bf16.msra.mxu0 %v855
    %1103 = vmatprep.subr.bf16.mxu0 %v860
    %1104 = vmatpush1.bf16.msra.mxu0 %v859
    %1105 = vmatprep.subr.bf16.mxu0 %v864
    %1106 = vmatpush1.bf16.msra.mxu0 %v863
    %1107 = vmatprep.subr.bf16.mxu0 %v868
    %1108 = vmatpush1.bf16.msra.mxu0 %v867
    %1109 = vmatprep.subr.bf16.mxu0 %v872
    %1110 = vmatpush1.bf16.msra.mxu0 %v871
    %1111 = vmatprep.subr.bf16.mxu0 %v876
    %1112 = vmatpush1.bf16.msra.mxu0 %v875
    %1113 = vmatprep.subr.bf16.mxu0 %v880
    %1114 = vmatpush1.bf16.msra.mxu0 %v879
    %1115 = vmatprep.subr.bf16.mxu0 %v884
    %1116 = vmatpush1.bf16.msra.mxu0 %v883
    %1117 = vmatprep.subr.bf16.mxu0 %v888
    %1118 = vmatpush1.bf16.msra.mxu0 %v887
    %1119 = vmatprep.subr.bf16.mxu0 %v892
    %1120 = vmatpush1.bf16.msra.mxu0 %v891
    %1121 = vmatprep.subr.bf16.mxu0 %v896
    %1122 = vmatpush1.bf16.msra.mxu0 %v895
    %1123 = vmatprep.mubr.bf16.mxu0 %v298
    %1124 = vmatmul.mubr.bf16.gmra.mrb[0].mxu0 %v297
    %v1125 = vpop.f32.mrb[0].mxu0
    %v1126 = vadd.f32 %v434, %v1125
    %v1127 = vpop.f32.mrb[0].mxu0
    %v1128 = vadd.f32 %v438, %v1127
    %v1129 = vpop.f32.mrb[0].mxu0
    %v1130 = vpop.f32.mrb[0].mxu0
    %1131 = vdwg.mxu0
    %1132 = vmatprep.subr.bf16.mxu0 %v900
    %1133 = vmatpush1.bf16.msra.mxu0 %v899
    %1134 = vmatprep.subr.bf16.mxu0 %v904
    %1135 = vmatpush1.bf16.msra.mxu0 %v903
    %1136 = vmatprep.subr.bf16.mxu0 %v908
    %1137 = vmatpush1.bf16.msra.mxu0 %v907
    %1138 = vmatprep.subr.bf16.mxu0 %v912
    %1139 = vmatpush1.bf16.msra.mxu0 %v911
    %1140 = vmatprep.subr.bf16.mxu0 %v916
    %1141 = vmatpush1.bf16.msra.mxu0 %v915
    %1142 = vmatprep.subr.bf16.mxu0 %v920
    %1143 = vmatpush1.bf16.msra.mxu0 %v919
    %1144 = vmatprep.subr.bf16.mxu0 %v924
    %1145 = vmatpush1.bf16.msra.mxu0 %v923
    %1146 = vmatprep.subr.bf16.mxu0 %v928
    %1147 = vmatpush1.bf16.msra.mxu0 %v927
    %1148 = vmatprep.subr.bf16.mxu0 %v932
    %1149 = vmatpush1.bf16.msra.mxu0 %v931
    %1150 = vmatprep.subr.bf16.mxu0 %v936
    %1151 = vmatpush1.bf16.msra.mxu0 %v935
    %1152 = vmatprep.subr.bf16.mxu0 %v940
    %1153 = vmatpush1.bf16.msra.mxu0 %v939
    %1154 = vmatprep.subr.bf16.mxu0 %v944
    %1155 = vmatpush1.bf16.msra.mxu0 %v943
    %1156 = vmatprep.subr.bf16.mxu0 %v948
    %1157 = vmatpush1.bf16.msra.mxu0 %v947
    %1158 = vmatprep.subr.bf16.mxu0 %v952
    %1159 = vmatpush1.bf16.msra.mxu0 %v951
    %1160 = vmatprep.subr.bf16.mxu0 %v956
    %1161 = vmatpush1.bf16.msra.mxu0 %v955
    %1162 = vmatprep.subr.bf16.mxu0 %v960
    %1163 = vmatpush1.bf16.msra.mxu0 %v959
    %1164 = vmatprep.mubr.bf16.mxu0 %v300
    %1165 = vmatmul.mubr.bf16.gmra.mrb[0].mxu0 %v299
    %v1166 = vpop.f32.mrb[0].mxu0
    %v1167 = vadd.f32 %v1126, %v1166
    %v1168 = vpop.f32.mrb[0].mxu0
    %v1169 = vadd.f32 %v1128, %v1168
    %v1170 = vpop.f32.mrb[0].mxu0
    %v1171 = vpop.f32.mrb[0].mxu0
    %1172 = vdwg.mxu0
    %1173 = vmatprep.subr.bf16.mxu0 %v838
    %1174 = vmatpush1.bf16.msra.mxu0 %v837
    %1175 = vmatprep.subr.bf16.mxu0 %v842
    %1176 = vmatpush1.bf16.msra.mxu0 %v841
    %1177 = vmatprep.subr.bf16.mxu0 %v846
    %1178 = vmatpush1.bf16.msra.mxu0 %v845
    %1179 = vmatprep.subr.bf16.mxu0 %v850
    %1180 = vmatpush1.bf16.msra.mxu0 %v849
    %1181 = vmatprep.subr.bf16.mxu0 %v854
    %1182 = vmatpush1.bf16.msra.mxu0 %v853
    %1183 = vmatprep.subr.bf16.mxu0 %v858
    %1184 = vmatpush1.bf16.msra.mxu0 %v857
    %1185 = vmatprep.subr.bf16.mxu0 %v862
    %1186 = vmatpush1.bf16.msra.mxu0 %v861
    %1187 = vmatprep.subr.bf16.mxu0 %v866
    %1188 = vmatpush1.bf16.msra.mxu0 %v865
    %1189 = vmatprep.subr.bf16.mxu0 %v870
    %1190 = vmatpush1.bf16.msra.mxu0 %v869
    %1191 = vmatprep.subr.bf16.mxu0 %v874
    %1192 = vmatpush1.bf16.msra.mxu0 %v873
    %1193 = vmatprep.subr.bf16.mxu0 %v878
    %1194 = vmatpush1.bf16.msra.mxu0 %v877
    %1195 = vmatprep.subr.bf16.mxu0 %v882
    %1196 = vmatpush1.bf16.msra.mxu0 %v881
    %1197 = vmatprep.subr.bf16.mxu0 %v886
    %1198 = vmatpush1.bf16.msra.mxu0 %v885
    %1199 = vmatprep.subr.bf16.mxu0 %v890
    %1200 = vmatpush1.bf16.msra.mxu0 %v889
    %1201 = vmatprep.subr.bf16.mxu0 %v894
    %1202 = vmatpush1.bf16.msra.mxu0 %v893
    %1203 = vmatprep.subr.bf16.mxu0 %v898
    %1204 = vmatpush1.bf16.msra.mxu0 %v897
    %1205 = vmatprep.mubr.bf16.mxu0 %v298
    %1206 = vmatmul.mubr.bf16.gmra.mrb[0].mxu0 %v297
    %v1207 = vpop.f32.mrb[0].mxu0
    %v1208 = vadd.f32 %v442, %v1207
    %v1209 = vpop.f32.mrb[0].mxu0
    %v1210 = vadd.f32 %v446, %v1209
    %v1211 = vpop.f32.mrb[0].mxu0
    %v1212 = vpop.f32.mrb[0].mxu0
    %1213 = vdwg.mxu0
    %1214 = vmatprep.subr.bf16.mxu0 %v902
    %1215 = vmatpush1.bf16.msra.mxu0 %v901
    %1216 = vmatprep.subr.bf16.mxu0 %v906
    %1217 = vmatpush1.bf16.msra.mxu0 %v905
    %1218 = vmatprep.subr.bf16.mxu0 %v910
    %1219 = vmatpush1.bf16.msra.mxu0 %v909
    %1220 = vmatprep.subr.bf16.mxu0 %v914
    %1221 = vmatpush1.bf16.msra.mxu0 %v913
    %1222 = vmatprep.subr.bf16.mxu0 %v918
    %1223 = vmatpush1.bf16.msra.mxu0 %v917
    %1224 = vmatprep.subr.bf16.mxu0 %v922
    %1225 = vmatpush1.bf16.msra.mxu0 %v921
    %1226 = vmatprep.subr.bf16.mxu0 %v926
    %1227 = vmatpush1.bf16.msra.mxu0 %v925
    %1228 = vmatprep.subr.bf16.mxu0 %v930
    %1229 = vmatpush1.bf16.msra.mxu0 %v929
    %1230 = vmatprep.subr.bf16.mxu0 %v934
    %1231 = vmatpush1.bf16.msra.mxu0 %v933
    %1232 = vmatprep.subr.bf16.mxu0 %v938
    %1233 = vmatpush1.bf16.msra.mxu0 %v937
    %1234 = vmatprep.subr.bf16.mxu0 %v942
    %1235 = vmatpush1.bf16.msra.mxu0 %v941
    %1236 = vmatprep.subr.bf16.mxu0 %v946
    %1237 = vmatpush1.bf16.msra.mxu0 %v945
    %1238 = vmatprep.subr.bf16.mxu0 %v950
    %1239 = vmatpush1.bf16.msra.mxu0 %v949
    %1240 = vmatprep.subr.bf16.mxu0 %v954
    %1241 = vmatpush1.bf16.msra.mxu0 %v953
    %1242 = vmatprep.subr.bf16.mxu0 %v958
    %1243 = vmatpush1.bf16.msra.mxu0 %v957
    %1244 = vmatprep.subr.bf16.mxu0 %v962
    %1245 = vmatpush1.bf16.msra.mxu0 %v961
    %1246 = vmatprep.mubr.bf16.mxu0 %v300
    %1247 = vmatmul.mubr.bf16.gmra.mrb[0].mxu0 %v299
    %v1248 = vpop.f32.mrb[0].mxu0
    %v1249 = vadd.f32 %v1208, %v1248
    %v1250 = vpop.f32.mrb[0].mxu0
    %v1251 = vadd.f32 %v1210, %v1250
    %v1252 = vpop.f32.mrb[0].mxu0
    %v1253 = vpop.f32.mrb[0].mxu0
    %1254 = vdwg.mxu0
    %v1255 = vmax.f32 %v1167, 0.0
    %v1256 = vmax.f32 %v1169, 0.0
    %v1257 = vmax.f32 %v1249, 0.0
    %v1258 = vmax.f32 %v1251, 0.0
    %v1259 = vpack.c.bf16 %v1255, %v1255
    %v1260 = vpack.c.bf16 %v1256, %v1256
    %v1261 = vpack.c.bf16 %v1257, %v1257
    %v1262 = vpack.c.bf16 %v1258, %v1258
    %v1263 = vld [vmem:[#allocation8] sm:$0xff]
    %v1264 = vld [vmem:[#allocation8 + $0x8] sm:$0xff]
    %v1265 = vld [vmem:[#allocation8 + $0x10] sm:$0xff]
    %v1266 = vld [vmem:[#allocation8 + $0x18] sm:$0xff]
    %v1267 = vld [vmem:[#allocation8 + $0x20] sm:$0xff]
    %v1268 = vld [vmem:[#allocation8 + $0x28] sm:$0xff]
    %v1269 = vld [vmem:[#allocation8 + $0x30] sm:$0xff]
    %v1270 = vld [vmem:[#allocation8 + $0x38] sm:$0xff]
    %v1271 = vld [vmem:[#allocation8 + $0x40] sm:$0xff]
    %v1272 = vld [vmem:[#allocation8 + $0x48] sm:$0xff]
    %v1273 = vld [vmem:[#allocation8 + $0x50] sm:$0xff]
    %v1274 = vld [vmem:[#allocation8 + $0x58] sm:$0xff]
    %v1275 = vld [vmem:[#allocation8 + $0x60] sm:$0xff]
    %v1276 = vld [vmem:[#allocation8 + $0x68] sm:$0xff]
    %v1277 = vld [vmem:[#allocation8 + $0x70] sm:$0xff]
    %v1278 = vld [vmem:[#allocation8 + $0x78] sm:$0xff]
    %v1279 = vld [vmem:[#allocation8 + $0x80] sm:$0xff]
    %v1280 = vld [vmem:[#allocation8 + $0x88] sm:$0xff]
    %v1281 = vld [vmem:[#allocation8 + $0x90] sm:$0xff]
    %v1282 = vld [vmem:[#allocation8 + $0x98] sm:$0xff]
    %v1283 = vld [vmem:[#allocation8 + $0xa0] sm:$0xff]
    %v1284 = vld [vmem:[#allocation8 + $0xa8] sm:$0xff]
    %v1285 = vld [vmem:[#allocation8 + $0xb0] sm:$0xff]
    %v1286 = vld [vmem:[#allocation8 + $0xb8] sm:$0xff]
    %v1287 = vld [vmem:[#allocation8 + $0xc0] sm:$0xff]
    %v1288 = vld [vmem:[#allocation8 + $0xc8] sm:$0xff]
    %v1289 = vld [vmem:[#allocation8 + $0xd0] sm:$0xff]
    %v1290 = vld [vmem:[#allocation8 + $0xd8] sm:$0xff]
    %v1291 = vld [vmem:[#allocation8 + $0xe0] sm:$0xff]
    %v1292 = vld [vmem:[#allocation8 + $0xe8] sm:$0xff]
    %v1293 = vld [vmem:[#allocation8 + $0xf0] sm:$0xff]
    %v1294 = vld [vmem:[#allocation8 + $0xf8] sm:$0xff]
    %v1295 = vld [vmem:[#allocation8 + $0x100] sm:$0xff]
    %v1296 = vld [vmem:[#allocation8 + $0x108] sm:$0xff]
    %v1297 = vld [vmem:[#allocation8 + $0x110] sm:$0xff]
    %v1298 = vld [vmem:[#allocation8 + $0x118] sm:$0xff]
    %v1299 = vld [vmem:[#allocation8 + $0x120] sm:$0xff]
    %v1300 = vld [vmem:[#allocation8 + $0x128] sm:$0xff]
    %v1301 = vld [vmem:[#allocation8 + $0x130] sm:$0xff]
    %v1302 = vld [vmem:[#allocation8 + $0x138] sm:$0xff]
    %v1303 = vld [vmem:[#allocation8 + $0x140] sm:$0xff]
    %v1304 = vld [vmem:[#allocation8 + $0x148] sm:$0xff]
    %v1305 = vld [vmem:[#allocation8 + $0x150] sm:$0xff]
    %v1306 = vld [vmem:[#allocation8 + $0x158] sm:$0xff]
    %v1307 = vld [vmem:[#allocation8 + $0x160] sm:$0xff]
    %v1308 = vld [vmem:[#allocation8 + $0x168] sm:$0xff]
    %v1309 = vld [vmem:[#allocation8 + $0x170] sm:$0xff]
    %v1310 = vld [vmem:[#allocation8 + $0x178] sm:$0xff]
    %v1311 = vld [vmem:[#allocation8 + $0x180] sm:$0xff]
    %v1312 = vld [vmem:[#allocation8 + $0x188] sm:$0xff]
    %v1313 = vld [vmem:[#allocation8 + $0x190] sm:$0xff]
    %v1314 = vld [vmem:[#allocation8 + $0x198] sm:$0xff]
    %v1315 = vld [vmem:[#allocation8 + $0x1a0] sm:$0xff]
    %v1316 = vld [vmem:[#allocation8 + $0x1a8] sm:$0xff]
    %v1317 = vld [vmem:[#allocation8 + $0x1b0] sm:$0xff]
    %v1318 = vld [vmem:[#allocation8 + $0x1b8] sm:$0xff]
    %v1319 = vld [vmem:[#allocation8 + $0x1c0] sm:$0xff]
    %v1320 = vld [vmem:[#allocation8 + $0x1c8] sm:$0xff]
    %v1321 = vld [vmem:[#allocation8 + $0x1d0] sm:$0xff]
    %v1322 = vld [vmem:[#allocation8 + $0x1d8] sm:$0xff]
    %v1323 = vld [vmem:[#allocation8 + $0x1e0] sm:$0xff]
    %v1324 = vld [vmem:[#allocation8 + $0x1e8] sm:$0xff]
    %v1325 = vld [vmem:[#allocation8 + $0x1f0] sm:$0xff]
    %v1326 = vld [vmem:[#allocation8 + $0x1f8] sm:$0xff]
    %v1327 = vld [vmem:[#allocation8 + $0x200] sm:$0xff]
    %v1328 = vld [vmem:[#allocation8 + $0x208] sm:$0xff]
    %v1329 = vld [vmem:[#allocation8 + $0x210] sm:$0xff]
    %v1330 = vld [vmem:[#allocation8 + $0x218] sm:$0xff]
    %v1331 = vld [vmem:[#allocation8 + $0x220] sm:$0xff]
    %v1332 = vld [vmem:[#allocation8 + $0x228] sm:$0xff]
    %v1333 = vld [vmem:[#allocation8 + $0x230] sm:$0xff]
    %v1334 = vld [vmem:[#allocation8 + $0x238] sm:$0xff]
    %v1335 = vld [vmem:[#allocation8 + $0x240] sm:$0xff]
    %v1336 = vld [vmem:[#allocation8 + $0x248] sm:$0xff]
    %v1337 = vld [vmem:[#allocation8 + $0x250] sm:$0xff]
    %v1338 = vld [vmem:[#allocation8 + $0x258] sm:$0xff]
    %v1339 = vld [vmem:[#allocation8 + $0x260] sm:$0xff]
    %v1340 = vld [vmem:[#allocation8 + $0x268] sm:$0xff]
    %v1341 = vld [vmem:[#allocation8 + $0x270] sm:$0xff]
    %v1342 = vld [vmem:[#allocation8 + $0x278] sm:$0xff]
    %v1343 = vld [vmem:[#allocation8 + $0x280] sm:$0xff]
    %v1344 = vld [vmem:[#allocation8 + $0x288] sm:$0xff]
    %v1345 = vld [vmem:[#allocation8 + $0x290] sm:$0xff]
    %v1346 = vld [vmem:[#allocation8 + $0x298] sm:$0xff]
    %v1347 = vld [vmem:[#allocation8 + $0x2a0] sm:$0xff]
    %v1348 = vld [vmem:[#allocation8 + $0x2a8] sm:$0xff]
    %v1349 = vld [vmem:[#allocation8 + $0x2b0] sm:$0xff]
    %v1350 = vld [vmem:[#allocation8 + $0x2b8] sm:$0xff]
    %v1351 = vld [vmem:[#allocation8 + $0x2c0] sm:$0xff]
    %v1352 = vld [vmem:[#allocation8 + $0x2c8] sm:$0xff]
    %v1353 = vld [vmem:[#allocation8 + $0x2d0] sm:$0xff]
    %v1354 = vld [vmem:[#allocation8 + $0x2d8] sm:$0xff]
    %v1355 = vld [vmem:[#allocation8 + $0x2e0] sm:$0xff]
    %v1356 = vld [vmem:[#allocation8 + $0x2e8] sm:$0xff]
    %v1357 = vld [vmem:[#allocation8 + $0x2f0] sm:$0xff]
    %v1358 = vld [vmem:[#allocation8 + $0x2f8] sm:$0xff]
    %v1359 = vld [vmem:[#allocation8 + $0x300] sm:$0xff]
    %v1360 = vld [vmem:[#allocation8 + $0x308] sm:$0xff]
    %v1361 = vld [vmem:[#allocation8 + $0x310] sm:$0xff]
    %v1362 = vld [vmem:[#allocation8 + $0x318] sm:$0xff]
    %v1363 = vld [vmem:[#allocation8 + $0x320] sm:$0xff]
    %v1364 = vld [vmem:[#allocation8 + $0x328] sm:$0xff]
    %v1365 = vld [vmem:[#allocation8 + $0x330] sm:$0xff]
    %v1366 = vld [vmem:[#allocation8 + $0x338] sm:$0xff]
    %v1367 = vld [vmem:[#allocation8 + $0x340] sm:$0xff]
    %v1368 = vld [vmem:[#allocation8 + $0x348] sm:$0xff]
    %v1369 = vld [vmem:[#allocation8 + $0x350] sm:$0xff]
    %v1370 = vld [vmem:[#allocation8 + $0x358] sm:$0xff]
    %v1371 = vld [vmem:[#allocation8 + $0x360] sm:$0xff]
    %v1372 = vld [vmem:[#allocation8 + $0x368] sm:$0xff]
    %v1373 = vld [vmem:[#allocation8 + $0x370] sm:$0xff]
    %v1374 = vld [vmem:[#allocation8 + $0x378] sm:$0xff]
    %v1375 = vld [vmem:[#allocation8 + $0x380] sm:$0xff]
    %v1376 = vld [vmem:[#allocation8 + $0x388] sm:$0xff]
    %v1377 = vld [vmem:[#allocation8 + $0x390] sm:$0xff]
    %v1378 = vld [vmem:[#allocation8 + $0x398] sm:$0xff]
    %v1379 = vld [vmem:[#allocation8 + $0x3a0] sm:$0xff]
    %v1380 = vld [vmem:[#allocation8 + $0x3a8] sm:$0xff]
    %v1381 = vld [vmem:[#allocation8 + $0x3b0] sm:$0xff]
    %v1382 = vld [vmem:[#allocation8 + $0x3b8] sm:$0xff]
    %v1383 = vld [vmem:[#allocation8 + $0x3c0] sm:$0xff]
    %v1384 = vld [vmem:[#allocation8 + $0x3c8] sm:$0xff]
    %v1385 = vld [vmem:[#allocation8 + $0x3d0] sm:$0xff]
    %v1386 = vld [vmem:[#allocation8 + $0x3d8] sm:$0xff]
    %v1387 = vld [vmem:[#allocation8 + $0x3e0] sm:$0xff]
    %v1388 = vld [vmem:[#allocation8 + $0x3e8] sm:$0xff]
    %v1389 = vld [vmem:[#allocation8 + $0x3f0] sm:$0xff]
    %v1390 = vld [vmem:[#allocation8 + $0x3f8] sm:$0xff]
    %v1391 = vld [vmem:[%s6] sm:$0xf]
    %v1393 = vlaneseq
    %v1394 = vshrl.u32 %v1393, 7
    %v1395 = vsub.s32 0, %v1394
    %v1396 = vrot.slane %v1391, %v1395
    %v1397 = vlaneseq
    %v1398 = vshrl.u32 %v1397, 7
    %v1399 = vsub.s32 1, %v1398
    %v1400 = vrot.slane %v1391, %v1399
    %v1401 = vlaneseq
    %v1402 = vshrl.u32 %v1401, 7
    %v1403 = vsub.s32 2, %v1402
    %v1404 = vrot.slane %v1391, %v1403
    %v1405 = vlaneseq
    %v1406 = vshrl.u32 %v1405, 7
    %v1407 = vsub.s32 3, %v1406
    %v1408 = vrot.slane %v1391, %v1407
    %v1541 = vunpack.c.l.b16 %v1263
    %v1542 = vunpack.c.h.b16 %v1263
    %v1543 = vunpack.c.l.b16 %v1264
    %v1544 = vunpack.c.h.b16 %v1264
    %v1545 = vunpack.c.l.b16 %v1265
    %v1546 = vunpack.c.h.b16 %v1265
    %v1547 = vunpack.c.l.b16 %v1266
    %v1548 = vunpack.c.h.b16 %v1266
    %v1549 = vunpack.c.l.b16 %v1267
    %v1550 = vunpack.c.h.b16 %v1267
    %v1551 = vunpack.c.l.b16 %v1268
    %v1552 = vunpack.c.h.b16 %v1268
    %v1553 = vunpack.c.l.b16 %v1269
    %v1554 = vunpack.c.h.b16 %v1269
    %v1555 = vunpack.c.l.b16 %v1270
    %v1556 = vunpack.c.h.b16 %v1270
    %v1557 = vunpack.c.l.b16 %v1271
    %v1558 = vunpack.c.h.b16 %v1271
    %v1559 = vunpack.c.l.b16 %v1272
    %v1560 = vunpack.c.h.b16 %v1272
    %v1561 = vunpack.c.l.b16 %v1273
    %v1562 = vunpack.c.h.b16 %v1273
    %v1563 = vunpack.c.l.b16 %v1274
    %v1564 = vunpack.c.h.b16 %v1274
    %v1565 = vunpack.c.l.b16 %v1275
    %v1566 = vunpack.c.h.b16 %v1275
    %v1567 = vunpack.c.l.b16 %v1276
    %v1568 = vunpack.c.h.b16 %v1276
    %v1569 = vunpack.c.l.b16 %v1277
    %v1570 = vunpack.c.h.b16 %v1277
    %v1571 = vunpack.c.l.b16 %v1278
    %v1572 = vunpack.c.h.b16 %v1278
    %v1573 = vunpack.c.l.b16 %v1279
    %v1574 = vunpack.c.h.b16 %v1279
    %v1575 = vunpack.c.l.b16 %v1280
    %v1576 = vunpack.c.h.b16 %v1280
    %v1577 = vunpack.c.l.b16 %v1281
    %v1578 = vunpack.c.h.b16 %v1281
    %v1579 = vunpack.c.l.b16 %v1282
    %v1580 = vunpack.c.h.b16 %v1282
    %v1581 = vunpack.c.l.b16 %v1283
    %v1582 = vunpack.c.h.b16 %v1283
    %v1583 = vunpack.c.l.b16 %v1284
    %v1584 = vunpack.c.h.b16 %v1284
    %v1585 = vunpack.c.l.b16 %v1285
    %v1586 = vunpack.c.h.b16 %v1285
    %v1587 = vunpack.c.l.b16 %v1286
    %v1588 = vunpack.c.h.b16 %v1286
    %v1589 = vunpack.c.l.b16 %v1287
    %v1590 = vunpack.c.h.b16 %v1287
    %v1591 = vunpack.c.l.b16 %v1288
    %v1592 = vunpack.c.h.b16 %v1288
    %v1593 = vunpack.c.l.b16 %v1289
    %v1594 = vunpack.c.h.b16 %v1289
    %v1595 = vunpack.c.l.b16 %v1290
    %v1596 = vunpack.c.h.b16 %v1290
    %v1597 = vunpack.c.l.b16 %v1291
    %v1598 = vunpack.c.h.b16 %v1291
    %v1599 = vunpack.c.l.b16 %v1292
    %v1600 = vunpack.c.h.b16 %v1292
    %v1601 = vunpack.c.l.b16 %v1293
    %v1602 = vunpack.c.h.b16 %v1293
    %v1603 = vunpack.c.l.b16 %v1294
    %v1604 = vunpack.c.h.b16 %v1294
    %v1605 = vunpack.c.l.b16 %v1295
    %v1606 = vunpack.c.h.b16 %v1295
    %v1607 = vunpack.c.l.b16 %v1296
    %v1608 = vunpack.c.h.b16 %v1296
    %v1609 = vunpack.c.l.b16 %v1297
    %v1610 = vunpack.c.h.b16 %v1297
    %v1611 = vunpack.c.l.b16 %v1298
    %v1612 = vunpack.c.h.b16 %v1298
    %v1613 = vunpack.c.l.b16 %v1299
    %v1614 = vunpack.c.h.b16 %v1299
    %v1615 = vunpack.c.l.b16 %v1300
    %v1616 = vunpack.c.h.b16 %v1300
    %v1617 = vunpack.c.l.b16 %v1301
    %v1618 = vunpack.c.h.b16 %v1301
    %v1619 = vunpack.c.l.b16 %v1302
    %v1620 = vunpack.c.h.b16 %v1302
    %v1621 = vunpack.c.l.b16 %v1303
    %v1622 = vunpack.c.h.b16 %v1303
    %v1623 = vunpack.c.l.b16 %v1304
    %v1624 = vunpack.c.h.b16 %v1304
    %v1625 = vunpack.c.l.b16 %v1305
    %v1626 = vunpack.c.h.b16 %v1305
    %v1627 = vunpack.c.l.b16 %v1306
    %v1628 = vunpack.c.h.b16 %v1306
    %v1629 = vunpack.c.l.b16 %v1307
    %v1630 = vunpack.c.h.b16 %v1307
    %v1631 = vunpack.c.l.b16 %v1308
    %v1632 = vunpack.c.h.b16 %v1308
    %v1633 = vunpack.c.l.b16 %v1309
    %v1634 = vunpack.c.h.b16 %v1309
    %v1635 = vunpack.c.l.b16 %v1310
    %v1636 = vunpack.c.h.b16 %v1310
    %v1637 = vunpack.c.l.b16 %v1311
    %v1638 = vunpack.c.h.b16 %v1311
    %v1639 = vunpack.c.l.b16 %v1312
    %v1640 = vunpack.c.h.b16 %v1312
    %v1641 = vunpack.c.l.b16 %v1313
    %v1642 = vunpack.c.h.b16 %v1313
    %v1643 = vunpack.c.l.b16 %v1314
    %v1644 = vunpack.c.h.b16 %v1314
    %v1645 = vunpack.c.l.b16 %v1315
    %v1646 = vunpack.c.h.b16 %v1315
    %v1647 = vunpack.c.l.b16 %v1316
    %v1648 = vunpack.c.h.b16 %v1316
    %v1649 = vunpack.c.l.b16 %v1317
    %v1650 = vunpack.c.h.b16 %v1317
    %v1651 = vunpack.c.l.b16 %v1318
    %v1652 = vunpack.c.h.b16 %v1318
    %v1653 = vunpack.c.l.b16 %v1319
    %v1654 = vunpack.c.h.b16 %v1319
    %v1655 = vunpack.c.l.b16 %v1320
    %v1656 = vunpack.c.h.b16 %v1320
    %v1657 = vunpack.c.l.b16 %v1321
    %v1658 = vunpack.c.h.b16 %v1321
    %v1659 = vunpack.c.l.b16 %v1322
    %v1660 = vunpack.c.h.b16 %v1322
    %v1661 = vunpack.c.l.b16 %v1323
    %v1662 = vunpack.c.h.b16 %v1323
    %v1663 = vunpack.c.l.b16 %v1324
    %v1664 = vunpack.c.h.b16 %v1324
    %v1665 = vunpack.c.l.b16 %v1325
    %v1666 = vunpack.c.h.b16 %v1325
    %v1667 = vunpack.c.l.b16 %v1326
    %v1668 = vunpack.c.h.b16 %v1326
    %v1669 = vunpack.c.l.b16 %v1327
    %v1670 = vunpack.c.h.b16 %v1327
    %v1671 = vunpack.c.l.b16 %v1328
    %v1672 = vunpack.c.h.b16 %v1328
    %v1673 = vunpack.c.l.b16 %v1329
    %v1674 = vunpack.c.h.b16 %v1329
    %v1675 = vunpack.c.l.b16 %v1330
    %v1676 = vunpack.c.h.b16 %v1330
    %v1677 = vunpack.c.l.b16 %v1331
    %v1678 = vunpack.c.h.b16 %v1331
    %v1679 = vunpack.c.l.b16 %v1332
    %v1680 = vunpack.c.h.b16 %v1332
    %v1681 = vunpack.c.l.b16 %v1333
    %v1682 = vunpack.c.h.b16 %v1333
    %v1683 = vunpack.c.l.b16 %v1334
    %v1684 = vunpack.c.h.b16 %v1334
    %v1685 = vunpack.c.l.b16 %v1335
    %v1686 = vunpack.c.h.b16 %v1335
    %v1687 = vunpack.c.l.b16 %v1336
    %v1688 = vunpack.c.h.b16 %v1336
    %v1689 = vunpack.c.l.b16 %v1337
    %v1690 = vunpack.c.h.b16 %v1337
    %v1691 = vunpack.c.l.b16 %v1338
    %v1692 = vunpack.c.h.b16 %v1338
    %v1693 = vunpack.c.l.b16 %v1339
    %v1694 = vunpack.c.h.b16 %v1339
    %v1695 = vunpack.c.l.b16 %v1340
    %v1696 = vunpack.c.h.b16 %v1340
    %v1697 = vunpack.c.l.b16 %v1341
    %v1698 = vunpack.c.h.b16 %v1341
    %v1699 = vunpack.c.l.b16 %v1342
    %v1700 = vunpack.c.h.b16 %v1342
    %v1701 = vunpack.c.l.b16 %v1343
    %v1702 = vunpack.c.h.b16 %v1343
    %v1703 = vunpack.c.l.b16 %v1344
    %v1704 = vunpack.c.h.b16 %v1344
    %v1705 = vunpack.c.l.b16 %v1345
    %v1706 = vunpack.c.h.b16 %v1345
    %v1707 = vunpack.c.l.b16 %v1346
    %v1708 = vunpack.c.h.b16 %v1346
    %v1709 = vunpack.c.l.b16 %v1347
    %v1710 = vunpack.c.h.b16 %v1347
    %v1711 = vunpack.c.l.b16 %v1348
    %v1712 = vunpack.c.h.b16 %v1348
    %v1713 = vunpack.c.l.b16 %v1349
    %v1714 = vunpack.c.h.b16 %v1349
    %v1715 = vunpack.c.l.b16 %v1350
    %v1716 = vunpack.c.h.b16 %v1350
    %v1717 = vunpack.c.l.b16 %v1351
    %v1718 = vunpack.c.h.b16 %v1351
    %v1719 = vunpack.c.l.b16 %v1352
    %v1720 = vunpack.c.h.b16 %v1352
    %v1721 = vunpack.c.l.b16 %v1353
    %v1722 = vunpack.c.h.b16 %v1353
    %v1723 = vunpack.c.l.b16 %v1354
    %v1724 = vunpack.c.h.b16 %v1354
    %v1725 = vunpack.c.l.b16 %v1355
    %v1726 = vunpack.c.h.b16 %v1355
    %v1727 = vunpack.c.l.b16 %v1356
    %v1728 = vunpack.c.h.b16 %v1356
    %v1729 = vunpack.c.l.b16 %v1357
    %v1730 = vunpack.c.h.b16 %v1357
    %v1731 = vunpack.c.l.b16 %v1358
    %v1732 = vunpack.c.h.b16 %v1358
    %v1733 = vunpack.c.l.b16 %v1359
    %v1734 = vunpack.c.h.b16 %v1359
    %v1735 = vunpack.c.l.b16 %v1360
    %v1736 = vunpack.c.h.b16 %v1360
    %v1737 = vunpack.c.l.b16 %v1361
    %v1738 = vunpack.c.h.b16 %v1361
    %v1739 = vunpack.c.l.b16 %v1362
    %v1740 = vunpack.c.h.b16 %v1362
    %v1741 = vunpack.c.l.b16 %v1363
    %v1742 = vunpack.c.h.b16 %v1363
    %v1743 = vunpack.c.l.b16 %v1364
    %v1744 = vunpack.c.h.b16 %v1364
    %v1745 = vunpack.c.l.b16 %v1365
    %v1746 = vunpack.c.h.b16 %v1365
    %v1747 = vunpack.c.l.b16 %v1366
    %v1748 = vunpack.c.h.b16 %v1366
    %v1749 = vunpack.c.l.b16 %v1367
    %v1750 = vunpack.c.h.b16 %v1367
    %v1751 = vunpack.c.l.b16 %v1368
    %v1752 = vunpack.c.h.b16 %v1368
    %v1753 = vunpack.c.l.b16 %v1369
    %v1754 = vunpack.c.h.b16 %v1369
    %v1755 = vunpack.c.l.b16 %v1370
    %v1756 = vunpack.c.h.b16 %v1370
    %v1757 = vunpack.c.l.b16 %v1371
    %v1758 = vunpack.c.h.b16 %v1371
    %v1759 = vunpack.c.l.b16 %v1372
    %v1760 = vunpack.c.h.b16 %v1372
    %v1761 = vunpack.c.l.b16 %v1373
    %v1762 = vunpack.c.h.b16 %v1373
    %v1763 = vunpack.c.l.b16 %v1374
    %v1764 = vunpack.c.h.b16 %v1374
    %v1765 = vunpack.c.l.b16 %v1375
    %v1766 = vunpack.c.h.b16 %v1375
    %v1767 = vunpack.c.l.b16 %v1376
    %v1768 = vunpack.c.h.b16 %v1376
    %v1769 = vunpack.c.l.b16 %v1377
    %v1770 = vunpack.c.h.b16 %v1377
    %v1771 = vunpack.c.l.b16 %v1378
    %v1772 = vunpack.c.h.b16 %v1378
    %v1773 = vunpack.c.l.b16 %v1379
    %v1774 = vunpack.c.h.b16 %v1379
    %v1775 = vunpack.c.l.b16 %v1380
    %v1776 = vunpack.c.h.b16 %v1380
    %v1777 = vunpack.c.l.b16 %v1381
    %v1778 = vunpack.c.h.b16 %v1381
    %v1779 = vunpack.c.l.b16 %v1382
    %v1780 = vunpack.c.h.b16 %v1382
    %v1781 = vunpack.c.l.b16 %v1383
    %v1782 = vunpack.c.h.b16 %v1383
    %v1783 = vunpack.c.l.b16 %v1384
    %v1784 = vunpack.c.h.b16 %v1384
    %v1785 = vunpack.c.l.b16 %v1385
    %v1786 = vunpack.c.h.b16 %v1385
    %v1787 = vunpack.c.l.b16 %v1386
    %v1788 = vunpack.c.h.b16 %v1386
    %v1789 = vunpack.c.l.b16 %v1387
    %v1790 = vunpack.c.h.b16 %v1387
    %v1791 = vunpack.c.l.b16 %v1388
    %v1792 = vunpack.c.h.b16 %v1388
    %v1793 = vunpack.c.l.b16 %v1389
    %v1794 = vunpack.c.h.b16 %v1389
    %v1795 = vunpack.c.l.b16 %v1390
    %v1796 = vunpack.c.h.b16 %v1390
    %v1797 = vpack.c.b16 %v1545, %v1541
    %v1798 = vpack.c.b16 %v1546, %v1542
    %v1799 = vpack.c.b16 %v1547, %v1543
    %v1800 = vpack.c.b16 %v1548, %v1544
    %v1801 = vpack.c.b16 %v1553, %v1549
    %v1802 = vpack.c.b16 %v1554, %v1550
    %v1803 = vpack.c.b16 %v1555, %v1551
    %v1804 = vpack.c.b16 %v1556, %v1552
    %v1805 = vpack.c.b16 %v1561, %v1557
    %v1806 = vpack.c.b16 %v1562, %v1558
    %v1807 = vpack.c.b16 %v1563, %v1559
    %v1808 = vpack.c.b16 %v1564, %v1560
    %v1809 = vpack.c.b16 %v1569, %v1565
    %v1810 = vpack.c.b16 %v1570, %v1566
    %v1811 = vpack.c.b16 %v1571, %v1567
    %v1812 = vpack.c.b16 %v1572, %v1568
    %v1813 = vpack.c.b16 %v1577, %v1573
    %v1814 = vpack.c.b16 %v1578, %v1574
    %v1815 = vpack.c.b16 %v1579, %v1575
    %v1816 = vpack.c.b16 %v1580, %v1576
    %v1817 = vpack.c.b16 %v1585, %v1581
    %v1818 = vpack.c.b16 %v1586, %v1582
    %v1819 = vpack.c.b16 %v1587, %v1583
    %v1820 = vpack.c.b16 %v1588, %v1584
    %v1821 = vpack.c.b16 %v1593, %v1589
    %v1822 = vpack.c.b16 %v1594, %v1590
    %v1823 = vpack.c.b16 %v1595, %v1591
    %v1824 = vpack.c.b16 %v1596, %v1592
    %v1825 = vpack.c.b16 %v1601, %v1597
    %v1826 = vpack.c.b16 %v1602, %v1598
    %v1827 = vpack.c.b16 %v1603, %v1599
    %v1828 = vpack.c.b16 %v1604, %v1600
    %v1829 = vpack.c.b16 %v1609, %v1605
    %v1830 = vpack.c.b16 %v1610, %v1606
    %v1831 = vpack.c.b16 %v1611, %v1607
    %v1832 = vpack.c.b16 %v1612, %v1608
    %v1833 = vpack.c.b16 %v1617, %v1613
    %v1834 = vpack.c.b16 %v1618, %v1614
    %v1835 = vpack.c.b16 %v1619, %v1615
    %v1836 = vpack.c.b16 %v1620, %v1616
    %v1837 = vpack.c.b16 %v1625, %v1621
    %v1838 = vpack.c.b16 %v1626, %v1622
    %v1839 = vpack.c.b16 %v1627, %v1623
    %v1840 = vpack.c.b16 %v1628, %v1624
    %v1841 = vpack.c.b16 %v1633, %v1629
    %v1842 = vpack.c.b16 %v1634, %v1630
    %v1843 = vpack.c.b16 %v1635, %v1631
    %v1844 = vpack.c.b16 %v1636, %v1632
    %v1845 = vpack.c.b16 %v1641, %v1637
    %v1846 = vpack.c.b16 %v1642, %v1638
    %v1847 = vpack.c.b16 %v1643, %v1639
    %v1848 = vpack.c.b16 %v1644, %v1640
    %v1849 = vpack.c.b16 %v1649, %v1645
    %v1850 = vpack.c.b16 %v1650, %v1646
    %v1851 = vpack.c.b16 %v1651, %v1647
    %v1852 = vpack.c.b16 %v1652, %v1648
    %v1853 = vpack.c.b16 %v1657, %v1653
    %v1854 = vpack.c.b16 %v1658, %v1654
    %v1855 = vpack.c.b16 %v1659, %v1655
    %v1856 = vpack.c.b16 %v1660, %v1656
    %v1857 = vpack.c.b16 %v1665, %v1661
    %v1858 = vpack.c.b16 %v1666, %v1662
    %v1859 = vpack.c.b16 %v1667, %v1663
    %v1860 = vpack.c.b16 %v1668, %v1664
    %v1861 = vpack.c.b16 %v1673, %v1669
    %v1862 = vpack.c.b16 %v1674, %v1670
    %v1863 = vpack.c.b16 %v1675, %v1671
    %v1864 = vpack.c.b16 %v1676, %v1672
    %v1865 = vpack.c.b16 %v1681, %v1677
    %v1866 = vpack.c.b16 %v1682, %v1678
    %v1867 = vpack.c.b16 %v1683, %v1679
    %v1868 = vpack.c.b16 %v1684, %v1680
    %v1869 = vpack.c.b16 %v1689, %v1685
    %v1870 = vpack.c.b16 %v1690, %v1686
    %v1871 = vpack.c.b16 %v1691, %v1687
    %v1872 = vpack.c.b16 %v1692, %v1688
    %v1873 = vpack.c.b16 %v1697, %v1693
    %v1874 = vpack.c.b16 %v1698, %v1694
    %v1875 = vpack.c.b16 %v1699, %v1695
    %v1876 = vpack.c.b16 %v1700, %v1696
    %v1877 = vpack.c.b16 %v1705, %v1701
    %v1878 = vpack.c.b16 %v1706, %v1702
    %v1879 = vpack.c.b16 %v1707, %v1703
    %v1880 = vpack.c.b16 %v1708, %v1704
    %v1881 = vpack.c.b16 %v1713, %v1709
    %v1882 = vpack.c.b16 %v1714, %v1710
    %v1883 = vpack.c.b16 %v1715, %v1711
    %v1884 = vpack.c.b16 %v1716, %v1712
    %v1885 = vpack.c.b16 %v1721, %v1717
    %v1886 = vpack.c.b16 %v1722, %v1718
    %v1887 = vpack.c.b16 %v1723, %v1719
    %v1888 = vpack.c.b16 %v1724, %v1720
    %v1889 = vpack.c.b16 %v1729, %v1725
    %v1890 = vpack.c.b16 %v1730, %v1726
    %v1891 = vpack.c.b16 %v1731, %v1727
    %v1892 = vpack.c.b16 %v1732, %v1728
    %v1893 = vpack.c.b16 %v1737, %v1733
    %v1894 = vpack.c.b16 %v1738, %v1734
    %v1895 = vpack.c.b16 %v1739, %v1735
    %v1896 = vpack.c.b16 %v1740, %v1736
    %v1897 = vpack.c.b16 %v1745, %v1741
    %v1898 = vpack.c.b16 %v1746, %v1742
    %v1899 = vpack.c.b16 %v1747, %v1743
    %v1900 = vpack.c.b16 %v1748, %v1744
    %v1901 = vpack.c.b16 %v1753, %v1749
    %v1902 = vpack.c.b16 %v1754, %v1750
    %v1903 = vpack.c.b16 %v1755, %v1751
    %v1904 = vpack.c.b16 %v1756, %v1752
    %v1905 = vpack.c.b16 %v1761, %v1757
    %v1906 = vpack.c.b16 %v1762, %v1758
    %v1907 = vpack.c.b16 %v1763, %v1759
    %v1908 = vpack.c.b16 %v1764, %v1760
    %v1909 = vpack.c.b16 %v1769, %v1765
    %v1910 = vpack.c.b16 %v1770, %v1766
    %v1911 = vpack.c.b16 %v1771, %v1767
    %v1912 = vpack.c.b16 %v1772, %v1768
    %v1913 = vpack.c.b16 %v1777, %v1773
    %v1914 = vpack.c.b16 %v1778, %v1774
    %v1915 = vpack.c.b16 %v1779, %v1775
    %v1916 = vpack.c.b16 %v1780, %v1776
    %v1917 = vpack.c.b16 %v1785, %v1781
    %v1918 = vpack.c.b16 %v1786, %v1782
    %v1919 = vpack.c.b16 %v1787, %v1783
    %v1920 = vpack.c.b16 %v1788, %v1784
    %v1921 = vpack.c.b16 %v1793, %v1789
    %v1922 = vpack.c.b16 %v1794, %v1790
    %v1923 = vpack.c.b16 %v1795, %v1791
    %v1924 = vpack.c.b16 %v1796, %v1792
    %2053 = vmatprep.subr.bf16.mxu0 %v1798
    %2054 = vmatpush1.bf16.msra.mxu0 %v1797
    %2055 = vmatprep.subr.bf16.mxu0 %v1802
    %2056 = vmatpush1.bf16.msra.mxu0 %v1801
    %2057 = vmatprep.subr.bf16.mxu0 %v1806
    %2058 = vmatpush1.bf16.msra.mxu0 %v1805
    %2059 = vmatprep.subr.bf16.mxu0 %v1810
    %2060 = vmatpush1.bf16.msra.mxu0 %v1809
    %2061 = vmatprep.subr.bf16.mxu0 %v1814
    %2062 = vmatpush1.bf16.msra.mxu0 %v1813
    %2063 = vmatprep.subr.bf16.mxu0 %v1818
    %2064 = vmatpush1.bf16.msra.mxu0 %v1817
    %2065 = vmatprep.subr.bf16.mxu0 %v1822
    %2066 = vmatpush1.bf16.msra.mxu0 %v1821
    %2067 = vmatprep.subr.bf16.mxu0 %v1826
    %2068 = vmatpush1.bf16.msra.mxu0 %v1825
    %2069 = vmatprep.subr.bf16.mxu0 %v1830
    %2070 = vmatpush1.bf16.msra.mxu0 %v1829
    %2071 = vmatprep.subr.bf16.mxu0 %v1834
    %2072 = vmatpush1.bf16.msra.mxu0 %v1833
    %2073 = vmatprep.subr.bf16.mxu0 %v1838
    %2074 = vmatpush1.bf16.msra.mxu0 %v1837
    %2075 = vmatprep.subr.bf16.mxu0 %v1842
    %2076 = vmatpush1.bf16.msra.mxu0 %v1841
    %2077 = vmatprep.subr.bf16.mxu0 %v1846
    %2078 = vmatpush1.bf16.msra.mxu0 %v1845
    %2079 = vmatprep.subr.bf16.mxu0 %v1850
    %2080 = vmatpush1.bf16.msra.mxu0 %v1849
    %2081 = vmatprep.subr.bf16.mxu0 %v1854
    %2082 = vmatpush1.bf16.msra.mxu0 %v1853
    %2083 = vmatprep.subr.bf16.mxu0 %v1858
    %2084 = vmatpush1.bf16.msra.mxu0 %v1857
    %2085 = vmatprep.mubr.bf16.mxu0 %v1260
    %2086 = vmatmul.mubr.bf16.gmra.mrb[0].mxu0 %v1259
    %v2087 = vpop.f32.mrb[0].mxu0
    %v2088 = vadd.f32 %v1396, %v2087
    %v2089 = vpop.f32.mrb[0].mxu0
    %v2090 = vadd.f32 %v1400, %v2089
    %v2091 = vpop.f32.mrb[0].mxu0
    %v2092 = vpop.f32.mrb[0].mxu0
    %2093 = vdwg.mxu0
    %2094 = vmatprep.subr.bf16.mxu0 %v1862
    %2095 = vmatpush1.bf16.msra.mxu0 %v1861
    %2096 = vmatprep.subr.bf16.mxu0 %v1866
    %2097 = vmatpush1.bf16.msra.mxu0 %v1865
    %2098 = vmatprep.subr.bf16.mxu0 %v1870
    %2099 = vmatpush1.bf16.msra.mxu0 %v1869
    %2100 = vmatprep.subr.bf16.mxu0 %v1874
    %2101 = vmatpush1.bf16.msra.mxu0 %v1873
    %2102 = vmatprep.subr.bf16.mxu0 %v1878
    %2103 = vmatpush1.bf16.msra.mxu0 %v1877
    %2104 = vmatprep.subr.bf16.mxu0 %v1882
    %2105 = vmatpush1.bf16.msra.mxu0 %v1881
    %2106 = vmatprep.subr.bf16.mxu0 %v1886
    %2107 = vmatpush1.bf16.msra.mxu0 %v1885
    %2108 = vmatprep.subr.bf16.mxu0 %v1890
    %2109 = vmatpush1.bf16.msra.mxu0 %v1889
    %2110 = vmatprep.subr.bf16.mxu0 %v1894
    %2111 = vmatpush1.bf16.msra.mxu0 %v1893
    %2112 = vmatprep.subr.bf16.mxu0 %v1898
    %2113 = vmatpush1.bf16.msra.mxu0 %v1897
    %2114 = vmatprep.subr.bf16.mxu0 %v1902
    %2115 = vmatpush1.bf16.msra.mxu0 %v1901
    %2116 = vmatprep.subr.bf16.mxu0 %v1906
    %2117 = vmatpush1.bf16.msra.mxu0 %v1905
    %2118 = vmatprep.subr.bf16.mxu0 %v1910
    %2119 = vmatpush1.bf16.msra.mxu0 %v1909
    %2120 = vmatprep.subr.bf16.mxu0 %v1914
    %2121 = vmatpush1.bf16.msra.mxu0 %v1913
    %2122 = vmatprep.subr.bf16.mxu0 %v1918
    %2123 = vmatpush1.bf16.msra.mxu0 %v1917
    %2124 = vmatprep.subr.bf16.mxu0 %v1922
    %2125 = vmatpush1.bf16.msra.mxu0 %v1921
    %2126 = vmatprep.mubr.bf16.mxu0 %v1262
    %2127 = vmatmul.mubr.bf16.gmra.mrb[0].mxu0 %v1261
    %v2128 = vpop.f32.mrb[0].mxu0
    %v2129 = vadd.f32 %v2088, %v2128
    %v2130 = vpop.f32.mrb[0].mxu0
    %v2131 = vadd.f32 %v2090, %v2130
    %v2132 = vpop.f32.mrb[0].mxu0
    %v2133 = vpop.f32.mrb[0].mxu0
    %2134 = vdwg.mxu0
    %2135 = vmatprep.subr.bf16.mxu0 %v1800
    %2136 = vmatpush1.bf16.msra.mxu0 %v1799
    %2137 = vmatprep.subr.bf16.mxu0 %v1804
    %2138 = vmatpush1.bf16.msra.mxu0 %v1803
    %2139 = vmatprep.subr.bf16.mxu0 %v1808
    %2140 = vmatpush1.bf16.msra.mxu0 %v1807
    %2141 = vmatprep.subr.bf16.mxu0 %v1812
    %2142 = vmatpush1.bf16.msra.mxu0 %v1811
    %2143 = vmatprep.subr.bf16.mxu0 %v1816
    %2144 = vmatpush1.bf16.msra.mxu0 %v1815
    %2145 = vmatprep.subr.bf16.mxu0 %v1820
    %2146 = vmatpush1.bf16.msra.mxu0 %v1819
    %2147 = vmatprep.subr.bf16.mxu0 %v1824
    %2148 = vmatpush1.bf16.msra.mxu0 %v1823
    %2149 = vmatprep.subr.bf16.mxu0 %v1828
    %2150 = vmatpush1.bf16.msra.mxu0 %v1827
    %2151 = vmatprep.subr.bf16.mxu0 %v1832
    %2152 = vmatpush1.bf16.msra.mxu0 %v1831
    %2153 = vmatprep.subr.bf16.mxu0 %v1836
    %2154 = vmatpush1.bf16.msra.mxu0 %v1835
    %2155 = vmatprep.subr.bf16.mxu0 %v1840
    %2156 = vmatpush1.bf16.msra.mxu0 %v1839
    %2157 = vmatprep.subr.bf16.mxu0 %v1844
    %2158 = vmatpush1.bf16.msra.mxu0 %v1843
    %2159 = vmatprep.subr.bf16.mxu0 %v1848
    %2160 = vmatpush1.bf16.msra.mxu0 %v1847
    %2161 = vmatprep.subr.bf16.mxu0 %v1852
    %2162 = vmatpush1.bf16.msra.mxu0 %v1851
    %2163 = vmatprep.subr.bf16.mxu0 %v1856
    %2164 = vmatpush1.bf16.msra.mxu0 %v1855
    %2165 = vmatprep.subr.bf16.mxu0 %v1860
    %2166 = vmatpush1.bf16.msra.mxu0 %v1859
    %2167 = vmatprep.mubr.bf16.mxu0 %v1260
    %2168 = vmatmul.mubr.bf16.gmra.mrb[0].mxu0 %v1259
    %v2169 = vpop.f32.mrb[0].mxu0
    %v2170 = vadd.f32 %v1404, %v2169
    %v2171 = vpop.f32.mrb[0].mxu0
    %v2172 = vadd.f32 %v1408, %v2171
    %v2173 = vpop.f32.mrb[0].mxu0
    %v2174 = vpop.f32.mrb[0].mxu0
    %2175 = vdwg.mxu0
    %2176 = vmatprep.subr.bf16.mxu0 %v1864
    %2177 = vmatpush1.bf16.msra.mxu0 %v1863
    %2178 = vmatprep.subr.bf16.mxu0 %v1868
    %2179 = vmatpush1.bf16.msra.mxu0 %v1867
    %2180 = vmatprep.subr.bf16.mxu0 %v1872
    %2181 = vmatpush1.bf16.msra.mxu0 %v1871
    %2182 = vmatprep.subr.bf16.mxu0 %v1876
    %2183 = vmatpush1.bf16.msra.mxu0 %v1875
    %2184 = vmatprep.subr.bf16.mxu0 %v1880
    %2185 = vmatpush1.bf16.msra.mxu0 %v1879
    %2186 = vmatprep.subr.bf16.mxu0 %v1884
    %2187 = vmatpush1.bf16.msra.mxu0 %v1883
    %2188 = vmatprep.subr.bf16.mxu0 %v1888
    %2189 = vmatpush1.bf16.msra.mxu0 %v1887
    %2190 = vmatprep.subr.bf16.mxu0 %v1892
    %2191 = vmatpush1.bf16.msra.mxu0 %v1891
    %2192 = vmatprep.subr.bf16.mxu0 %v1896
    %2193 = vmatpush1.bf16.msra.mxu0 %v1895
    %2194 = vmatprep.subr.bf16.mxu0 %v1900
    %2195 = vmatpush1.bf16.msra.mxu0 %v1899
    %2196 = vmatprep.subr.bf16.mxu0 %v1904
    %2197 = vmatpush1.bf16.msra.mxu0 %v1903
    %2198 = vmatprep.subr.bf16.mxu0 %v1908
    %2199 = vmatpush1.bf16.msra.mxu0 %v1907
    %2200 = vmatprep.subr.bf16.mxu0 %v1912
    %2201 = vmatpush1.bf16.msra.mxu0 %v1911
    %2202 = vmatprep.subr.bf16.mxu0 %v1916
    %2203 = vmatpush1.bf16.msra.mxu0 %v1915
    %2204 = vmatprep.subr.bf16.mxu0 %v1920
    %2205 = vmatpush1.bf16.msra.mxu0 %v1919
    %2206 = vmatprep.subr.bf16.mxu0 %v1924
    %2207 = vmatpush1.bf16.msra.mxu0 %v1923
    %2208 = vmatprep.mubr.bf16.mxu0 %v1262
    %2209 = vmatmul.mubr.bf16.gmra.mrb[0].mxu0 %v1261
    %v2210 = vpop.f32.mrb[0].mxu0
    %v2211 = vadd.f32 %v2170, %v2210
    %v2212 = vpop.f32.mrb[0].mxu0
    %v2213 = vadd.f32 %v2172, %v2212
    %v2214 = vpop.f32.mrb[0].mxu0
    %v2215 = vpop.f32.mrb[0].mxu0
    %2216 = vdwg.mxu0
    %v2217 = vmax.f32 %v2129, 0.0
    %v2218 = vmax.f32 %v2131, 0.0
    %v2219 = vmax.f32 %v2211, 0.0
    %v2220 = vmax.f32 %v2213, 0.0
    %v2221 = vpack.c.bf16 %v2217, %v2217
    %v2222 = vpack.c.bf16 %v2218, %v2218
    %v2223 = vpack.c.bf16 %v2219, %v2219
    %v2224 = vpack.c.bf16 %v2220, %v2220
    %v2225 = vld [vmem:[#allocation10] sm:$0xff]
    %v2226 = vld [vmem:[#allocation10 + $0x8] sm:$0xff]
    %v2227 = vld [vmem:[#allocation10 + $0x10] sm:$0xff]
    %v2228 = vld [vmem:[#allocation10 + $0x18] sm:$0xff]
    %v2229 = vld [vmem:[#allocation10 + $0x20] sm:$0xff]
    %v2230 = vld [vmem:[#allocation10 + $0x28] sm:$0xff]
    %v2231 = vld [vmem:[#allocation10 + $0x30] sm:$0xff]
    %v2232 = vld [vmem:[#allocation10 + $0x38] sm:$0xff]
    %v2233 = vld [vmem:[#allocation10 + $0x40] sm:$0xff]
    %v2234 = vld [vmem:[#allocation10 + $0x48] sm:$0xff]
    %v2235 = vld [vmem:[#allocation10 + $0x50] sm:$0xff]
    %v2236 = vld [vmem:[#allocation10 + $0x58] sm:$0xff]
    %v2237 = vld [vmem:[#allocation10 + $0x60] sm:$0xff]
    %v2238 = vld [vmem:[#allocation10 + $0x68] sm:$0xff]
    %v2239 = vld [vmem:[#allocation10 + $0x70] sm:$0xff]
    %v2240 = vld [vmem:[#allocation10 + $0x78] sm:$0xff]
    %v2241 = vld [vmem:[#allocation10 + $0x80] sm:$0xff]
    %v2242 = vld [vmem:[#allocation10 + $0x88] sm:$0xff]
    %v2243 = vld [vmem:[#allocation10 + $0x90] sm:$0xff]
    %v2244 = vld [vmem:[#allocation10 + $0x98] sm:$0xff]
    %v2245 = vld [vmem:[#allocation10 + $0xa0] sm:$0xff]
    %v2246 = vld [vmem:[#allocation10 + $0xa8] sm:$0xff]
    %v2247 = vld [vmem:[#allocation10 + $0xb0] sm:$0xff]
    %v2248 = vld [vmem:[#allocation10 + $0xb8] sm:$0xff]
    %v2249 = vld [vmem:[#allocation10 + $0xc0] sm:$0xff]
    %v2250 = vld [vmem:[#allocation10 + $0xc8] sm:$0xff]
    %v2251 = vld [vmem:[#allocation10 + $0xd0] sm:$0xff]
    %v2252 = vld [vmem:[#allocation10 + $0xd8] sm:$0xff]
    %v2253 = vld [vmem:[#allocation10 + $0xe0] sm:$0xff]
    %v2254 = vld [vmem:[#allocation10 + $0xe8] sm:$0xff]
    %v2255 = vld [vmem:[#allocation10 + $0xf0] sm:$0xff]
    %v2256 = vld [vmem:[#allocation10 + $0xf8] sm:$0xff]
    %v2257 = vld [vmem:[#allocation10 + $0x100] sm:$0xff]
    %v2258 = vld [vmem:[#allocation10 + $0x108] sm:$0xff]
    %v2259 = vld [vmem:[#allocation10 + $0x110] sm:$0xff]
    %v2260 = vld [vmem:[#allocation10 + $0x118] sm:$0xff]
    %v2261 = vld [vmem:[#allocation10 + $0x120] sm:$0xff]
    %v2262 = vld [vmem:[#allocation10 + $0x128] sm:$0xff]
    %v2263 = vld [vmem:[#allocation10 + $0x130] sm:$0xff]
    %v2264 = vld [vmem:[#allocation10 + $0x138] sm:$0xff]
    %v2265 = vld [vmem:[#allocation10 + $0x140] sm:$0xff]
    %v2266 = vld [vmem:[#allocation10 + $0x148] sm:$0xff]
    %v2267 = vld [vmem:[#allocation10 + $0x150] sm:$0xff]
    %v2268 = vld [vmem:[#allocation10 + $0x158] sm:$0xff]
    %v2269 = vld [vmem:[#allocation10 + $0x160] sm:$0xff]
    %v2270 = vld [vmem:[#allocation10 + $0x168] sm:$0xff]
    %v2271 = vld [vmem:[#allocation10 + $0x170] sm:$0xff]
    %v2272 = vld [vmem:[#allocation10 + $0x178] sm:$0xff]
    %v2273 = vld [vmem:[#allocation10 + $0x180] sm:$0xff]
    %v2274 = vld [vmem:[#allocation10 + $0x188] sm:$0xff]
    %v2275 = vld [vmem:[#allocation10 + $0x190] sm:$0xff]
    %v2276 = vld [vmem:[#allocation10 + $0x198] sm:$0xff]
    %v2277 = vld [vmem:[#allocation10 + $0x1a0] sm:$0xff]
    %v2278 = vld [vmem:[#allocation10 + $0x1a8] sm:$0xff]
    %v2279 = vld [vmem:[#allocation10 + $0x1b0] sm:$0xff]
    %v2280 = vld [vmem:[#allocation10 + $0x1b8] sm:$0xff]
    %v2281 = vld [vmem:[#allocation10 + $0x1c0] sm:$0xff]
    %v2282 = vld [vmem:[#allocation10 + $0x1c8] sm:$0xff]
    %v2283 = vld [vmem:[#allocation10 + $0x1d0] sm:$0xff]
    %v2284 = vld [vmem:[#allocation10 + $0x1d8] sm:$0xff]
    %v2285 = vld [vmem:[#allocation10 + $0x1e0] sm:$0xff]
    %v2286 = vld [vmem:[#allocation10 + $0x1e8] sm:$0xff]
    %v2287 = vld [vmem:[#allocation10 + $0x1f0] sm:$0xff]
    %v2288 = vld [vmem:[#allocation10 + $0x1f8] sm:$0xff]
    %v2289 = vld [vmem:[#allocation10 + $0x200] sm:$0xff]
    %v2290 = vld [vmem:[#allocation10 + $0x208] sm:$0xff]
    %v2291 = vld [vmem:[#allocation10 + $0x210] sm:$0xff]
    %v2292 = vld [vmem:[#allocation10 + $0x218] sm:$0xff]
    %v2293 = vld [vmem:[#allocation10 + $0x220] sm:$0xff]
    %v2294 = vld [vmem:[#allocation10 + $0x228] sm:$0xff]
    %v2295 = vld [vmem:[#allocation10 + $0x230] sm:$0xff]
    %v2296 = vld [vmem:[#allocation10 + $0x238] sm:$0xff]
    %v2297 = vld [vmem:[#allocation10 + $0x240] sm:$0xff]
    %v2298 = vld [vmem:[#allocation10 + $0x248] sm:$0xff]
    %v2299 = vld [vmem:[#allocation10 + $0x250] sm:$0xff]
    %v2300 = vld [vmem:[#allocation10 + $0x258] sm:$0xff]
    %v2301 = vld [vmem:[#allocation10 + $0x260] sm:$0xff]
    %v2302 = vld [vmem:[#allocation10 + $0x268] sm:$0xff]
    %v2303 = vld [vmem:[#allocation10 + $0x270] sm:$0xff]
    %v2304 = vld [vmem:[#allocation10 + $0x278] sm:$0xff]
    %v2305 = vld [vmem:[#allocation10 + $0x280] sm:$0xff]
    %v2306 = vld [vmem:[#allocation10 + $0x288] sm:$0xff]
    %v2307 = vld [vmem:[#allocation10 + $0x290] sm:$0xff]
    %v2308 = vld [vmem:[#allocation10 + $0x298] sm:$0xff]
    %v2309 = vld [vmem:[#allocation10 + $0x2a0] sm:$0xff]
    %v2310 = vld [vmem:[#allocation10 + $0x2a8] sm:$0xff]
    %v2311 = vld [vmem:[#allocation10 + $0x2b0] sm:$0xff]
    %v2312 = vld [vmem:[#allocation10 + $0x2b8] sm:$0xff]
    %v2313 = vld [vmem:[#allocation10 + $0x2c0] sm:$0xff]
    %v2314 = vld [vmem:[#allocation10 + $0x2c8] sm:$0xff]
    %v2315 = vld [vmem:[#allocation10 + $0x2d0] sm:$0xff]
    %v2316 = vld [vmem:[#allocation10 + $0x2d8] sm:$0xff]
    %v2317 = vld [vmem:[#allocation10 + $0x2e0] sm:$0xff]
    %v2318 = vld [vmem:[#allocation10 + $0x2e8] sm:$0xff]
    %v2319 = vld [vmem:[#allocation10 + $0x2f0] sm:$0xff]
    %v2320 = vld [vmem:[#allocation10 + $0x2f8] sm:$0xff]
    %v2321 = vld [vmem:[#allocation10 + $0x300] sm:$0xff]
    %v2322 = vld [vmem:[#allocation10 + $0x308] sm:$0xff]
    %v2323 = vld [vmem:[#allocation10 + $0x310] sm:$0xff]
    %v2324 = vld [vmem:[#allocation10 + $0x318] sm:$0xff]
    %v2325 = vld [vmem:[#allocation10 + $0x320] sm:$0xff]
    %v2326 = vld [vmem:[#allocation10 + $0x328] sm:$0xff]
    %v2327 = vld [vmem:[#allocation10 + $0x330] sm:$0xff]
    %v2328 = vld [vmem:[#allocation10 + $0x338] sm:$0xff]
    %v2329 = vld [vmem:[#allocation10 + $0x340] sm:$0xff]
    %v2330 = vld [vmem:[#allocation10 + $0x348] sm:$0xff]
    %v2331 = vld [vmem:[#allocation10 + $0x350] sm:$0xff]
    %v2332 = vld [vmem:[#allocation10 + $0x358] sm:$0xff]
    %v2333 = vld [vmem:[#allocation10 + $0x360] sm:$0xff]
    %v2334 = vld [vmem:[#allocation10 + $0x368] sm:$0xff]
    %v2335 = vld [vmem:[#allocation10 + $0x370] sm:$0xff]
    %v2336 = vld [vmem:[#allocation10 + $0x378] sm:$0xff]
    %v2337 = vld [vmem:[#allocation10 + $0x380] sm:$0xff]
    %v2338 = vld [vmem:[#allocation10 + $0x388] sm:$0xff]
    %v2339 = vld [vmem:[#allocation10 + $0x390] sm:$0xff]
    %v2340 = vld [vmem:[#allocation10 + $0x398] sm:$0xff]
    %v2341 = vld [vmem:[#allocation10 + $0x3a0] sm:$0xff]
    %v2342 = vld [vmem:[#allocation10 + $0x3a8] sm:$0xff]
    %v2343 = vld [vmem:[#allocation10 + $0x3b0] sm:$0xff]
    %v2344 = vld [vmem:[#allocation10 + $0x3b8] sm:$0xff]
    %v2345 = vld [vmem:[#allocation10 + $0x3c0] sm:$0xff]
    %v2346 = vld [vmem:[#allocation10 + $0x3c8] sm:$0xff]
    %v2347 = vld [vmem:[#allocation10 + $0x3d0] sm:$0xff]
    %v2348 = vld [vmem:[#allocation10 + $0x3d8] sm:$0xff]
    %v2349 = vld [vmem:[#allocation10 + $0x3e0] sm:$0xff]
    %v2350 = vld [vmem:[#allocation10 + $0x3e8] sm:$0xff]
    %v2351 = vld [vmem:[#allocation10 + $0x3f0] sm:$0xff]
    %v2352 = vld [vmem:[#allocation10 + $0x3f8] sm:$0xff]
    %v2353 = vld [vmem:[%s8] sm:$0xf]
    %v2355 = vlaneseq
    %v2356 = vshrl.u32 %v2355, 7
    %v2357 = vsub.s32 0, %v2356
    %v2358 = vrot.slane %v2353, %v2357
    %v2359 = vlaneseq
    %v2360 = vshrl.u32 %v2359, 7
    %v2361 = vsub.s32 1, %v2360
    %v2362 = vrot.slane %v2353, %v2361
    %v2363 = vlaneseq
    %v2364 = vshrl.u32 %v2363, 7
    %v2365 = vsub.s32 2, %v2364
    %v2366 = vrot.slane %v2353, %v2365
    %v2367 = vlaneseq
    %v2368 = vshrl.u32 %v2367, 7
    %v2369 = vsub.s32 3, %v2368
    %v2370 = vrot.slane %v2353, %v2369
    %v2503 = vunpack.c.l.b16 %v2225
    %v2504 = vunpack.c.h.b16 %v2225
    %v2505 = vunpack.c.l.b16 %v2226
    %v2506 = vunpack.c.h.b16 %v2226
    %v2507 = vunpack.c.l.b16 %v2227
    %v2508 = vunpack.c.h.b16 %v2227
    %v2509 = vunpack.c.l.b16 %v2228
    %v2510 = vunpack.c.h.b16 %v2228
    %v2511 = vunpack.c.l.b16 %v2229
    %v2512 = vunpack.c.h.b16 %v2229
    %v2513 = vunpack.c.l.b16 %v2230
    %v2514 = vunpack.c.h.b16 %v2230
    %v2515 = vunpack.c.l.b16 %v2231
    %v2516 = vunpack.c.h.b16 %v2231
    %v2517 = vunpack.c.l.b16 %v2232
    %v2518 = vunpack.c.h.b16 %v2232
    %v2519 = vunpack.c.l.b16 %v2233
    %v2520 = vunpack.c.h.b16 %v2233
    %v2521 = vunpack.c.l.b16 %v2234
    %v2522 = vunpack.c.h.b16 %v2234
    %v2523 = vunpack.c.l.b16 %v2235
    %v2524 = vunpack.c.h.b16 %v2235
    %v2525 = vunpack.c.l.b16 %v2236
    %v2526 = vunpack.c.h.b16 %v2236
    %v2527 = vunpack.c.l.b16 %v2237
    %v2528 = vunpack.c.h.b16 %v2237
    %v2529 = vunpack.c.l.b16 %v2238
    %v2530 = vunpack.c.h.b16 %v2238
    %v2531 = vunpack.c.l.b16 %v2239
    %v2532 = vunpack.c.h.b16 %v2239
    %v2533 = vunpack.c.l.b16 %v2240
    %v2534 = vunpack.c.h.b16 %v2240
    %v2535 = vunpack.c.l.b16 %v2241
    %v2536 = vunpack.c.h.b16 %v2241
    %v2537 = vunpack.c.l.b16 %v2242
    %v2538 = vunpack.c.h.b16 %v2242
    %v2539 = vunpack.c.l.b16 %v2243
    %v2540 = vunpack.c.h.b16 %v2243
    %v2541 = vunpack.c.l.b16 %v2244
    %v2542 = vunpack.c.h.b16 %v2244
    %v2543 = vunpack.c.l.b16 %v2245
    %v2544 = vunpack.c.h.b16 %v2245
    %v2545 = vunpack.c.l.b16 %v2246
    %v2546 = vunpack.c.h.b16 %v2246
    %v2547 = vunpack.c.l.b16 %v2247
    %v2548 = vunpack.c.h.b16 %v2247
    %v2549 = vunpack.c.l.b16 %v2248
    %v2550 = vunpack.c.h.b16 %v2248
    %v2551 = vunpack.c.l.b16 %v2249
    %v2552 = vunpack.c.h.b16 %v2249
    %v2553 = vunpack.c.l.b16 %v2250
    %v2554 = vunpack.c.h.b16 %v2250
    %v2555 = vunpack.c.l.b16 %v2251
    %v2556 = vunpack.c.h.b16 %v2251
    %v2557 = vunpack.c.l.b16 %v2252
    %v2558 = vunpack.c.h.b16 %v2252
    %v2559 = vunpack.c.l.b16 %v2253
    %v2560 = vunpack.c.h.b16 %v2253
    %v2561 = vunpack.c.l.b16 %v2254
    %v2562 = vunpack.c.h.b16 %v2254
    %v2563 = vunpack.c.l.b16 %v2255
    %v2564 = vunpack.c.h.b16 %v2255
    %v2565 = vunpack.c.l.b16 %v2256
    %v2566 = vunpack.c.h.b16 %v2256
    %v2567 = vunpack.c.l.b16 %v2257
    %v2568 = vunpack.c.h.b16 %v2257
    %v2569 = vunpack.c.l.b16 %v2258
    %v2570 = vunpack.c.h.b16 %v2258
    %v2571 = vunpack.c.l.b16 %v2259
    %v2572 = vunpack.c.h.b16 %v2259
    %v2573 = vunpack.c.l.b16 %v2260
    %v2574 = vunpack.c.h.b16 %v2260
    %v2575 = vunpack.c.l.b16 %v2261
    %v2576 = vunpack.c.h.b16 %v2261
    %v2577 = vunpack.c.l.b16 %v2262
    %v2578 = vunpack.c.h.b16 %v2262
    %v2579 = vunpack.c.l.b16 %v2263
    %v2580 = vunpack.c.h.b16 %v2263
    %v2581 = vunpack.c.l.b16 %v2264
    %v2582 = vunpack.c.h.b16 %v2264
    %v2583 = vunpack.c.l.b16 %v2265
    %v2584 = vunpack.c.h.b16 %v2265
    %v2585 = vunpack.c.l.b16 %v2266
    %v2586 = vunpack.c.h.b16 %v2266
    %v2587 = vunpack.c.l.b16 %v2267
    %v2588 = vunpack.c.h.b16 %v2267
    %v2589 = vunpack.c.l.b16 %v2268
    %v2590 = vunpack.c.h.b16 %v2268
    %v2591 = vunpack.c.l.b16 %v2269
    %v2592 = vunpack.c.h.b16 %v2269
    %v2593 = vunpack.c.l.b16 %v2270
    %v2594 = vunpack.c.h.b16 %v2270
    %v2595 = vunpack.c.l.b16 %v2271
    %v2596 = vunpack.c.h.b16 %v2271
    %v2597 = vunpack.c.l.b16 %v2272
    %v2598 = vunpack.c.h.b16 %v2272
    %v2599 = vunpack.c.l.b16 %v2273
    %v2600 = vunpack.c.h.b16 %v2273
    %v2601 = vunpack.c.l.b16 %v2274
    %v2602 = vunpack.c.h.b16 %v2274
    %v2603 = vunpack.c.l.b16 %v2275
    %v2604 = vunpack.c.h.b16 %v2275
    %v2605 = vunpack.c.l.b16 %v2276
    %v2606 = vunpack.c.h.b16 %v2276
    %v2607 = vunpack.c.l.b16 %v2277
    %v2608 = vunpack.c.h.b16 %v2277
    %v2609 = vunpack.c.l.b16 %v2278
    %v2610 = vunpack.c.h.b16 %v2278
    %v2611 = vunpack.c.l.b16 %v2279
    %v2612 = vunpack.c.h.b16 %v2279
    %v2613 = vunpack.c.l.b16 %v2280
    %v2614 = vunpack.c.h.b16 %v2280
    %v2615 = vunpack.c.l.b16 %v2281
    %v2616 = vunpack.c.h.b16 %v2281
    %v2617 = vunpack.c.l.b16 %v2282
    %v2618 = vunpack.c.h.b16 %v2282
    %v2619 = vunpack.c.l.b16 %v2283
    %v2620 = vunpack.c.h.b16 %v2283
    %v2621 = vunpack.c.l.b16 %v2284
    %v2622 = vunpack.c.h.b16 %v2284
    %v2623 = vunpack.c.l.b16 %v2285
    %v2624 = vunpack.c.h.b16 %v2285
    %v2625 = vunpack.c.l.b16 %v2286
    %v2626 = vunpack.c.h.b16 %v2286
    %v2627 = vunpack.c.l.b16 %v2287
    %v2628 = vunpack.c.h.b16 %v2287
    %v2629 = vunpack.c.l.b16 %v2288
    %v2630 = vunpack.c.h.b16 %v2288
    %v2631 = vunpack.c.l.b16 %v2289
    %v2632 = vunpack.c.h.b16 %v2289
    %v2633 = vunpack.c.l.b16 %v2290
    %v2634 = vunpack.c.h.b16 %v2290
    %v2635 = vunpack.c.l.b16 %v2291
    %v2636 = vunpack.c.h.b16 %v2291
    %v2637 = vunpack.c.l.b16 %v2292
    %v2638 = vunpack.c.h.b16 %v2292
    %v2639 = vunpack.c.l.b16 %v2293
    %v2640 = vunpack.c.h.b16 %v2293
    %v2641 = vunpack.c.l.b16 %v2294
    %v2642 = vunpack.c.h.b16 %v2294
    %v2643 = vunpack.c.l.b16 %v2295
    %v2644 = vunpack.c.h.b16 %v2295
    %v2645 = vunpack.c.l.b16 %v2296
    %v2646 = vunpack.c.h.b16 %v2296
    %v2647 = vunpack.c.l.b16 %v2297
    %v2648 = vunpack.c.h.b16 %v2297
    %v2649 = vunpack.c.l.b16 %v2298
    %v2650 = vunpack.c.h.b16 %v2298
    %v2651 = vunpack.c.l.b16 %v2299
    %v2652 = vunpack.c.h.b16 %v2299
    %v2653 = vunpack.c.l.b16 %v2300
    %v2654 = vunpack.c.h.b16 %v2300
    %v2655 = vunpack.c.l.b16 %v2301
    %v2656 = vunpack.c.h.b16 %v2301
    %v2657 = vunpack.c.l.b16 %v2302
    %v2658 = vunpack.c.h.b16 %v2302
    %v2659 = vunpack.c.l.b16 %v2303
    %v2660 = vunpack.c.h.b16 %v2303
    %v2661 = vunpack.c.l.b16 %v2304
    %v2662 = vunpack.c.h.b16 %v2304
    %v2663 = vunpack.c.l.b16 %v2305
    %v2664 = vunpack.c.h.b16 %v2305
    %v2665 = vunpack.c.l.b16 %v2306
    %v2666 = vunpack.c.h.b16 %v2306
    %v2667 = vunpack.c.l.b16 %v2307
    %v2668 = vunpack.c.h.b16 %v2307
    %v2669 = vunpack.c.l.b16 %v2308
    %v2670 = vunpack.c.h.b16 %v2308
    %v2671 = vunpack.c.l.b16 %v2309
    %v2672 = vunpack.c.h.b16 %v2309
    %v2673 = vunpack.c.l.b16 %v2310
    %v2674 = vunpack.c.h.b16 %v2310
    %v2675 = vunpack.c.l.b16 %v2311
    %v2676 = vunpack.c.h.b16 %v2311
    %v2677 = vunpack.c.l.b16 %v2312
    %v2678 = vunpack.c.h.b16 %v2312
    %v2679 = vunpack.c.l.b16 %v2313
    %v2680 = vunpack.c.h.b16 %v2313
    %v2681 = vunpack.c.l.b16 %v2314
    %v2682 = vunpack.c.h.b16 %v2314
    %v2683 = vunpack.c.l.b16 %v2315
    %v2684 = vunpack.c.h.b16 %v2315
    %v2685 = vunpack.c.l.b16 %v2316
    %v2686 = vunpack.c.h.b16 %v2316
    %v2687 = vunpack.c.l.b16 %v2317
    %v2688 = vunpack.c.h.b16 %v2317
    %v2689 = vunpack.c.l.b16 %v2318
    %v2690 = vunpack.c.h.b16 %v2318
    %v2691 = vunpack.c.l.b16 %v2319
    %v2692 = vunpack.c.h.b16 %v2319
    %v2693 = vunpack.c.l.b16 %v2320
    %v2694 = vunpack.c.h.b16 %v2320
    %v2695 = vunpack.c.l.b16 %v2321
    %v2696 = vunpack.c.h.b16 %v2321
    %v2697 = vunpack.c.l.b16 %v2322
    %v2698 = vunpack.c.h.b16 %v2322
    %v2699 = vunpack.c.l.b16 %v2323
    %v2700 = vunpack.c.h.b16 %v2323
    %v2701 = vunpack.c.l.b16 %v2324
    %v2702 = vunpack.c.h.b16 %v2324
    %v2703 = vunpack.c.l.b16 %v2325
    %v2704 = vunpack.c.h.b16 %v2325
    %v2705 = vunpack.c.l.b16 %v2326
    %v2706 = vunpack.c.h.b16 %v2326
    %v2707 = vunpack.c.l.b16 %v2327
    %v2708 = vunpack.c.h.b16 %v2327
    %v2709 = vunpack.c.l.b16 %v2328
    %v2710 = vunpack.c.h.b16 %v2328
    %v2711 = vunpack.c.l.b16 %v2329
    %v2712 = vunpack.c.h.b16 %v2329
    %v2713 = vunpack.c.l.b16 %v2330
    %v2714 = vunpack.c.h.b16 %v2330
    %v2715 = vunpack.c.l.b16 %v2331
    %v2716 = vunpack.c.h.b16 %v2331
    %v2717 = vunpack.c.l.b16 %v2332
    %v2718 = vunpack.c.h.b16 %v2332
    %v2719 = vunpack.c.l.b16 %v2333
    %v2720 = vunpack.c.h.b16 %v2333
    %v2721 = vunpack.c.l.b16 %v2334
    %v2722 = vunpack.c.h.b16 %v2334
    %v2723 = vunpack.c.l.b16 %v2335
    %v2724 = vunpack.c.h.b16 %v2335
    %v2725 = vunpack.c.l.b16 %v2336
    %v2726 = vunpack.c.h.b16 %v2336
    %v2727 = vunpack.c.l.b16 %v2337
    %v2728 = vunpack.c.h.b16 %v2337
    %v2729 = vunpack.c.l.b16 %v2338
    %v2730 = vunpack.c.h.b16 %v2338
    %v2731 = vunpack.c.l.b16 %v2339
    %v2732 = vunpack.c.h.b16 %v2339
    %v2733 = vunpack.c.l.b16 %v2340
    %v2734 = vunpack.c.h.b16 %v2340
    %v2735 = vunpack.c.l.b16 %v2341
    %v2736 = vunpack.c.h.b16 %v2341
    %v2737 = vunpack.c.l.b16 %v2342
    %v2738 = vunpack.c.h.b16 %v2342
    %v2739 = vunpack.c.l.b16 %v2343
    %v2740 = vunpack.c.h.b16 %v2343
    %v2741 = vunpack.c.l.b16 %v2344
    %v2742 = vunpack.c.h.b16 %v2344
    %v2743 = vunpack.c.l.b16 %v2345
    %v2744 = vunpack.c.h.b16 %v2345
    %v2745 = vunpack.c.l.b16 %v2346
    %v2746 = vunpack.c.h.b16 %v2346
    %v2747 = vunpack.c.l.b16 %v2347
    %v2748 = vunpack.c.h.b16 %v2347
    %v2749 = vunpack.c.l.b16 %v2348
    %v2750 = vunpack.c.h.b16 %v2348
    %v2751 = vunpack.c.l.b16 %v2349
    %v2752 = vunpack.c.h.b16 %v2349
    %v2753 = vunpack.c.l.b16 %v2350
    %v2754 = vunpack.c.h.b16 %v2350
    %v2755 = vunpack.c.l.b16 %v2351
    %v2756 = vunpack.c.h.b16 %v2351
    %v2757 = vunpack.c.l.b16 %v2352
    %v2758 = vunpack.c.h.b16 %v2352
    %v2759 = vpack.c.b16 %v2507, %v2503
    %v2760 = vpack.c.b16 %v2508, %v2504
    %v2761 = vpack.c.b16 %v2509, %v2505
    %v2762 = vpack.c.b16 %v2510, %v2506
    %v2763 = vpack.c.b16 %v2515, %v2511
    %v2764 = vpack.c.b16 %v2516, %v2512
    %v2765 = vpack.c.b16 %v2517, %v2513
    %v2766 = vpack.c.b16 %v2518, %v2514
    %v2767 = vpack.c.b16 %v2523, %v2519
    %v2768 = vpack.c.b16 %v2524, %v2520
    %v2769 = vpack.c.b16 %v2525, %v2521
    %v2770 = vpack.c.b16 %v2526, %v2522
    %v2771 = vpack.c.b16 %v2531, %v2527
    %v2772 = vpack.c.b16 %v2532, %v2528
    %v2773 = vpack.c.b16 %v2533, %v2529
    %v2774 = vpack.c.b16 %v2534, %v2530
    %v2775 = vpack.c.b16 %v2539, %v2535
    %v2776 = vpack.c.b16 %v2540, %v2536
    %v2777 = vpack.c.b16 %v2541, %v2537
    %v2778 = vpack.c.b16 %v2542, %v2538
    %v2779 = vpack.c.b16 %v2547, %v2543
    %v2780 = vpack.c.b16 %v2548, %v2544
    %v2781 = vpack.c.b16 %v2549, %v2545
    %v2782 = vpack.c.b16 %v2550, %v2546
    %v2783 = vpack.c.b16 %v2555, %v2551
    %v2784 = vpack.c.b16 %v2556, %v2552
    %v2785 = vpack.c.b16 %v2557, %v2553
    %v2786 = vpack.c.b16 %v2558, %v2554
    %v2787 = vpack.c.b16 %v2563, %v2559
    %v2788 = vpack.c.b16 %v2564, %v2560
    %v2789 = vpack.c.b16 %v2565, %v2561
    %v2790 = vpack.c.b16 %v2566, %v2562
    %v2791 = vpack.c.b16 %v2571, %v2567
    %v2792 = vpack.c.b16 %v2572, %v2568
    %v2793 = vpack.c.b16 %v2573, %v2569
    %v2794 = vpack.c.b16 %v2574, %v2570
    %v2795 = vpack.c.b16 %v2579, %v2575
    %v2796 = vpack.c.b16 %v2580, %v2576
    %v2797 = vpack.c.b16 %v2581, %v2577
    %v2798 = vpack.c.b16 %v2582, %v2578
    %v2799 = vpack.c.b16 %v2587, %v2583
    %v2800 = vpack.c.b16 %v2588, %v2584
    %v2801 = vpack.c.b16 %v2589, %v2585
    %v2802 = vpack.c.b16 %v2590, %v2586
    %v2803 = vpack.c.b16 %v2595, %v2591
    %v2804 = vpack.c.b16 %v2596, %v2592
    %v2805 = vpack.c.b16 %v2597, %v2593
    %v2806 = vpack.c.b16 %v2598, %v2594
    %v2807 = vpack.c.b16 %v2603, %v2599
    %v2808 = vpack.c.b16 %v2604, %v2600
    %v2809 = vpack.c.b16 %v2605, %v2601
    %v2810 = vpack.c.b16 %v2606, %v2602
    %v2811 = vpack.c.b16 %v2611, %v2607
    %v2812 = vpack.c.b16 %v2612, %v2608
    %v2813 = vpack.c.b16 %v2613, %v2609
    %v2814 = vpack.c.b16 %v2614, %v2610
    %v2815 = vpack.c.b16 %v2619, %v2615
    %v2816 = vpack.c.b16 %v2620, %v2616
    %v2817 = vpack.c.b16 %v2621, %v2617
    %v2818 = vpack.c.b16 %v2622, %v2618
    %v2819 = vpack.c.b16 %v2627, %v2623
    %v2820 = vpack.c.b16 %v2628, %v2624
    %v2821 = vpack.c.b16 %v2629, %v2625
    %v2822 = vpack.c.b16 %v2630, %v2626
    %v2823 = vpack.c.b16 %v2635, %v2631
    %v2824 = vpack.c.b16 %v2636, %v2632
    %v2825 = vpack.c.b16 %v2637, %v2633
    %v2826 = vpack.c.b16 %v2638, %v2634
    %v2827 = vpack.c.b16 %v2643, %v2639
    %v2828 = vpack.c.b16 %v2644, %v2640
    %v2829 = vpack.c.b16 %v2645, %v2641
    %v2830 = vpack.c.b16 %v2646, %v2642
    %v2831 = vpack.c.b16 %v2651, %v2647
    %v2832 = vpack.c.b16 %v2652, %v2648
    %v2833 = vpack.c.b16 %v2653, %v2649
    %v2834 = vpack.c.b16 %v2654, %v2650
    %v2835 = vpack.c.b16 %v2659, %v2655
    %v2836 = vpack.c.b16 %v2660, %v2656
    %v2837 = vpack.c.b16 %v2661, %v2657
    %v2838 = vpack.c.b16 %v2662, %v2658
    %v2839 = vpack.c.b16 %v2667, %v2663
    %v2840 = vpack.c.b16 %v2668, %v2664
    %v2841 = vpack.c.b16 %v2669, %v2665
    %v2842 = vpack.c.b16 %v2670, %v2666
    %v2843 = vpack.c.b16 %v2675, %v2671
    %v2844 = vpack.c.b16 %v2676, %v2672
    %v2845 = vpack.c.b16 %v2677, %v2673
    %v2846 = vpack.c.b16 %v2678, %v2674
    %v2847 = vpack.c.b16 %v2683, %v2679
    %v2848 = vpack.c.b16 %v2684, %v2680
    %v2849 = vpack.c.b16 %v2685, %v2681
    %v2850 = vpack.c.b16 %v2686, %v2682
    %v2851 = vpack.c.b16 %v2691, %v2687
    %v2852 = vpack.c.b16 %v2692, %v2688
    %v2853 = vpack.c.b16 %v2693, %v2689
    %v2854 = vpack.c.b16 %v2694, %v2690
    %v2855 = vpack.c.b16 %v2699, %v2695
    %v2856 = vpack.c.b16 %v2700, %v2696
    %v2857 = vpack.c.b16 %v2701, %v2697
    %v2858 = vpack.c.b16 %v2702, %v2698
    %v2859 = vpack.c.b16 %v2707, %v2703
    %v2860 = vpack.c.b16 %v2708, %v2704
    %v2861 = vpack.c.b16 %v2709, %v2705
    %v2862 = vpack.c.b16 %v2710, %v2706
    %v2863 = vpack.c.b16 %v2715, %v2711
    %v2864 = vpack.c.b16 %v2716, %v2712
    %v2865 = vpack.c.b16 %v2717, %v2713
    %v2866 = vpack.c.b16 %v2718, %v2714
    %v2867 = vpack.c.b16 %v2723, %v2719
    %v2868 = vpack.c.b16 %v2724, %v2720
    %v2869 = vpack.c.b16 %v2725, %v2721
    %v2870 = vpack.c.b16 %v2726, %v2722
    %v2871 = vpack.c.b16 %v2731, %v2727
    %v2872 = vpack.c.b16 %v2732, %v2728
    %v2873 = vpack.c.b16 %v2733, %v2729
    %v2874 = vpack.c.b16 %v2734, %v2730
    %v2875 = vpack.c.b16 %v2739, %v2735
    %v2876 = vpack.c.b16 %v2740, %v2736
    %v2877 = vpack.c.b16 %v2741, %v2737
    %v2878 = vpack.c.b16 %v2742, %v2738
    %v2879 = vpack.c.b16 %v2747, %v2743
    %v2880 = vpack.c.b16 %v2748, %v2744
    %v2881 = vpack.c.b16 %v2749, %v2745
    %v2882 = vpack.c.b16 %v2750, %v2746
    %v2883 = vpack.c.b16 %v2755, %v2751
    %v2884 = vpack.c.b16 %v2756, %v2752
    %v2885 = vpack.c.b16 %v2757, %v2753
    %v2886 = vpack.c.b16 %v2758, %v2754
    %3015 = vmatprep.subr.bf16.mxu0 %v2760
    %3016 = vmatpush1.bf16.msra.mxu0 %v2759
    %3017 = vmatprep.subr.bf16.mxu0 %v2764
    %3018 = vmatpush1.bf16.msra.mxu0 %v2763
    %3019 = vmatprep.subr.bf16.mxu0 %v2768
    %3020 = vmatpush1.bf16.msra.mxu0 %v2767
    %3021 = vmatprep.subr.bf16.mxu0 %v2772
    %3022 = vmatpush1.bf16.msra.mxu0 %v2771
    %3023 = vmatprep.subr.bf16.mxu0 %v2776
    %3024 = vmatpush1.bf16.msra.mxu0 %v2775
    %3025 = vmatprep.subr.bf16.mxu0 %v2780
    %3026 = vmatpush1.bf16.msra.mxu0 %v2779
    %3027 = vmatprep.subr.bf16.mxu0 %v2784
    %3028 = vmatpush1.bf16.msra.mxu0 %v2783
    %3029 = vmatprep.subr.bf16.mxu0 %v2788
    %3030 = vmatpush1.bf16.msra.mxu0 %v2787
    %3031 = vmatprep.subr.bf16.mxu0 %v2792
    %3032 = vmatpush1.bf16.msra.mxu0 %v2791
    %3033 = vmatprep.subr.bf16.mxu0 %v2796
    %3034 = vmatpush1.bf16.msra.mxu0 %v2795
    %3035 = vmatprep.subr.bf16.mxu0 %v2800
    %3036 = vmatpush1.bf16.msra.mxu0 %v2799
    %3037 = vmatprep.subr.bf16.mxu0 %v2804
    %3038 = vmatpush1.bf16.msra.mxu0 %v2803
    %3039 = vmatprep.subr.bf16.mxu0 %v2808
    %3040 = vmatpush1.bf16.msra.mxu0 %v2807
    %3041 = vmatprep.subr.bf16.mxu0 %v2812
    %3042 = vmatpush1.bf16.msra.mxu0 %v2811
    %3043 = vmatprep.subr.bf16.mxu0 %v2816
    %3044 = vmatpush1.bf16.msra.mxu0 %v2815
    %3045 = vmatprep.subr.bf16.mxu0 %v2820
    %3046 = vmatpush1.bf16.msra.mxu0 %v2819
    %3047 = vmatprep.mubr.bf16.mxu0 %v2222
    %3048 = vmatmul.mubr.bf16.gmra.mrb[0].mxu0 %v2221
    %v3049 = vpop.f32.mrb[0].mxu0
    %v3050 = vadd.f32 %v2358, %v3049
    %v3051 = vpop.f32.mrb[0].mxu0
    %v3052 = vadd.f32 %v2362, %v3051
    %v3053 = vpop.f32.mrb[0].mxu0
    %v3054 = vpop.f32.mrb[0].mxu0
    %3055 = vdwg.mxu0
    %3056 = vmatprep.subr.bf16.mxu0 %v2824
    %3057 = vmatpush1.bf16.msra.mxu0 %v2823
    %3058 = vmatprep.subr.bf16.mxu0 %v2828
    %3059 = vmatpush1.bf16.msra.mxu0 %v2827
    %3060 = vmatprep.subr.bf16.mxu0 %v2832
    %3061 = vmatpush1.bf16.msra.mxu0 %v2831
    %3062 = vmatprep.subr.bf16.mxu0 %v2836
    %3063 = vmatpush1.bf16.msra.mxu0 %v2835
    %3064 = vmatprep.subr.bf16.mxu0 %v2840
    %3065 = vmatpush1.bf16.msra.mxu0 %v2839
    %3066 = vmatprep.subr.bf16.mxu0 %v2844
    %3067 = vmatpush1.bf16.msra.mxu0 %v2843
    %3068 = vmatprep.subr.bf16.mxu0 %v2848
    %3069 = vmatpush1.bf16.msra.mxu0 %v2847
    %3070 = vmatprep.subr.bf16.mxu0 %v2852
    %3071 = vmatpush1.bf16.msra.mxu0 %v2851
    %3072 = vmatprep.subr.bf16.mxu0 %v2856
    %3073 = vmatpush1.bf16.msra.mxu0 %v2855
    %3074 = vmatprep.subr.bf16.mxu0 %v2860
    %3075 = vmatpush1.bf16.msra.mxu0 %v2859
    %3076 = vmatprep.subr.bf16.mxu0 %v2864
    %3077 = vmatpush1.bf16.msra.mxu0 %v2863
    %3078 = vmatprep.subr.bf16.mxu0 %v2868
    %3079 = vmatpush1.bf16.msra.mxu0 %v2867
    %3080 = vmatprep.subr.bf16.mxu0 %v2872
    %3081 = vmatpush1.bf16.msra.mxu0 %v2871
    %3082 = vmatprep.subr.bf16.mxu0 %v2876
    %3083 = vmatpush1.bf16.msra.mxu0 %v2875
    %3084 = vmatprep.subr.bf16.mxu0 %v2880
    %3085 = vmatpush1.bf16.msra.mxu0 %v2879
    %3086 = vmatprep.subr.bf16.mxu0 %v2884
    %3087 = vmatpush1.bf16.msra.mxu0 %v2883
    %3088 = vmatprep.mubr.bf16.mxu0 %v2224
    %3089 = vmatmul.mubr.bf16.gmra.mrb[0].mxu0 %v2223
    %v3090 = vpop.f32.mrb[0].mxu0
    %v3091 = vadd.f32 %v3050, %v3090
    %v3092 = vpop.f32.mrb[0].mxu0
    %v3093 = vadd.f32 %v3052, %v3092
    %v3094 = vpop.f32.mrb[0].mxu0
    %v3095 = vpop.f32.mrb[0].mxu0
    %3096 = vdwg.mxu0
    %3097 = vmatprep.subr.bf16.mxu0 %v2762
    %3098 = vmatpush1.bf16.msra.mxu0 %v2761
    %3099 = vmatprep.subr.bf16.mxu0 %v2766
    %3100 = vmatpush1.bf16.msra.mxu0 %v2765
    %3101 = vmatprep.subr.bf16.mxu0 %v2770
    %3102 = vmatpush1.bf16.msra.mxu0 %v2769
    %3103 = vmatprep.subr.bf16.mxu0 %v2774
    %3104 = vmatpush1.bf16.msra.mxu0 %v2773
    %3105 = vmatprep.subr.bf16.mxu0 %v2778
    %3106 = vmatpush1.bf16.msra.mxu0 %v2777
    %3107 = vmatprep.subr.bf16.mxu0 %v2782
    %3108 = vmatpush1.bf16.msra.mxu0 %v2781
    %3109 = vmatprep.subr.bf16.mxu0 %v2786
    %3110 = vmatpush1.bf16.msra.mxu0 %v2785
    %3111 = vmatprep.subr.bf16.mxu0 %v2790
    %3112 = vmatpush1.bf16.msra.mxu0 %v2789
    %3113 = vmatprep.subr.bf16.mxu0 %v2794
    %3114 = vmatpush1.bf16.msra.mxu0 %v2793
    %3115 = vmatprep.subr.bf16.mxu0 %v2798
    %3116 = vmatpush1.bf16.msra.mxu0 %v2797
    %3117 = vmatprep.subr.bf16.mxu0 %v2802
    %3118 = vmatpush1.bf16.msra.mxu0 %v2801
    %3119 = vmatprep.subr.bf16.mxu0 %v2806
    %3120 = vmatpush1.bf16.msra.mxu0 %v2805
    %3121 = vmatprep.subr.bf16.mxu0 %v2810
    %3122 = vmatpush1.bf16.msra.mxu0 %v2809
    %3123 = vmatprep.subr.bf16.mxu0 %v2814
    %3124 = vmatpush1.bf16.msra.mxu0 %v2813
    %3125 = vmatprep.subr.bf16.mxu0 %v2818
    %3126 = vmatpush1.bf16.msra.mxu0 %v2817
    %3127 = vmatprep.subr.bf16.mxu0 %v2822
    %3128 = vmatpush1.bf16.msra.mxu0 %v2821
    %3129 = vmatprep.mubr.bf16.mxu0 %v2222
    %3130 = vmatmul.mubr.bf16.gmra.mrb[0].mxu0 %v2221
    %v3131 = vpop.f32.mrb[0].mxu0
    %v3132 = vadd.f32 %v2366, %v3131
    %v3133 = vpop.f32.mrb[0].mxu0
    %v3134 = vadd.f32 %v2370, %v3133
    %v3135 = vpop.f32.mrb[0].mxu0
    %v3136 = vpop.f32.mrb[0].mxu0
    %3137 = vdwg.mxu0
    %3138 = vmatprep.subr.bf16.mxu0 %v2826
    %3139 = vmatpush1.bf16.msra.mxu0 %v2825
    %3140 = vmatprep.subr.bf16.mxu0 %v2830
    %3141 = vmatpush1.bf16.msra.mxu0 %v2829
    %3142 = vmatprep.subr.bf16.mxu0 %v2834
    %3143 = vmatpush1.bf16.msra.mxu0 %v2833
    %3144 = vmatprep.subr.bf16.mxu0 %v2838
    %3145 = vmatpush1.bf16.msra.mxu0 %v2837
    %3146 = vmatprep.subr.bf16.mxu0 %v2842
    %3147 = vmatpush1.bf16.msra.mxu0 %v2841
    %3148 = vmatprep.subr.bf16.mxu0 %v2846
    %3149 = vmatpush1.bf16.msra.mxu0 %v2845
    %3150 = vmatprep.subr.bf16.mxu0 %v2850
    %3151 = vmatpush1.bf16.msra.mxu0 %v2849
    %3152 = vmatprep.subr.bf16.mxu0 %v2854
    %3153 = vmatpush1.bf16.msra.mxu0 %v2853
    %3154 = vmatprep.subr.bf16.mxu0 %v2858
    %3155 = vmatpush1.bf16.msra.mxu0 %v2857
    %3156 = vmatprep.subr.bf16.mxu0 %v2862
    %3157 = vmatpush1.bf16.msra.mxu0 %v2861
    %3158 = vmatprep.subr.bf16.mxu0 %v2866
    %3159 = vmatpush1.bf16.msra.mxu0 %v2865
    %3160 = vmatprep.subr.bf16.mxu0 %v2870
    %3161 = vmatpush1.bf16.msra.mxu0 %v2869
    %3162 = vmatprep.subr.bf16.mxu0 %v2874
    %3163 = vmatpush1.bf16.msra.mxu0 %v2873
    %3164 = vmatprep.subr.bf16.mxu0 %v2878
    %3165 = vmatpush1.bf16.msra.mxu0 %v2877
    %3166 = vmatprep.subr.bf16.mxu0 %v2882
    %3167 = vmatpush1.bf16.msra.mxu0 %v2881
    %3168 = vmatprep.subr.bf16.mxu0 %v2886
    %3169 = vmatpush1.bf16.msra.mxu0 %v2885
    %3170 = vmatprep.mubr.bf16.mxu0 %v2224
    %3171 = vmatmul.mubr.bf16.gmra.mrb[0].mxu0 %v2223
    %v3172 = vpop.f32.mrb[0].mxu0
    %v3173 = vadd.f32 %v3132, %v3172
    %v3174 = vpop.f32.mrb[0].mxu0
    %v3175 = vadd.f32 %v3134, %v3174
    %v3176 = vpop.f32.mrb[0].mxu0
    %v3177 = vpop.f32.mrb[0].mxu0
    %3178 = vdwg.mxu0
    %v3179 = vmax.f32 %v3091, 0.0
    %v3180 = vmax.f32 %v3093, 0.0
    %v3181 = vmax.f32 %v3173, 0.0
    %v3182 = vmax.f32 %v3175, 0.0
    %v3183 = vpack.c.bf16 %v3179, %v3179
    %v3184 = vpack.c.bf16 %v3180, %v3180
    %v3185 = vpack.c.bf16 %v3181, %v3181
    %v3186 = vpack.c.bf16 %v3182, %v3182
    %v3187 = vld [vmem:[#allocation11] sm:$0xff]
    %v3188 = vld [vmem:[#allocation11 + $0x8] sm:$0xff]
    %v3189 = vld [vmem:[#allocation11 + $0x10] sm:$0xff]
    %v3190 = vld [vmem:[#allocation11 + $0x18] sm:$0xff]
    %v3191 = vld [vmem:[#allocation11 + $0x20] sm:$0xff]
    %v3192 = vld [vmem:[#allocation11 + $0x28] sm:$0xff]
    %v3193 = vld [vmem:[#allocation11 + $0x30] sm:$0xff]
    %v3194 = vld [vmem:[#allocation11 + $0x38] sm:$0xff]
    %v3195 = vld [vmem:[#allocation11 + $0x40] sm:$0xff]
    %v3196 = vld [vmem:[#allocation11 + $0x48] sm:$0xff]
    %v3197 = vld [vmem:[#allocation11 + $0x50] sm:$0xff]
    %v3198 = vld [vmem:[#allocation11 + $0x58] sm:$0xff]
    %v3199 = vld [vmem:[#allocation11 + $0x60] sm:$0xff]
    %v3200 = vld [vmem:[#allocation11 + $0x68] sm:$0xff]
    %v3201 = vld [vmem:[#allocation11 + $0x70] sm:$0xff]
    %v3202 = vld [vmem:[#allocation11 + $0x78] sm:$0xff]
    %v3203 = vld [vmem:[#allocation11 + $0x80] sm:$0xff]
    %v3204 = vld [vmem:[#allocation11 + $0x88] sm:$0xff]
    %v3205 = vld [vmem:[#allocation11 + $0x90] sm:$0xff]
    %v3206 = vld [vmem:[#allocation11 + $0x98] sm:$0xff]
    %v3207 = vld [vmem:[#allocation11 + $0xa0] sm:$0xff]
    %v3208 = vld [vmem:[#allocation11 + $0xa8] sm:$0xff]
    %v3209 = vld [vmem:[#allocation11 + $0xb0] sm:$0xff]
    %v3210 = vld [vmem:[#allocation11 + $0xb8] sm:$0xff]
    %v3211 = vld [vmem:[#allocation11 + $0xc0] sm:$0xff]
    %v3212 = vld [vmem:[#allocation11 + $0xc8] sm:$0xff]
    %v3213 = vld [vmem:[#allocation11 + $0xd0] sm:$0xff]
    %v3214 = vld [vmem:[#allocation11 + $0xd8] sm:$0xff]
    %v3215 = vld [vmem:[#allocation11 + $0xe0] sm:$0xff]
    %v3216 = vld [vmem:[#allocation11 + $0xe8] sm:$0xff]
    %v3217 = vld [vmem:[#allocation11 + $0xf0] sm:$0xff]
    %v3218 = vld [vmem:[#allocation11 + $0xf8] sm:$0xff]
    %v3219 = vld [vmem:[#allocation11 + $0x100] sm:$0xff]
    %v3220 = vld [vmem:[#allocation11 + $0x108] sm:$0xff]
    %v3221 = vld [vmem:[#allocation11 + $0x110] sm:$0xff]
    %v3222 = vld [vmem:[#allocation11 + $0x118] sm:$0xff]
    %v3223 = vld [vmem:[#allocation11 + $0x120] sm:$0xff]
    %v3224 = vld [vmem:[#allocation11 + $0x128] sm:$0xff]
    %v3225 = vld [vmem:[#allocation11 + $0x130] sm:$0xff]
    %v3226 = vld [vmem:[#allocation11 + $0x138] sm:$0xff]
    %v3227 = vld [vmem:[#allocation11 + $0x140] sm:$0xff]
    %v3228 = vld [vmem:[#allocation11 + $0x148] sm:$0xff]
    %v3229 = vld [vmem:[#allocation11 + $0x150] sm:$0xff]
    %v3230 = vld [vmem:[#allocation11 + $0x158] sm:$0xff]
    %v3231 = vld [vmem:[#allocation11 + $0x160] sm:$0xff]
    %v3232 = vld [vmem:[#allocation11 + $0x168] sm:$0xff]
    %v3233 = vld [vmem:[#allocation11 + $0x170] sm:$0xff]
    %v3234 = vld [vmem:[#allocation11 + $0x178] sm:$0xff]
    %v3235 = vld [vmem:[#allocation11 + $0x180] sm:$0xff]
    %v3236 = vld [vmem:[#allocation11 + $0x188] sm:$0xff]
    %v3237 = vld [vmem:[#allocation11 + $0x190] sm:$0xff]
    %v3238 = vld [vmem:[#allocation11 + $0x198] sm:$0xff]
    %v3239 = vld [vmem:[#allocation11 + $0x1a0] sm:$0xff]
    %v3240 = vld [vmem:[#allocation11 + $0x1a8] sm:$0xff]
    %v3241 = vld [vmem:[#allocation11 + $0x1b0] sm:$0xff]
    %v3242 = vld [vmem:[#allocation11 + $0x1b8] sm:$0xff]
    %v3243 = vld [vmem:[#allocation11 + $0x1c0] sm:$0xff]
    %v3244 = vld [vmem:[#allocation11 + $0x1c8] sm:$0xff]
    %v3245 = vld [vmem:[#allocation11 + $0x1d0] sm:$0xff]
    %v3246 = vld [vmem:[#allocation11 + $0x1d8] sm:$0xff]
    %v3247 = vld [vmem:[#allocation11 + $0x1e0] sm:$0xff]
    %v3248 = vld [vmem:[#allocation11 + $0x1e8] sm:$0xff]
    %v3249 = vld [vmem:[#allocation11 + $0x1f0] sm:$0xff]
    %v3250 = vld [vmem:[#allocation11 + $0x1f8] sm:$0xff]
    %v3251 = vld [vmem:[#allocation11 + $0x200] sm:$0xff]
    %v3252 = vld [vmem:[#allocation11 + $0x208] sm:$0xff]
    %v3253 = vld [vmem:[#allocation11 + $0x210] sm:$0xff]
    %v3254 = vld [vmem:[#allocation11 + $0x218] sm:$0xff]
    %v3255 = vld [vmem:[#allocation11 + $0x220] sm:$0xff]
    %v3256 = vld [vmem:[#allocation11 + $0x228] sm:$0xff]
    %v3257 = vld [vmem:[#allocation11 + $0x230] sm:$0xff]
    %v3258 = vld [vmem:[#allocation11 + $0x238] sm:$0xff]
    %v3259 = vld [vmem:[#allocation11 + $0x240] sm:$0xff]
    %v3260 = vld [vmem:[#allocation11 + $0x248] sm:$0xff]
    %v3261 = vld [vmem:[#allocation11 + $0x250] sm:$0xff]
    %v3262 = vld [vmem:[#allocation11 + $0x258] sm:$0xff]
    %v3263 = vld [vmem:[#allocation11 + $0x260] sm:$0xff]
    %v3264 = vld [vmem:[#allocation11 + $0x268] sm:$0xff]
    %v3265 = vld [vmem:[#allocation11 + $0x270] sm:$0xff]
    %v3266 = vld [vmem:[#allocation11 + $0x278] sm:$0xff]
    %v3267 = vld [vmem:[#allocation11 + $0x280] sm:$0xff]
    %v3268 = vld [vmem:[#allocation11 + $0x288] sm:$0xff]
    %v3269 = vld [vmem:[#allocation11 + $0x290] sm:$0xff]
    %v3270 = vld [vmem:[#allocation11 + $0x298] sm:$0xff]
    %v3271 = vld [vmem:[#allocation11 + $0x2a0] sm:$0xff]
    %v3272 = vld [vmem:[#allocation11 + $0x2a8] sm:$0xff]
    %v3273 = vld [vmem:[#allocation11 + $0x2b0] sm:$0xff]
    %v3274 = vld [vmem:[#allocation11 + $0x2b8] sm:$0xff]
    %v3275 = vld [vmem:[#allocation11 + $0x2c0] sm:$0xff]
    %v3276 = vld [vmem:[#allocation11 + $0x2c8] sm:$0xff]
    %v3277 = vld [vmem:[#allocation11 + $0x2d0] sm:$0xff]
    %v3278 = vld [vmem:[#allocation11 + $0x2d8] sm:$0xff]
    %v3279 = vld [vmem:[#allocation11 + $0x2e0] sm:$0xff]
    %v3280 = vld [vmem:[#allocation11 + $0x2e8] sm:$0xff]
    %v3281 = vld [vmem:[#allocation11 + $0x2f0] sm:$0xff]
    %v3282 = vld [vmem:[#allocation11 + $0x2f8] sm:$0xff]
    %v3283 = vld [vmem:[#allocation11 + $0x300] sm:$0xff]
    %v3284 = vld [vmem:[#allocation11 + $0x308] sm:$0xff]
    %v3285 = vld [vmem:[#allocation11 + $0x310] sm:$0xff]
    %v3286 = vld [vmem:[#allocation11 + $0x318] sm:$0xff]
    %v3287 = vld [vmem:[#allocation11 + $0x320] sm:$0xff]
    %v3288 = vld [vmem:[#allocation11 + $0x328] sm:$0xff]
    %v3289 = vld [vmem:[#allocation11 + $0x330] sm:$0xff]
    %v3290 = vld [vmem:[#allocation11 + $0x338] sm:$0xff]
    %v3291 = vld [vmem:[#allocation11 + $0x340] sm:$0xff]
    %v3292 = vld [vmem:[#allocation11 + $0x348] sm:$0xff]
    %v3293 = vld [vmem:[#allocation11 + $0x350] sm:$0xff]
    %v3294 = vld [vmem:[#allocation11 + $0x358] sm:$0xff]
    %v3295 = vld [vmem:[#allocation11 + $0x360] sm:$0xff]
    %v3296 = vld [vmem:[#allocation11 + $0x368] sm:$0xff]
    %v3297 = vld [vmem:[#allocation11 + $0x370] sm:$0xff]
    %v3298 = vld [vmem:[#allocation11 + $0x378] sm:$0xff]
    %v3299 = vld [vmem:[#allocation11 + $0x380] sm:$0xff]
    %v3300 = vld [vmem:[#allocation11 + $0x388] sm:$0xff]
    %v3301 = vld [vmem:[#allocation11 + $0x390] sm:$0xff]
    %v3302 = vld [vmem:[#allocation11 + $0x398] sm:$0xff]
    %v3303 = vld [vmem:[#allocation11 + $0x3a0] sm:$0xff]
    %v3304 = vld [vmem:[#allocation11 + $0x3a8] sm:$0xff]
    %v3305 = vld [vmem:[#allocation11 + $0x3b0] sm:$0xff]
    %v3306 = vld [vmem:[#allocation11 + $0x3b8] sm:$0xff]
    %v3307 = vld [vmem:[#allocation11 + $0x3c0] sm:$0xff]
    %v3308 = vld [vmem:[#allocation11 + $0x3c8] sm:$0xff]
    %v3309 = vld [vmem:[#allocation11 + $0x3d0] sm:$0xff]
    %v3310 = vld [vmem:[#allocation11 + $0x3d8] sm:$0xff]
    %v3311 = vld [vmem:[#allocation11 + $0x3e0] sm:$0xff]
    %v3312 = vld [vmem:[#allocation11 + $0x3e8] sm:$0xff]
    %v3313 = vld [vmem:[#allocation11 + $0x3f0] sm:$0xff]
    %v3314 = vld [vmem:[#allocation11 + $0x3f8] sm:$0xff]
    %v3315 = vld [vmem:[%s10] sm:$0xf]
    %v3317 = vlaneseq
    %v3318 = vshrl.u32 %v3317, 7
    %v3319 = vsub.s32 0, %v3318
    %v3320 = vrot.slane %v3315, %v3319
    %v3321 = vlaneseq
    %v3322 = vshrl.u32 %v3321, 7
    %v3323 = vsub.s32 1, %v3322
    %v3324 = vrot.slane %v3315, %v3323
    %v3325 = vlaneseq
    %v3326 = vshrl.u32 %v3325, 7
    %v3327 = vsub.s32 2, %v3326
    %v3328 = vrot.slane %v3315, %v3327
    %v3329 = vlaneseq
    %v3330 = vshrl.u32 %v3329, 7
    %v3331 = vsub.s32 3, %v3330
    %v3332 = vrot.slane %v3315, %v3331
    %v3465 = vunpack.c.l.b16 %v3187
    %v3466 = vunpack.c.h.b16 %v3187
    %v3467 = vunpack.c.l.b16 %v3188
    %v3468 = vunpack.c.h.b16 %v3188
    %v3469 = vunpack.c.l.b16 %v3189
    %v3470 = vunpack.c.h.b16 %v3189
    %v3471 = vunpack.c.l.b16 %v3190
    %v3472 = vunpack.c.h.b16 %v3190
    %v3473 = vunpack.c.l.b16 %v3191
    %v3474 = vunpack.c.h.b16 %v3191
    %v3475 = vunpack.c.l.b16 %v3192
    %v3476 = vunpack.c.h.b16 %v3192
    %v3477 = vunpack.c.l.b16 %v3193
    %v3478 = vunpack.c.h.b16 %v3193
    %v3479 = vunpack.c.l.b16 %v3194
    %v3480 = vunpack.c.h.b16 %v3194
    %v3481 = vunpack.c.l.b16 %v3195
    %v3482 = vunpack.c.h.b16 %v3195
    %v3483 = vunpack.c.l.b16 %v3196
    %v3484 = vunpack.c.h.b16 %v3196
    %v3485 = vunpack.c.l.b16 %v3197
    %v3486 = vunpack.c.h.b16 %v3197
    %v3487 = vunpack.c.l.b16 %v3198
    %v3488 = vunpack.c.h.b16 %v3198
    %v3489 = vunpack.c.l.b16 %v3199
    %v3490 = vunpack.c.h.b16 %v3199
    %v3491 = vunpack.c.l.b16 %v3200
    %v3492 = vunpack.c.h.b16 %v3200
    %v3493 = vunpack.c.l.b16 %v3201
    %v3494 = vunpack.c.h.b16 %v3201
    %v3495 = vunpack.c.l.b16 %v3202
    %v3496 = vunpack.c.h.b16 %v3202
    %v3497 = vunpack.c.l.b16 %v3203
    %v3498 = vunpack.c.h.b16 %v3203
    %v3499 = vunpack.c.l.b16 %v3204
    %v3500 = vunpack.c.h.b16 %v3204
    %v3501 = vunpack.c.l.b16 %v3205
    %v3502 = vunpack.c.h.b16 %v3205
    %v3503 = vunpack.c.l.b16 %v3206
    %v3504 = vunpack.c.h.b16 %v3206
    %v3505 = vunpack.c.l.b16 %v3207
    %v3506 = vunpack.c.h.b16 %v3207
    %v3507 = vunpack.c.l.b16 %v3208
    %v3508 = vunpack.c.h.b16 %v3208
    %v3509 = vunpack.c.l.b16 %v3209
    %v3510 = vunpack.c.h.b16 %v3209
    %v3511 = vunpack.c.l.b16 %v3210
    %v3512 = vunpack.c.h.b16 %v3210
    %v3513 = vunpack.c.l.b16 %v3211
    %v3514 = vunpack.c.h.b16 %v3211
    %v3515 = vunpack.c.l.b16 %v3212
    %v3516 = vunpack.c.h.b16 %v3212
    %v3517 = vunpack.c.l.b16 %v3213
    %v3518 = vunpack.c.h.b16 %v3213
    %v3519 = vunpack.c.l.b16 %v3214
    %v3520 = vunpack.c.h.b16 %v3214
    %v3521 = vunpack.c.l.b16 %v3215
    %v3522 = vunpack.c.h.b16 %v3215
    %v3523 = vunpack.c.l.b16 %v3216
    %v3524 = vunpack.c.h.b16 %v3216
    %v3525 = vunpack.c.l.b16 %v3217
    %v3526 = vunpack.c.h.b16 %v3217
    %v3527 = vunpack.c.l.b16 %v3218
    %v3528 = vunpack.c.h.b16 %v3218
    %v3529 = vunpack.c.l.b16 %v3219
    %v3530 = vunpack.c.h.b16 %v3219
    %v3531 = vunpack.c.l.b16 %v3220
    %v3532 = vunpack.c.h.b16 %v3220
    %v3533 = vunpack.c.l.b16 %v3221
    %v3534 = vunpack.c.h.b16 %v3221
    %v3535 = vunpack.c.l.b16 %v3222
    %v3536 = vunpack.c.h.b16 %v3222
    %v3537 = vunpack.c.l.b16 %v3223
    %v3538 = vunpack.c.h.b16 %v3223
    %v3539 = vunpack.c.l.b16 %v3224
    %v3540 = vunpack.c.h.b16 %v3224
    %v3541 = vunpack.c.l.b16 %v3225
    %v3542 = vunpack.c.h.b16 %v3225
    %v3543 = vunpack.c.l.b16 %v3226
    %v3544 = vunpack.c.h.b16 %v3226
    %v3545 = vunpack.c.l.b16 %v3227
    %v3546 = vunpack.c.h.b16 %v3227
    %v3547 = vunpack.c.l.b16 %v3228
    %v3548 = vunpack.c.h.b16 %v3228
    %v3549 = vunpack.c.l.b16 %v3229
    %v3550 = vunpack.c.h.b16 %v3229
    %v3551 = vunpack.c.l.b16 %v3230
    %v3552 = vunpack.c.h.b16 %v3230
    %v3553 = vunpack.c.l.b16 %v3231
    %v3554 = vunpack.c.h.b16 %v3231
    %v3555 = vunpack.c.l.b16 %v3232
    %v3556 = vunpack.c.h.b16 %v3232
    %v3557 = vunpack.c.l.b16 %v3233
    %v3558 = vunpack.c.h.b16 %v3233
    %v3559 = vunpack.c.l.b16 %v3234
    %v3560 = vunpack.c.h.b16 %v3234
    %v3561 = vunpack.c.l.b16 %v3235
    %v3562 = vunpack.c.h.b16 %v3235
    %v3563 = vunpack.c.l.b16 %v3236
    %v3564 = vunpack.c.h.b16 %v3236
    %v3565 = vunpack.c.l.b16 %v3237
    %v3566 = vunpack.c.h.b16 %v3237
    %v3567 = vunpack.c.l.b16 %v3238
    %v3568 = vunpack.c.h.b16 %v3238
    %v3569 = vunpack.c.l.b16 %v3239
    %v3570 = vunpack.c.h.b16 %v3239
    %v3571 = vunpack.c.l.b16 %v3240
    %v3572 = vunpack.c.h.b16 %v3240
    %v3573 = vunpack.c.l.b16 %v3241
    %v3574 = vunpack.c.h.b16 %v3241
    %v3575 = vunpack.c.l.b16 %v3242
    %v3576 = vunpack.c.h.b16 %v3242
    %v3577 = vunpack.c.l.b16 %v3243
    %v3578 = vunpack.c.h.b16 %v3243
    %v3579 = vunpack.c.l.b16 %v3244
    %v3580 = vunpack.c.h.b16 %v3244
    %v3581 = vunpack.c.l.b16 %v3245
    %v3582 = vunpack.c.h.b16 %v3245
    %v3583 = vunpack.c.l.b16 %v3246
    %v3584 = vunpack.c.h.b16 %v3246
    %v3585 = vunpack.c.l.b16 %v3247
    %v3586 = vunpack.c.h.b16 %v3247
    %v3587 = vunpack.c.l.b16 %v3248
    %v3588 = vunpack.c.h.b16 %v3248
    %v3589 = vunpack.c.l.b16 %v3249
    %v3590 = vunpack.c.h.b16 %v3249
    %v3591 = vunpack.c.l.b16 %v3250
    %v3592 = vunpack.c.h.b16 %v3250
    %v3593 = vunpack.c.l.b16 %v3251
    %v3594 = vunpack.c.h.b16 %v3251
    %v3595 = vunpack.c.l.b16 %v3252
    %v3596 = vunpack.c.h.b16 %v3252
    %v3597 = vunpack.c.l.b16 %v3253
    %v3598 = vunpack.c.h.b16 %v3253
    %v3599 = vunpack.c.l.b16 %v3254
    %v3600 = vunpack.c.h.b16 %v3254
    %v3601 = vunpack.c.l.b16 %v3255
    %v3602 = vunpack.c.h.b16 %v3255
    %v3603 = vunpack.c.l.b16 %v3256
    %v3604 = vunpack.c.h.b16 %v3256
    %v3605 = vunpack.c.l.b16 %v3257
    %v3606 = vunpack.c.h.b16 %v3257
    %v3607 = vunpack.c.l.b16 %v3258
    %v3608 = vunpack.c.h.b16 %v3258
    %v3609 = vunpack.c.l.b16 %v3259
    %v3610 = vunpack.c.h.b16 %v3259
    %v3611 = vunpack.c.l.b16 %v3260
    %v3612 = vunpack.c.h.b16 %v3260
    %v3613 = vunpack.c.l.b16 %v3261
    %v3614 = vunpack.c.h.b16 %v3261
    %v3615 = vunpack.c.l.b16 %v3262
    %v3616 = vunpack.c.h.b16 %v3262
    %v3617 = vunpack.c.l.b16 %v3263
    %v3618 = vunpack.c.h.b16 %v3263
    %v3619 = vunpack.c.l.b16 %v3264
    %v3620 = vunpack.c.h.b16 %v3264
    %v3621 = vunpack.c.l.b16 %v3265
    %v3622 = vunpack.c.h.b16 %v3265
    %v3623 = vunpack.c.l.b16 %v3266
    %v3624 = vunpack.c.h.b16 %v3266
    %v3625 = vunpack.c.l.b16 %v3267
    %v3626 = vunpack.c.h.b16 %v3267
    %v3627 = vunpack.c.l.b16 %v3268
    %v3628 = vunpack.c.h.b16 %v3268
    %v3629 = vunpack.c.l.b16 %v3269
    %v3630 = vunpack.c.h.b16 %v3269
    %v3631 = vunpack.c.l.b16 %v3270
    %v3632 = vunpack.c.h.b16 %v3270
    %v3633 = vunpack.c.l.b16 %v3271
    %v3634 = vunpack.c.h.b16 %v3271
    %v3635 = vunpack.c.l.b16 %v3272
    %v3636 = vunpack.c.h.b16 %v3272
    %v3637 = vunpack.c.l.b16 %v3273
    %v3638 = vunpack.c.h.b16 %v3273
    %v3639 = vunpack.c.l.b16 %v3274
    %v3640 = vunpack.c.h.b16 %v3274
    %v3641 = vunpack.c.l.b16 %v3275
    %v3642 = vunpack.c.h.b16 %v3275
    %v3643 = vunpack.c.l.b16 %v3276
    %v3644 = vunpack.c.h.b16 %v3276
    %v3645 = vunpack.c.l.b16 %v3277
    %v3646 = vunpack.c.h.b16 %v3277
    %v3647 = vunpack.c.l.b16 %v3278
    %v3648 = vunpack.c.h.b16 %v3278
    %v3649 = vunpack.c.l.b16 %v3279
    %v3650 = vunpack.c.h.b16 %v3279
    %v3651 = vunpack.c.l.b16 %v3280
    %v3652 = vunpack.c.h.b16 %v3280
    %v3653 = vunpack.c.l.b16 %v3281
    %v3654 = vunpack.c.h.b16 %v3281
    %v3655 = vunpack.c.l.b16 %v3282
    %v3656 = vunpack.c.h.b16 %v3282
    %v3657 = vunpack.c.l.b16 %v3283
    %v3658 = vunpack.c.h.b16 %v3283
    %v3659 = vunpack.c.l.b16 %v3284
    %v3660 = vunpack.c.h.b16 %v3284
    %v3661 = vunpack.c.l.b16 %v3285
    %v3662 = vunpack.c.h.b16 %v3285
    %v3663 = vunpack.c.l.b16 %v3286
    %v3664 = vunpack.c.h.b16 %v3286
    %v3665 = vunpack.c.l.b16 %v3287
    %v3666 = vunpack.c.h.b16 %v3287
    %v3667 = vunpack.c.l.b16 %v3288
    %v3668 = vunpack.c.h.b16 %v3288
    %v3669 = vunpack.c.l.b16 %v3289
    %v3670 = vunpack.c.h.b16 %v3289
    %v3671 = vunpack.c.l.b16 %v3290
    %v3672 = vunpack.c.h.b16 %v3290
    %v3673 = vunpack.c.l.b16 %v3291
    %v3674 = vunpack.c.h.b16 %v3291
    %v3675 = vunpack.c.l.b16 %v3292
    %v3676 = vunpack.c.h.b16 %v3292
    %v3677 = vunpack.c.l.b16 %v3293
    %v3678 = vunpack.c.h.b16 %v3293
    %v3679 = vunpack.c.l.b16 %v3294
    %v3680 = vunpack.c.h.b16 %v3294
    %v3681 = vunpack.c.l.b16 %v3295
    %v3682 = vunpack.c.h.b16 %v3295
    %v3683 = vunpack.c.l.b16 %v3296
    %v3684 = vunpack.c.h.b16 %v3296
    %v3685 = vunpack.c.l.b16 %v3297
    %v3686 = vunpack.c.h.b16 %v3297
    %v3687 = vunpack.c.l.b16 %v3298
    %v3688 = vunpack.c.h.b16 %v3298
    %v3689 = vunpack.c.l.b16 %v3299
    %v3690 = vunpack.c.h.b16 %v3299
    %v3691 = vunpack.c.l.b16 %v3300
    %v3692 = vunpack.c.h.b16 %v3300
    %v3693 = vunpack.c.l.b16 %v3301
    %v3694 = vunpack.c.h.b16 %v3301
    %v3695 = vunpack.c.l.b16 %v3302
    %v3696 = vunpack.c.h.b16 %v3302
    %v3697 = vunpack.c.l.b16 %v3303
    %v3698 = vunpack.c.h.b16 %v3303
    %v3699 = vunpack.c.l.b16 %v3304
    %v3700 = vunpack.c.h.b16 %v3304
    %v3701 = vunpack.c.l.b16 %v3305
    %v3702 = vunpack.c.h.b16 %v3305
    %v3703 = vunpack.c.l.b16 %v3306
    %v3704 = vunpack.c.h.b16 %v3306
    %v3705 = vunpack.c.l.b16 %v3307
    %v3706 = vunpack.c.h.b16 %v3307
    %v3707 = vunpack.c.l.b16 %v3308
    %v3708 = vunpack.c.h.b16 %v3308
    %v3709 = vunpack.c.l.b16 %v3309
    %v3710 = vunpack.c.h.b16 %v3309
    %v3711 = vunpack.c.l.b16 %v3310
    %v3712 = vunpack.c.h.b16 %v3310
    %v3713 = vunpack.c.l.b16 %v3311
    %v3714 = vunpack.c.h.b16 %v3311
    %v3715 = vunpack.c.l.b16 %v3312
    %v3716 = vunpack.c.h.b16 %v3312
    %v3717 = vunpack.c.l.b16 %v3313
    %v3718 = vunpack.c.h.b16 %v3313
    %v3719 = vunpack.c.l.b16 %v3314
    %v3720 = vunpack.c.h.b16 %v3314
    %v3721 = vpack.c.b16 %v3469, %v3465
    %v3722 = vpack.c.b16 %v3470, %v3466
    %v3723 = vpack.c.b16 %v3471, %v3467
    %v3724 = vpack.c.b16 %v3472, %v3468
    %v3725 = vpack.c.b16 %v3477, %v3473
    %v3726 = vpack.c.b16 %v3478, %v3474
    %v3727 = vpack.c.b16 %v3479, %v3475
    %v3728 = vpack.c.b16 %v3480, %v3476
    %v3729 = vpack.c.b16 %v3485, %v3481
    %v3730 = vpack.c.b16 %v3486, %v3482
    %v3731 = vpack.c.b16 %v3487, %v3483
    %v3732 = vpack.c.b16 %v3488, %v3484
    %v3733 = vpack.c.b16 %v3493, %v3489
    %v3734 = vpack.c.b16 %v3494, %v3490
    %v3735 = vpack.c.b16 %v3495, %v3491
    %v3736 = vpack.c.b16 %v3496, %v3492
    %v3737 = vpack.c.b16 %v3501, %v3497
    %v3738 = vpack.c.b16 %v3502, %v3498
    %v3739 = vpack.c.b16 %v3503, %v3499
    %v3740 = vpack.c.b16 %v3504, %v3500
    %v3741 = vpack.c.b16 %v3509, %v3505
    %v3742 = vpack.c.b16 %v3510, %v3506
    %v3743 = vpack.c.b16 %v3511, %v3507
    %v3744 = vpack.c.b16 %v3512, %v3508
    %v3745 = vpack.c.b16 %v3517, %v3513
    %v3746 = vpack.c.b16 %v3518, %v3514
    %v3747 = vpack.c.b16 %v3519, %v3515
    %v3748 = vpack.c.b16 %v3520, %v3516
    %v3749 = vpack.c.b16 %v3525, %v3521
    %v3750 = vpack.c.b16 %v3526, %v3522
    %v3751 = vpack.c.b16 %v3527, %v3523
    %v3752 = vpack.c.b16 %v3528, %v3524
    %v3753 = vpack.c.b16 %v3533, %v3529
    %v3754 = vpack.c.b16 %v3534, %v3530
    %v3755 = vpack.c.b16 %v3535, %v3531
    %v3756 = vpack.c.b16 %v3536, %v3532
    %v3757 = vpack.c.b16 %v3541, %v3537
    %v3758 = vpack.c.b16 %v3542, %v3538
    %v3759 = vpack.c.b16 %v3543, %v3539
    %v3760 = vpack.c.b16 %v3544, %v3540
    %v3761 = vpack.c.b16 %v3549, %v3545
    %v3762 = vpack.c.b16 %v3550, %v3546
    %v3763 = vpack.c.b16 %v3551, %v3547
    %v3764 = vpack.c.b16 %v3552, %v3548
    %v3765 = vpack.c.b16 %v3557, %v3553
    %v3766 = vpack.c.b16 %v3558, %v3554
    %v3767 = vpack.c.b16 %v3559, %v3555
    %v3768 = vpack.c.b16 %v3560, %v3556
    %v3769 = vpack.c.b16 %v3565, %v3561
    %v3770 = vpack.c.b16 %v3566, %v3562
    %v3771 = vpack.c.b16 %v3567, %v3563
    %v3772 = vpack.c.b16 %v3568, %v3564
    %v3773 = vpack.c.b16 %v3573, %v3569
    %v3774 = vpack.c.b16 %v3574, %v3570
    %v3775 = vpack.c.b16 %v3575, %v3571
    %v3776 = vpack.c.b16 %v3576, %v3572
    %v3777 = vpack.c.b16 %v3581, %v3577
    %v3778 = vpack.c.b16 %v3582, %v3578
    %v3779 = vpack.c.b16 %v3583, %v3579
    %v3780 = vpack.c.b16 %v3584, %v3580
    %v3781 = vpack.c.b16 %v3589, %v3585
    %v3782 = vpack.c.b16 %v3590, %v3586
    %v3783 = vpack.c.b16 %v3591, %v3587
    %v3784 = vpack.c.b16 %v3592, %v3588
    %v3785 = vpack.c.b16 %v3597, %v3593
    %v3786 = vpack.c.b16 %v3598, %v3594
    %v3787 = vpack.c.b16 %v3599, %v3595
    %v3788 = vpack.c.b16 %v3600, %v3596
    %v3789 = vpack.c.b16 %v3605, %v3601
    %v3790 = vpack.c.b16 %v3606, %v3602
    %v3791 = vpack.c.b16 %v3607, %v3603
    %v3792 = vpack.c.b16 %v3608, %v3604
    %v3793 = vpack.c.b16 %v3613, %v3609
    %v3794 = vpack.c.b16 %v3614, %v3610
    %v3795 = vpack.c.b16 %v3615, %v3611
    %v3796 = vpack.c.b16 %v3616, %v3612
    %v3797 = vpack.c.b16 %v3621, %v3617
    %v3798 = vpack.c.b16 %v3622, %v3618
    %v3799 = vpack.c.b16 %v3623, %v3619
    %v3800 = vpack.c.b16 %v3624, %v3620
    %v3801 = vpack.c.b16 %v3629, %v3625
    %v3802 = vpack.c.b16 %v3630, %v3626
    %v3803 = vpack.c.b16 %v3631, %v3627
    %v3804 = vpack.c.b16 %v3632, %v3628
    %v3805 = vpack.c.b16 %v3637, %v3633
    %v3806 = vpack.c.b16 %v3638, %v3634
    %v3807 = vpack.c.b16 %v3639, %v3635
    %v3808 = vpack.c.b16 %v3640, %v3636
    %v3809 = vpack.c.b16 %v3645, %v3641
    %v3810 = vpack.c.b16 %v3646, %v3642
    %v3811 = vpack.c.b16 %v3647, %v3643
    %v3812 = vpack.c.b16 %v3648, %v3644
    %v3813 = vpack.c.b16 %v3653, %v3649
    %v3814 = vpack.c.b16 %v3654, %v3650
    %v3815 = vpack.c.b16 %v3655, %v3651
    %v3816 = vpack.c.b16 %v3656, %v3652
    %v3817 = vpack.c.b16 %v3661, %v3657
    %v3818 = vpack.c.b16 %v3662, %v3658
    %v3819 = vpack.c.b16 %v3663, %v3659
    %v3820 = vpack.c.b16 %v3664, %v3660
    %v3821 = vpack.c.b16 %v3669, %v3665
    %v3822 = vpack.c.b16 %v3670, %v3666
    %v3823 = vpack.c.b16 %v3671, %v3667
    %v3824 = vpack.c.b16 %v3672, %v3668
    %v3825 = vpack.c.b16 %v3677, %v3673
    %v3826 = vpack.c.b16 %v3678, %v3674
    %v3827 = vpack.c.b16 %v3679, %v3675
    %v3828 = vpack.c.b16 %v3680, %v3676
    %v3829 = vpack.c.b16 %v3685, %v3681
    %v3830 = vpack.c.b16 %v3686, %v3682
    %v3831 = vpack.c.b16 %v3687, %v3683
    %v3832 = vpack.c.b16 %v3688, %v3684
    %v3833 = vpack.c.b16 %v3693, %v3689
    %v3834 = vpack.c.b16 %v3694, %v3690
    %v3835 = vpack.c.b16 %v3695, %v3691
    %v3836 = vpack.c.b16 %v3696, %v3692
    %v3837 = vpack.c.b16 %v3701, %v3697
    %v3838 = vpack.c.b16 %v3702, %v3698
    %v3839 = vpack.c.b16 %v3703, %v3699
    %v3840 = vpack.c.b16 %v3704, %v3700
    %v3841 = vpack.c.b16 %v3709, %v3705
    %v3842 = vpack.c.b16 %v3710, %v3706
    %v3843 = vpack.c.b16 %v3711, %v3707
    %v3844 = vpack.c.b16 %v3712, %v3708
    %v3845 = vpack.c.b16 %v3717, %v3713
    %v3846 = vpack.c.b16 %v3718, %v3714
    %v3847 = vpack.c.b16 %v3719, %v3715
    %v3848 = vpack.c.b16 %v3720, %v3716
    %3977 = vmatprep.subr.bf16.mxu0 %v3722
    %3978 = vmatpush1.bf16.msra.mxu0 %v3721
    %3979 = vmatprep.subr.bf16.mxu0 %v3726
    %3980 = vmatpush1.bf16.msra.mxu0 %v3725
    %3981 = vmatprep.subr.bf16.mxu0 %v3730
    %3982 = vmatpush1.bf16.msra.mxu0 %v3729
    %3983 = vmatprep.subr.bf16.mxu0 %v3734
    %3984 = vmatpush1.bf16.msra.mxu0 %v3733
    %3985 = vmatprep.subr.bf16.mxu0 %v3738
    %3986 = vmatpush1.bf16.msra.mxu0 %v3737
    %3987 = vmatprep.subr.bf16.mxu0 %v3742
    %3988 = vmatpush1.bf16.msra.mxu0 %v3741
    %3989 = vmatprep.subr.bf16.mxu0 %v3746
    %3990 = vmatpush1.bf16.msra.mxu0 %v3745
    %3991 = vmatprep.subr.bf16.mxu0 %v3750
    %3992 = vmatpush1.bf16.msra.mxu0 %v3749
    %3993 = vmatprep.subr.bf16.mxu0 %v3754
    %3994 = vmatpush1.bf16.msra.mxu0 %v3753
    %3995 = vmatprep.subr.bf16.mxu0 %v3758
    %3996 = vmatpush1.bf16.msra.mxu0 %v3757
    %3997 = vmatprep.subr.bf16.mxu0 %v3762
    %3998 = vmatpush1.bf16.msra.mxu0 %v3761
    %3999 = vmatprep.subr.bf16.mxu0 %v3766
    %4000 = vmatpush1.bf16.msra.mxu0 %v3765
    %4001 = vmatprep.subr.bf16.mxu0 %v3770
    %4002 = vmatpush1.bf16.msra.mxu0 %v3769
    %4003 = vmatprep.subr.bf16.mxu0 %v3774
    %4004 = vmatpush1.bf16.msra.mxu0 %v3773
    %4005 = vmatprep.subr.bf16.mxu0 %v3778
    %4006 = vmatpush1.bf16.msra.mxu0 %v3777
    %4007 = vmatprep.subr.bf16.mxu0 %v3782
    %4008 = vmatpush1.bf16.msra.mxu0 %v3781
    %4009 = vmatprep.mubr.bf16.mxu0 %v3184
    %4010 = vmatmul.mubr.bf16.gmra.mrb[0].mxu0 %v3183
    %v4011 = vpop.f32.mrb[0].mxu0
    %v4012 = vadd.f32 %v3320, %v4011
    %v4013 = vpop.f32.mrb[0].mxu0
    %v4014 = vadd.f32 %v3324, %v4013
    %v4015 = vpop.f32.mrb[0].mxu0
    %v4016 = vpop.f32.mrb[0].mxu0
    %4017 = vdwg.mxu0
    %4018 = vmatprep.subr.bf16.mxu0 %v3786
    %4019 = vmatpush1.bf16.msra.mxu0 %v3785
    %4020 = vmatprep.subr.bf16.mxu0 %v3790
    %4021 = vmatpush1.bf16.msra.mxu0 %v3789
    %4022 = vmatprep.subr.bf16.mxu0 %v3794
    %4023 = vmatpush1.bf16.msra.mxu0 %v3793
    %4024 = vmatprep.subr.bf16.mxu0 %v3798
    %4025 = vmatpush1.bf16.msra.mxu0 %v3797
    %4026 = vmatprep.subr.bf16.mxu0 %v3802
    %4027 = vmatpush1.bf16.msra.mxu0 %v3801
    %4028 = vmatprep.subr.bf16.mxu0 %v3806
    %4029 = vmatpush1.bf16.msra.mxu0 %v3805
    %4030 = vmatprep.subr.bf16.mxu0 %v3810
    %4031 = vmatpush1.bf16.msra.mxu0 %v3809
    %4032 = vmatprep.subr.bf16.mxu0 %v3814
    %4033 = vmatpush1.bf16.msra.mxu0 %v3813
    %4034 = vmatprep.subr.bf16.mxu0 %v3818
    %4035 = vmatpush1.bf16.msra.mxu0 %v3817
    %4036 = vmatprep.subr.bf16.mxu0 %v3822
    %4037 = vmatpush1.bf16.msra.mxu0 %v3821
    %4038 = vmatprep.subr.bf16.mxu0 %v3826
    %4039 = vmatpush1.bf16.msra.mxu0 %v3825
    %4040 = vmatprep.subr.bf16.mxu0 %v3830
    %4041 = vmatpush1.bf16.msra.mxu0 %v3829
    %4042 = vmatprep.subr.bf16.mxu0 %v3834
    %4043 = vmatpush1.bf16.msra.mxu0 %v3833
    %4044 = vmatprep.subr.bf16.mxu0 %v3838
    %4045 = vmatpush1.bf16.msra.mxu0 %v3837
    %4046 = vmatprep.subr.bf16.mxu0 %v3842
    %4047 = vmatpush1.bf16.msra.mxu0 %v3841
    %4048 = vmatprep.subr.bf16.mxu0 %v3846
    %4049 = vmatpush1.bf16.msra.mxu0 %v3845
    %4050 = vmatprep.mubr.bf16.mxu0 %v3186
    %4051 = vmatmul.mubr.bf16.gmra.mrb[0].mxu0 %v3185
    %v4052 = vpop.f32.mrb[0].mxu0
    %v4053 = vadd.f32 %v4012, %v4052
    %v4054 = vpop.f32.mrb[0].mxu0
    %v4055 = vadd.f32 %v4014, %v4054
    %v4056 = vpop.f32.mrb[0].mxu0
    %v4057 = vpop.f32.mrb[0].mxu0
    %4058 = vdwg.mxu0
    %4059 = vmatprep.subr.bf16.mxu0 %v3724
    %4060 = vmatpush1.bf16.msra.mxu0 %v3723
    %4061 = vmatprep.subr.bf16.mxu0 %v3728
    %4062 = vmatpush1.bf16.msra.mxu0 %v3727
    %4063 = vmatprep.subr.bf16.mxu0 %v3732
    %4064 = vmatpush1.bf16.msra.mxu0 %v3731
    %4065 = vmatprep.subr.bf16.mxu0 %v3736
    %4066 = vmatpush1.bf16.msra.mxu0 %v3735
    %4067 = vmatprep.subr.bf16.mxu0 %v3740
    %4068 = vmatpush1.bf16.msra.mxu0 %v3739
    %4069 = vmatprep.subr.bf16.mxu0 %v3744
    %4070 = vmatpush1.bf16.msra.mxu0 %v3743
    %4071 = vmatprep.subr.bf16.mxu0 %v3748
    %4072 = vmatpush1.bf16.msra.mxu0 %v3747
    %4073 = vmatprep.subr.bf16.mxu0 %v3752
    %4074 = vmatpush1.bf16.msra.mxu0 %v3751
    %4075 = vmatprep.subr.bf16.mxu0 %v3756
    %4076 = vmatpush1.bf16.msra.mxu0 %v3755
    %4077 = vmatprep.subr.bf16.mxu0 %v3760
    %4078 = vmatpush1.bf16.msra.mxu0 %v3759
    %4079 = vmatprep.subr.bf16.mxu0 %v3764
    %4080 = vmatpush1.bf16.msra.mxu0 %v3763
    %4081 = vmatprep.subr.bf16.mxu0 %v3768
    %4082 = vmatpush1.bf16.msra.mxu0 %v3767
    %4083 = vmatprep.subr.bf16.mxu0 %v3772
    %4084 = vmatpush1.bf16.msra.mxu0 %v3771
    %4085 = vmatprep.subr.bf16.mxu0 %v3776
    %4086 = vmatpush1.bf16.msra.mxu0 %v3775
    %4087 = vmatprep.subr.bf16.mxu0 %v3780
    %4088 = vmatpush1.bf16.msra.mxu0 %v3779
    %4089 = vmatprep.subr.bf16.mxu0 %v3784
    %4090 = vmatpush1.bf16.msra.mxu0 %v3783
    %4091 = vmatprep.mubr.bf16.mxu0 %v3184
    %4092 = vmatmul.mubr.bf16.gmra.mrb[0].mxu0 %v3183
    %v4093 = vpop.f32.mrb[0].mxu0
    %v4094 = vadd.f32 %v3328, %v4093
    %v4095 = vpop.f32.mrb[0].mxu0
    %v4096 = vadd.f32 %v3332, %v4095
    %v4097 = vpop.f32.mrb[0].mxu0
    %v4098 = vpop.f32.mrb[0].mxu0
    %4099 = vdwg.mxu0
    %4100 = vmatprep.subr.bf16.mxu0 %v3788
    %4101 = vmatpush1.bf16.msra.mxu0 %v3787
    %4102 = vmatprep.subr.bf16.mxu0 %v3792
    %4103 = vmatpush1.bf16.msra.mxu0 %v3791
    %4104 = vmatprep.subr.bf16.mxu0 %v3796
    %4105 = vmatpush1.bf16.msra.mxu0 %v3795
    %4106 = vmatprep.subr.bf16.mxu0 %v3800
    %4107 = vmatpush1.bf16.msra.mxu0 %v3799
    %4108 = vmatprep.subr.bf16.mxu0 %v3804
    %4109 = vmatpush1.bf16.msra.mxu0 %v3803
    %4110 = vmatprep.subr.bf16.mxu0 %v3808
    %4111 = vmatpush1.bf16.msra.mxu0 %v3807
    %4112 = vmatprep.subr.bf16.mxu0 %v3812
    %4113 = vmatpush1.bf16.msra.mxu0 %v3811
    %4114 = vmatprep.subr.bf16.mxu0 %v3816
    %4115 = vmatpush1.bf16.msra.mxu0 %v3815
    %4116 = vmatprep.subr.bf16.mxu0 %v3820
    %4117 = vmatpush1.bf16.msra.mxu0 %v3819
    %4118 = vmatprep.subr.bf16.mxu0 %v3824
    %4119 = vmatpush1.bf16.msra.mxu0 %v3823
    %4120 = vmatprep.subr.bf16.mxu0 %v3828
    %4121 = vmatpush1.bf16.msra.mxu0 %v3827
    %4122 = vmatprep.subr.bf16.mxu0 %v3832
    %4123 = vmatpush1.bf16.msra.mxu0 %v3831
    %4124 = vmatprep.subr.bf16.mxu0 %v3836
    %4125 = vmatpush1.bf16.msra.mxu0 %v3835
    %4126 = vmatprep.subr.bf16.mxu0 %v3840
    %4127 = vmatpush1.bf16.msra.mxu0 %v3839
    %4128 = vmatprep.subr.bf16.mxu0 %v3844
    %4129 = vmatpush1.bf16.msra.mxu0 %v3843
    %4130 = vmatprep.subr.bf16.mxu0 %v3848
    %4131 = vmatpush1.bf16.msra.mxu0 %v3847
    %4132 = vmatprep.mubr.bf16.mxu0 %v3186
    %4133 = vmatmul.mubr.bf16.gmra.mrb[0].mxu0 %v3185
    %v4134 = vpop.f32.mrb[0].mxu0
    %v4135 = vadd.f32 %v4094, %v4134
    %v4136 = vpop.f32.mrb[0].mxu0
    %v4137 = vadd.f32 %v4096, %v4136
    %v4138 = vpop.f32.mrb[0].mxu0
    %v4139 = vpop.f32.mrb[0].mxu0
    %4140 = vdwg.mxu0
    %v4141 = vmax.f32 %v4053, 0.0
    %v4142 = vmax.f32 %v4055, 0.0
    %v4143 = vmax.f32 %v4135, 0.0
    %v4144 = vmax.f32 %v4137, 0.0
    %v4145 = vpack.c.bf16 %v4141, %v4141
    %v4146 = vpack.c.bf16 %v4142, %v4142
    %v4147 = vpack.c.bf16 %v4143, %v4143
    %v4148 = vpack.c.bf16 %v4144, %v4144
    %v4149 = vld [vmem:[#allocation13] sm:$0xff]
    %v4150 = vld [vmem:[#allocation13 + $0x8] sm:$0xff]
    %v4151 = vld [vmem:[#allocation13 + $0x10] sm:$0xff]
    %v4152 = vld [vmem:[#allocation13 + $0x18] sm:$0xff]
    %v4153 = vld [vmem:[#allocation13 + $0x20] sm:$0xff]
    %v4154 = vld [vmem:[#allocation13 + $0x28] sm:$0xff]
    %v4155 = vld [vmem:[#allocation13 + $0x30] sm:$0xff]
    %v4156 = vld [vmem:[#allocation13 + $0x38] sm:$0xff]
    %v4157 = vld [vmem:[#allocation13 + $0x40] sm:$0xff]
    %v4158 = vld [vmem:[#allocation13 + $0x48] sm:$0xff]
    %v4159 = vld [vmem:[#allocation13 + $0x50] sm:$0xff]
    %v4160 = vld [vmem:[#allocation13 + $0x58] sm:$0xff]
    %v4161 = vld [vmem:[#allocation13 + $0x60] sm:$0xff]
    %v4162 = vld [vmem:[#allocation13 + $0x68] sm:$0xff]
    %v4163 = vld [vmem:[#allocation13 + $0x70] sm:$0xff]
    %v4164 = vld [vmem:[#allocation13 + $0x78] sm:$0xff]
    %v4165 = vld [vmem:[#allocation13 + $0x80] sm:$0xff]
    %v4166 = vld [vmem:[#allocation13 + $0x88] sm:$0xff]
    %v4167 = vld [vmem:[#allocation13 + $0x90] sm:$0xff]
    %v4168 = vld [vmem:[#allocation13 + $0x98] sm:$0xff]
    %v4169 = vld [vmem:[#allocation13 + $0xa0] sm:$0xff]
    %v4170 = vld [vmem:[#allocation13 + $0xa8] sm:$0xff]
    %v4171 = vld [vmem:[#allocation13 + $0xb0] sm:$0xff]
    %v4172 = vld [vmem:[#allocation13 + $0xb8] sm:$0xff]
    %v4173 = vld [vmem:[#allocation13 + $0xc0] sm:$0xff]
    %v4174 = vld [vmem:[#allocation13 + $0xc8] sm:$0xff]
    %v4175 = vld [vmem:[#allocation13 + $0xd0] sm:$0xff]
    %v4176 = vld [vmem:[#allocation13 + $0xd8] sm:$0xff]
    %v4177 = vld [vmem:[#allocation13 + $0xe0] sm:$0xff]
    %v4178 = vld [vmem:[#allocation13 + $0xe8] sm:$0xff]
    %v4179 = vld [vmem:[#allocation13 + $0xf0] sm:$0xff]
    %v4180 = vld [vmem:[#allocation13 + $0xf8] sm:$0xff]
    %v4181 = vld [vmem:[#allocation13 + $0x100] sm:$0xff]
    %v4182 = vld [vmem:[#allocation13 + $0x108] sm:$0xff]
    %v4183 = vld [vmem:[#allocation13 + $0x110] sm:$0xff]
    %v4184 = vld [vmem:[#allocation13 + $0x118] sm:$0xff]
    %v4185 = vld [vmem:[#allocation13 + $0x120] sm:$0xff]
    %v4186 = vld [vmem:[#allocation13 + $0x128] sm:$0xff]
    %v4187 = vld [vmem:[#allocation13 + $0x130] sm:$0xff]
    %v4188 = vld [vmem:[#allocation13 + $0x138] sm:$0xff]
    %v4189 = vld [vmem:[#allocation13 + $0x140] sm:$0xff]
    %v4190 = vld [vmem:[#allocation13 + $0x148] sm:$0xff]
    %v4191 = vld [vmem:[#allocation13 + $0x150] sm:$0xff]
    %v4192 = vld [vmem:[#allocation13 + $0x158] sm:$0xff]
    %v4193 = vld [vmem:[#allocation13 + $0x160] sm:$0xff]
    %v4194 = vld [vmem:[#allocation13 + $0x168] sm:$0xff]
    %v4195 = vld [vmem:[#allocation13 + $0x170] sm:$0xff]
    %v4196 = vld [vmem:[#allocation13 + $0x178] sm:$0xff]
    %v4197 = vld [vmem:[#allocation13 + $0x180] sm:$0xff]
    %v4198 = vld [vmem:[#allocation13 + $0x188] sm:$0xff]
    %v4199 = vld [vmem:[#allocation13 + $0x190] sm:$0xff]
    %v4200 = vld [vmem:[#allocation13 + $0x198] sm:$0xff]
    %v4201 = vld [vmem:[#allocation13 + $0x1a0] sm:$0xff]
    %v4202 = vld [vmem:[#allocation13 + $0x1a8] sm:$0xff]
    %v4203 = vld [vmem:[#allocation13 + $0x1b0] sm:$0xff]
    %v4204 = vld [vmem:[#allocation13 + $0x1b8] sm:$0xff]
    %v4205 = vld [vmem:[#allocation13 + $0x1c0] sm:$0xff]
    %v4206 = vld [vmem:[#allocation13 + $0x1c8] sm:$0xff]
    %v4207 = vld [vmem:[#allocation13 + $0x1d0] sm:$0xff]
    %v4208 = vld [vmem:[#allocation13 + $0x1d8] sm:$0xff]
    %v4209 = vld [vmem:[#allocation13 + $0x1e0] sm:$0xff]
    %v4210 = vld [vmem:[#allocation13 + $0x1e8] sm:$0xff]
    %v4211 = vld [vmem:[#allocation13 + $0x1f0] sm:$0xff]
    %v4212 = vld [vmem:[#allocation13 + $0x1f8] sm:$0xff]
    %v4213 = vld [vmem:[#allocation13 + $0x200] sm:$0xff]
    %v4214 = vld [vmem:[#allocation13 + $0x208] sm:$0xff]
    %v4215 = vld [vmem:[#allocation13 + $0x210] sm:$0xff]
    %v4216 = vld [vmem:[#allocation13 + $0x218] sm:$0xff]
    %v4217 = vld [vmem:[#allocation13 + $0x220] sm:$0xff]
    %v4218 = vld [vmem:[#allocation13 + $0x228] sm:$0xff]
    %v4219 = vld [vmem:[#allocation13 + $0x230] sm:$0xff]
    %v4220 = vld [vmem:[#allocation13 + $0x238] sm:$0xff]
    %v4221 = vld [vmem:[#allocation13 + $0x240] sm:$0xff]
    %v4222 = vld [vmem:[#allocation13 + $0x248] sm:$0xff]
    %v4223 = vld [vmem:[#allocation13 + $0x250] sm:$0xff]
    %v4224 = vld [vmem:[#allocation13 + $0x258] sm:$0xff]
    %v4225 = vld [vmem:[#allocation13 + $0x260] sm:$0xff]
    %v4226 = vld [vmem:[#allocation13 + $0x268] sm:$0xff]
    %v4227 = vld [vmem:[#allocation13 + $0x270] sm:$0xff]
    %v4228 = vld [vmem:[#allocation13 + $0x278] sm:$0xff]
    %v4229 = vld [vmem:[#allocation13 + $0x280] sm:$0xff]
    %v4230 = vld [vmem:[#allocation13 + $0x288] sm:$0xff]
    %v4231 = vld [vmem:[#allocation13 + $0x290] sm:$0xff]
    %v4232 = vld [vmem:[#allocation13 + $0x298] sm:$0xff]
    %v4233 = vld [vmem:[#allocation13 + $0x2a0] sm:$0xff]
    %v4234 = vld [vmem:[#allocation13 + $0x2a8] sm:$0xff]
    %v4235 = vld [vmem:[#allocation13 + $0x2b0] sm:$0xff]
    %v4236 = vld [vmem:[#allocation13 + $0x2b8] sm:$0xff]
    %v4237 = vld [vmem:[#allocation13 + $0x2c0] sm:$0xff]
    %v4238 = vld [vmem:[#allocation13 + $0x2c8] sm:$0xff]
    %v4239 = vld [vmem:[#allocation13 + $0x2d0] sm:$0xff]
    %v4240 = vld [vmem:[#allocation13 + $0x2d8] sm:$0xff]
    %v4241 = vld [vmem:[#allocation13 + $0x2e0] sm:$0xff]
    %v4242 = vld [vmem:[#allocation13 + $0x2e8] sm:$0xff]
    %v4243 = vld [vmem:[#allocation13 + $0x2f0] sm:$0xff]
    %v4244 = vld [vmem:[#allocation13 + $0x2f8] sm:$0xff]
    %v4245 = vld [vmem:[#allocation13 + $0x300] sm:$0xff]
    %v4246 = vld [vmem:[#allocation13 + $0x308] sm:$0xff]
    %v4247 = vld [vmem:[#allocation13 + $0x310] sm:$0xff]
    %v4248 = vld [vmem:[#allocation13 + $0x318] sm:$0xff]
    %v4249 = vld [vmem:[#allocation13 + $0x320] sm:$0xff]
    %v4250 = vld [vmem:[#allocation13 + $0x328] sm:$0xff]
    %v4251 = vld [vmem:[#allocation13 + $0x330] sm:$0xff]
    %v4252 = vld [vmem:[#allocation13 + $0x338] sm:$0xff]
    %v4253 = vld [vmem:[#allocation13 + $0x340] sm:$0xff]
    %v4254 = vld [vmem:[#allocation13 + $0x348] sm:$0xff]
    %v4255 = vld [vmem:[#allocation13 + $0x350] sm:$0xff]
    %v4256 = vld [vmem:[#allocation13 + $0x358] sm:$0xff]
    %v4257 = vld [vmem:[#allocation13 + $0x360] sm:$0xff]
    %v4258 = vld [vmem:[#allocation13 + $0x368] sm:$0xff]
    %v4259 = vld [vmem:[#allocation13 + $0x370] sm:$0xff]
    %v4260 = vld [vmem:[#allocation13 + $0x378] sm:$0xff]
    %v4261 = vld [vmem:[#allocation13 + $0x380] sm:$0xff]
    %v4262 = vld [vmem:[#allocation13 + $0x388] sm:$0xff]
    %v4263 = vld [vmem:[#allocation13 + $0x390] sm:$0xff]
    %v4264 = vld [vmem:[#allocation13 + $0x398] sm:$0xff]
    %v4265 = vld [vmem:[#allocation13 + $0x3a0] sm:$0xff]
    %v4266 = vld [vmem:[#allocation13 + $0x3a8] sm:$0xff]
    %v4267 = vld [vmem:[#allocation13 + $0x3b0] sm:$0xff]
    %v4268 = vld [vmem:[#allocation13 + $0x3b8] sm:$0xff]
    %v4269 = vld [vmem:[#allocation13 + $0x3c0] sm:$0xff]
    %v4270 = vld [vmem:[#allocation13 + $0x3c8] sm:$0xff]
    %v4271 = vld [vmem:[#allocation13 + $0x3d0] sm:$0xff]
    %v4272 = vld [vmem:[#allocation13 + $0x3d8] sm:$0xff]
    %v4273 = vld [vmem:[#allocation13 + $0x3e0] sm:$0xff]
    %v4274 = vld [vmem:[#allocation13 + $0x3e8] sm:$0xff]
    %v4275 = vld [vmem:[#allocation13 + $0x3f0] sm:$0xff]
    %v4276 = vld [vmem:[#allocation13 + $0x3f8] sm:$0xff]
    %v4277 = vld [vmem:[%s12] sm:$0xf]
    %v4279 = vlaneseq
    %v4280 = vshrl.u32 %v4279, 7
    %v4281 = vsub.s32 0, %v4280
    %v4282 = vrot.slane %v4277, %v4281
    %v4283 = vlaneseq
    %v4284 = vshrl.u32 %v4283, 7
    %v4285 = vsub.s32 1, %v4284
    %v4286 = vrot.slane %v4277, %v4285
    %v4287 = vlaneseq
    %v4288 = vshrl.u32 %v4287, 7
    %v4289 = vsub.s32 2, %v4288
    %v4290 = vrot.slane %v4277, %v4289
    %v4291 = vlaneseq
    %v4292 = vshrl.u32 %v4291, 7
    %v4293 = vsub.s32 3, %v4292
    %v4294 = vrot.slane %v4277, %v4293
    %v4427 = vunpack.c.l.b16 %v4149
    %v4428 = vunpack.c.h.b16 %v4149
    %v4429 = vunpack.c.l.b16 %v4150
    %v4430 = vunpack.c.h.b16 %v4150
    %v4431 = vunpack.c.l.b16 %v4151
    %v4432 = vunpack.c.h.b16 %v4151
    %v4433 = vunpack.c.l.b16 %v4152
    %v4434 = vunpack.c.h.b16 %v4152
    %v4435 = vunpack.c.l.b16 %v4153
    %v4436 = vunpack.c.h.b16 %v4153
    %v4437 = vunpack.c.l.b16 %v4154
    %v4438 = vunpack.c.h.b16 %v4154
    %v4439 = vunpack.c.l.b16 %v4155
    %v4440 = vunpack.c.h.b16 %v4155
    %v4441 = vunpack.c.l.b16 %v4156
    %v4442 = vunpack.c.h.b16 %v4156
    %v4443 = vunpack.c.l.b16 %v4157
    %v4444 = vunpack.c.h.b16 %v4157
    %v4445 = vunpack.c.l.b16 %v4158
    %v4446 = vunpack.c.h.b16 %v4158
    %v4447 = vunpack.c.l.b16 %v4159
    %v4448 = vunpack.c.h.b16 %v4159
    %v4449 = vunpack.c.l.b16 %v4160
    %v4450 = vunpack.c.h.b16 %v4160
    %v4451 = vunpack.c.l.b16 %v4161
    %v4452 = vunpack.c.h.b16 %v4161
    %v4453 = vunpack.c.l.b16 %v4162
    %v4454 = vunpack.c.h.b16 %v4162
    %v4455 = vunpack.c.l.b16 %v4163
    %v4456 = vunpack.c.h.b16 %v4163
    %v4457 = vunpack.c.l.b16 %v4164
    %v4458 = vunpack.c.h.b16 %v4164
    %v4459 = vunpack.c.l.b16 %v4165
    %v4460 = vunpack.c.h.b16 %v4165
    %v4461 = vunpack.c.l.b16 %v4166
    %v4462 = vunpack.c.h.b16 %v4166
    %v4463 = vunpack.c.l.b16 %v4167
    %v4464 = vunpack.c.h.b16 %v4167
    %v4465 = vunpack.c.l.b16 %v4168
    %v4466 = vunpack.c.h.b16 %v4168
    %v4467 = vunpack.c.l.b16 %v4169
    %v4468 = vunpack.c.h.b16 %v4169
    %v4469 = vunpack.c.l.b16 %v4170
    %v4470 = vunpack.c.h.b16 %v4170
    %v4471 = vunpack.c.l.b16 %v4171
    %v4472 = vunpack.c.h.b16 %v4171
    %v4473 = vunpack.c.l.b16 %v4172
    %v4474 = vunpack.c.h.b16 %v4172
    %v4475 = vunpack.c.l.b16 %v4173
    %v4476 = vunpack.c.h.b16 %v4173
    %v4477 = vunpack.c.l.b16 %v4174
    %v4478 = vunpack.c.h.b16 %v4174
    %v4479 = vunpack.c.l.b16 %v4175
    %v4480 = vunpack.c.h.b16 %v4175
    %v4481 = vunpack.c.l.b16 %v4176
    %v4482 = vunpack.c.h.b16 %v4176
    %v4483 = vunpack.c.l.b16 %v4177
    %v4484 = vunpack.c.h.b16 %v4177
    %v4485 = vunpack.c.l.b16 %v4178
    %v4486 = vunpack.c.h.b16 %v4178
    %v4487 = vunpack.c.l.b16 %v4179
    %v4488 = vunpack.c.h.b16 %v4179
    %v4489 = vunpack.c.l.b16 %v4180
    %v4490 = vunpack.c.h.b16 %v4180
    %v4491 = vunpack.c.l.b16 %v4181
    %v4492 = vunpack.c.h.b16 %v4181
    %v4493 = vunpack.c.l.b16 %v4182
    %v4494 = vunpack.c.h.b16 %v4182
    %v4495 = vunpack.c.l.b16 %v4183
    %v4496 = vunpack.c.h.b16 %v4183
    %v4497 = vunpack.c.l.b16 %v4184
    %v4498 = vunpack.c.h.b16 %v4184
    %v4499 = vunpack.c.l.b16 %v4185
    %v4500 = vunpack.c.h.b16 %v4185
    %v4501 = vunpack.c.l.b16 %v4186
    %v4502 = vunpack.c.h.b16 %v4186
    %v4503 = vunpack.c.l.b16 %v4187
    %v4504 = vunpack.c.h.b16 %v4187
    %v4505 = vunpack.c.l.b16 %v4188
    %v4506 = vunpack.c.h.b16 %v4188
    %v4507 = vunpack.c.l.b16 %v4189
    %v4508 = vunpack.c.h.b16 %v4189
    %v4509 = vunpack.c.l.b16 %v4190
    %v4510 = vunpack.c.h.b16 %v4190
    %v4511 = vunpack.c.l.b16 %v4191
    %v4512 = vunpack.c.h.b16 %v4191
    %v4513 = vunpack.c.l.b16 %v4192
    %v4514 = vunpack.c.h.b16 %v4192
    %v4515 = vunpack.c.l.b16 %v4193
    %v4516 = vunpack.c.h.b16 %v4193
    %v4517 = vunpack.c.l.b16 %v4194
    %v4518 = vunpack.c.h.b16 %v4194
    %v4519 = vunpack.c.l.b16 %v4195
    %v4520 = vunpack.c.h.b16 %v4195
    %v4521 = vunpack.c.l.b16 %v4196
    %v4522 = vunpack.c.h.b16 %v4196
    %v4523 = vunpack.c.l.b16 %v4197
    %v4524 = vunpack.c.h.b16 %v4197
    %v4525 = vunpack.c.l.b16 %v4198
    %v4526 = vunpack.c.h.b16 %v4198
    %v4527 = vunpack.c.l.b16 %v4199
    %v4528 = vunpack.c.h.b16 %v4199
    %v4529 = vunpack.c.l.b16 %v4200
    %v4530 = vunpack.c.h.b16 %v4200
    %v4531 = vunpack.c.l.b16 %v4201
    %v4532 = vunpack.c.h.b16 %v4201
    %v4533 = vunpack.c.l.b16 %v4202
    %v4534 = vunpack.c.h.b16 %v4202
    %v4535 = vunpack.c.l.b16 %v4203
    %v4536 = vunpack.c.h.b16 %v4203
    %v4537 = vunpack.c.l.b16 %v4204
    %v4538 = vunpack.c.h.b16 %v4204
    %v4539 = vunpack.c.l.b16 %v4205
    %v4540 = vunpack.c.h.b16 %v4205
    %v4541 = vunpack.c.l.b16 %v4206
    %v4542 = vunpack.c.h.b16 %v4206
    %v4543 = vunpack.c.l.b16 %v4207
    %v4544 = vunpack.c.h.b16 %v4207
    %v4545 = vunpack.c.l.b16 %v4208
    %v4546 = vunpack.c.h.b16 %v4208
    %v4547 = vunpack.c.l.b16 %v4209
    %v4548 = vunpack.c.h.b16 %v4209
    %v4549 = vunpack.c.l.b16 %v4210
    %v4550 = vunpack.c.h.b16 %v4210
    %v4551 = vunpack.c.l.b16 %v4211
    %v4552 = vunpack.c.h.b16 %v4211
    %v4553 = vunpack.c.l.b16 %v4212
    %v4554 = vunpack.c.h.b16 %v4212
    %v4555 = vunpack.c.l.b16 %v4213
    %v4556 = vunpack.c.h.b16 %v4213
    %v4557 = vunpack.c.l.b16 %v4214
    %v4558 = vunpack.c.h.b16 %v4214
    %v4559 = vunpack.c.l.b16 %v4215
    %v4560 = vunpack.c.h.b16 %v4215
    %v4561 = vunpack.c.l.b16 %v4216
    %v4562 = vunpack.c.h.b16 %v4216
    %v4563 = vunpack.c.l.b16 %v4217
    %v4564 = vunpack.c.h.b16 %v4217
    %v4565 = vunpack.c.l.b16 %v4218
    %v4566 = vunpack.c.h.b16 %v4218
    %v4567 = vunpack.c.l.b16 %v4219
    %v4568 = vunpack.c.h.b16 %v4219
    %v4569 = vunpack.c.l.b16 %v4220
    %v4570 = vunpack.c.h.b16 %v4220
    %v4571 = vunpack.c.l.b16 %v4221
    %v4572 = vunpack.c.h.b16 %v4221
    %v4573 = vunpack.c.l.b16 %v4222
    %v4574 = vunpack.c.h.b16 %v4222
    %v4575 = vunpack.c.l.b16 %v4223
    %v4576 = vunpack.c.h.b16 %v4223
    %v4577 = vunpack.c.l.b16 %v4224
    %v4578 = vunpack.c.h.b16 %v4224
    %v4579 = vunpack.c.l.b16 %v4225
    %v4580 = vunpack.c.h.b16 %v4225
    %v4581 = vunpack.c.l.b16 %v4226
    %v4582 = vunpack.c.h.b16 %v4226
    %v4583 = vunpack.c.l.b16 %v4227
    %v4584 = vunpack.c.h.b16 %v4227
    %v4585 = vunpack.c.l.b16 %v4228
    %v4586 = vunpack.c.h.b16 %v4228
    %v4587 = vunpack.c.l.b16 %v4229
    %v4588 = vunpack.c.h.b16 %v4229
    %v4589 = vunpack.c.l.b16 %v4230
    %v4590 = vunpack.c.h.b16 %v4230
    %v4591 = vunpack.c.l.b16 %v4231
    %v4592 = vunpack.c.h.b16 %v4231
    %v4593 = vunpack.c.l.b16 %v4232
    %v4594 = vunpack.c.h.b16 %v4232
    %v4595 = vunpack.c.l.b16 %v4233
    %v4596 = vunpack.c.h.b16 %v4233
    %v4597 = vunpack.c.l.b16 %v4234
    %v4598 = vunpack.c.h.b16 %v4234
    %v4599 = vunpack.c.l.b16 %v4235
    %v4600 = vunpack.c.h.b16 %v4235
    %v4601 = vunpack.c.l.b16 %v4236
    %v4602 = vunpack.c.h.b16 %v4236
    %v4603 = vunpack.c.l.b16 %v4237
    %v4604 = vunpack.c.h.b16 %v4237
    %v4605 = vunpack.c.l.b16 %v4238
    %v4606 = vunpack.c.h.b16 %v4238
    %v4607 = vunpack.c.l.b16 %v4239
    %v4608 = vunpack.c.h.b16 %v4239
    %v4609 = vunpack.c.l.b16 %v4240
    %v4610 = vunpack.c.h.b16 %v4240
    %v4611 = vunpack.c.l.b16 %v4241
    %v4612 = vunpack.c.h.b16 %v4241
    %v4613 = vunpack.c.l.b16 %v4242
    %v4614 = vunpack.c.h.b16 %v4242
    %v4615 = vunpack.c.l.b16 %v4243
    %v4616 = vunpack.c.h.b16 %v4243
    %v4617 = vunpack.c.l.b16 %v4244
    %v4618 = vunpack.c.h.b16 %v4244
    %v4619 = vunpack.c.l.b16 %v4245
    %v4620 = vunpack.c.h.b16 %v4245
    %v4621 = vunpack.c.l.b16 %v4246
    %v4622 = vunpack.c.h.b16 %v4246
    %v4623 = vunpack.c.l.b16 %v4247
    %v4624 = vunpack.c.h.b16 %v4247
    %v4625 = vunpack.c.l.b16 %v4248
    %v4626 = vunpack.c.h.b16 %v4248
    %v4627 = vunpack.c.l.b16 %v4249
    %v4628 = vunpack.c.h.b16 %v4249
    %v4629 = vunpack.c.l.b16 %v4250
    %v4630 = vunpack.c.h.b16 %v4250
    %v4631 = vunpack.c.l.b16 %v4251
    %v4632 = vunpack.c.h.b16 %v4251
    %v4633 = vunpack.c.l.b16 %v4252
    %v4634 = vunpack.c.h.b16 %v4252
    %v4635 = vunpack.c.l.b16 %v4253
    %v4636 = vunpack.c.h.b16 %v4253
    %v4637 = vunpack.c.l.b16 %v4254
    %v4638 = vunpack.c.h.b16 %v4254
    %v4639 = vunpack.c.l.b16 %v4255
    %v4640 = vunpack.c.h.b16 %v4255
    %v4641 = vunpack.c.l.b16 %v4256
    %v4642 = vunpack.c.h.b16 %v4256
    %v4643 = vunpack.c.l.b16 %v4257
    %v4644 = vunpack.c.h.b16 %v4257
    %v4645 = vunpack.c.l.b16 %v4258
    %v4646 = vunpack.c.h.b16 %v4258
    %v4647 = vunpack.c.l.b16 %v4259
    %v4648 = vunpack.c.h.b16 %v4259
    %v4649 = vunpack.c.l.b16 %v4260
    %v4650 = vunpack.c.h.b16 %v4260
    %v4651 = vunpack.c.l.b16 %v4261
    %v4652 = vunpack.c.h.b16 %v4261
    %v4653 = vunpack.c.l.b16 %v4262
    %v4654 = vunpack.c.h.b16 %v4262
    %v4655 = vunpack.c.l.b16 %v4263
    %v4656 = vunpack.c.h.b16 %v4263
    %v4657 = vunpack.c.l.b16 %v4264
    %v4658 = vunpack.c.h.b16 %v4264
    %v4659 = vunpack.c.l.b16 %v4265
    %v4660 = vunpack.c.h.b16 %v4265
    %v4661 = vunpack.c.l.b16 %v4266
    %v4662 = vunpack.c.h.b16 %v4266
    %v4663 = vunpack.c.l.b16 %v4267
    %v4664 = vunpack.c.h.b16 %v4267
    %v4665 = vunpack.c.l.b16 %v4268
    %v4666 = vunpack.c.h.b16 %v4268
    %v4667 = vunpack.c.l.b16 %v4269
    %v4668 = vunpack.c.h.b16 %v4269
    %v4669 = vunpack.c.l.b16 %v4270
    %v4670 = vunpack.c.h.b16 %v4270
    %v4671 = vunpack.c.l.b16 %v4271
    %v4672 = vunpack.c.h.b16 %v4271
    %v4673 = vunpack.c.l.b16 %v4272
    %v4674 = vunpack.c.h.b16 %v4272
    %v4675 = vunpack.c.l.b16 %v4273
    %v4676 = vunpack.c.h.b16 %v4273
    %v4677 = vunpack.c.l.b16 %v4274
    %v4678 = vunpack.c.h.b16 %v4274
    %v4679 = vunpack.c.l.b16 %v4275
    %v4680 = vunpack.c.h.b16 %v4275
    %v4681 = vunpack.c.l.b16 %v4276
    %v4682 = vunpack.c.h.b16 %v4276
    %v4683 = vpack.c.b16 %v4431, %v4427
    %v4684 = vpack.c.b16 %v4432, %v4428
    %v4685 = vpack.c.b16 %v4433, %v4429
    %v4686 = vpack.c.b16 %v4434, %v4430
    %v4687 = vpack.c.b16 %v4439, %v4435
    %v4688 = vpack.c.b16 %v4440, %v4436
    %v4689 = vpack.c.b16 %v4441, %v4437
    %v4690 = vpack.c.b16 %v4442, %v4438
    %v4691 = vpack.c.b16 %v4447, %v4443
    %v4692 = vpack.c.b16 %v4448, %v4444
    %v4693 = vpack.c.b16 %v4449, %v4445
    %v4694 = vpack.c.b16 %v4450, %v4446
    %v4695 = vpack.c.b16 %v4455, %v4451
    %v4696 = vpack.c.b16 %v4456, %v4452
    %v4697 = vpack.c.b16 %v4457, %v4453
    %v4698 = vpack.c.b16 %v4458, %v4454
    %v4699 = vpack.c.b16 %v4463, %v4459
    %v4700 = vpack.c.b16 %v4464, %v4460
    %v4701 = vpack.c.b16 %v4465, %v4461
    %v4702 = vpack.c.b16 %v4466, %v4462
    %v4703 = vpack.c.b16 %v4471, %v4467
    %v4704 = vpack.c.b16 %v4472, %v4468
    %v4705 = vpack.c.b16 %v4473, %v4469
    %v4706 = vpack.c.b16 %v4474, %v4470
    %v4707 = vpack.c.b16 %v4479, %v4475
    %v4708 = vpack.c.b16 %v4480, %v4476
    %v4709 = vpack.c.b16 %v4481, %v4477
    %v4710 = vpack.c.b16 %v4482, %v4478
    %v4711 = vpack.c.b16 %v4487, %v4483
    %v4712 = vpack.c.b16 %v4488, %v4484
    %v4713 = vpack.c.b16 %v4489, %v4485
    %v4714 = vpack.c.b16 %v4490, %v4486
    %v4715 = vpack.c.b16 %v4495, %v4491
    %v4716 = vpack.c.b16 %v4496, %v4492
    %v4717 = vpack.c.b16 %v4497, %v4493
    %v4718 = vpack.c.b16 %v4498, %v4494
    %v4719 = vpack.c.b16 %v4503, %v4499
    %v4720 = vpack.c.b16 %v4504, %v4500
    %v4721 = vpack.c.b16 %v4505, %v4501
    %v4722 = vpack.c.b16 %v4506, %v4502
    %v4723 = vpack.c.b16 %v4511, %v4507
    %v4724 = vpack.c.b16 %v4512, %v4508
    %v4725 = vpack.c.b16 %v4513, %v4509
    %v4726 = vpack.c.b16 %v4514, %v4510
    %v4727 = vpack.c.b16 %v4519, %v4515
    %v4728 = vpack.c.b16 %v4520, %v4516
    %v4729 = vpack.c.b16 %v4521, %v4517
    %v4730 = vpack.c.b16 %v4522, %v4518
    %v4731 = vpack.c.b16 %v4527, %v4523
    %v4732 = vpack.c.b16 %v4528, %v4524
    %v4733 = vpack.c.b16 %v4529, %v4525
    %v4734 = vpack.c.b16 %v4530, %v4526
    %v4735 = vpack.c.b16 %v4535, %v4531
    %v4736 = vpack.c.b16 %v4536, %v4532
    %v4737 = vpack.c.b16 %v4537, %v4533
    %v4738 = vpack.c.b16 %v4538, %v4534
    %v4739 = vpack.c.b16 %v4543, %v4539
    %v4740 = vpack.c.b16 %v4544, %v4540
    %v4741 = vpack.c.b16 %v4545, %v4541
    %v4742 = vpack.c.b16 %v4546, %v4542
    %v4743 = vpack.c.b16 %v4551, %v4547
    %v4744 = vpack.c.b16 %v4552, %v4548
    %v4745 = vpack.c.b16 %v4553, %v4549
    %v4746 = vpack.c.b16 %v4554, %v4550
    %v4747 = vpack.c.b16 %v4559, %v4555
    %v4748 = vpack.c.b16 %v4560, %v4556
    %v4749 = vpack.c.b16 %v4561, %v4557
    %v4750 = vpack.c.b16 %v4562, %v4558
    %v4751 = vpack.c.b16 %v4567, %v4563
    %v4752 = vpack.c.b16 %v4568, %v4564
    %v4753 = vpack.c.b16 %v4569, %v4565
    %v4754 = vpack.c.b16 %v4570, %v4566
    %v4755 = vpack.c.b16 %v4575, %v4571
    %v4756 = vpack.c.b16 %v4576, %v4572
    %v4757 = vpack.c.b16 %v4577, %v4573
    %v4758 = vpack.c.b16 %v4578, %v4574
    %v4759 = vpack.c.b16 %v4583, %v4579
    %v4760 = vpack.c.b16 %v4584, %v4580
    %v4761 = vpack.c.b16 %v4585, %v4581
    %v4762 = vpack.c.b16 %v4586, %v4582
    %v4763 = vpack.c.b16 %v4591, %v4587
    %v4764 = vpack.c.b16 %v4592, %v4588
    %v4765 = vpack.c.b16 %v4593, %v4589
    %v4766 = vpack.c.b16 %v4594, %v4590
    %v4767 = vpack.c.b16 %v4599, %v4595
    %v4768 = vpack.c.b16 %v4600, %v4596
    %v4769 = vpack.c.b16 %v4601, %v4597
    %v4770 = vpack.c.b16 %v4602, %v4598
    %v4771 = vpack.c.b16 %v4607, %v4603
    %v4772 = vpack.c.b16 %v4608, %v4604
    %v4773 = vpack.c.b16 %v4609, %v4605
    %v4774 = vpack.c.b16 %v4610, %v4606
    %v4775 = vpack.c.b16 %v4615, %v4611
    %v4776 = vpack.c.b16 %v4616, %v4612
    %v4777 = vpack.c.b16 %v4617, %v4613
    %v4778 = vpack.c.b16 %v4618, %v4614
    %v4779 = vpack.c.b16 %v4623, %v4619
    %v4780 = vpack.c.b16 %v4624, %v4620
    %v4781 = vpack.c.b16 %v4625, %v4621
    %v4782 = vpack.c.b16 %v4626, %v4622
    %v4783 = vpack.c.b16 %v4631, %v4627
    %v4784 = vpack.c.b16 %v4632, %v4628
    %v4785 = vpack.c.b16 %v4633, %v4629
    %v4786 = vpack.c.b16 %v4634, %v4630
    %v4787 = vpack.c.b16 %v4639, %v4635
    %v4788 = vpack.c.b16 %v4640, %v4636
    %v4789 = vpack.c.b16 %v4641, %v4637
    %v4790 = vpack.c.b16 %v4642, %v4638
    %v4791 = vpack.c.b16 %v4647, %v4643
    %v4792 = vpack.c.b16 %v4648, %v4644
    %v4793 = vpack.c.b16 %v4649, %v4645
    %v4794 = vpack.c.b16 %v4650, %v4646
    %v4795 = vpack.c.b16 %v4655, %v4651
    %v4796 = vpack.c.b16 %v4656, %v4652
    %v4797 = vpack.c.b16 %v4657, %v4653
    %v4798 = vpack.c.b16 %v4658, %v4654
    %v4799 = vpack.c.b16 %v4663, %v4659
    %v4800 = vpack.c.b16 %v4664, %v4660
    %v4801 = vpack.c.b16 %v4665, %v4661
    %v4802 = vpack.c.b16 %v4666, %v4662
    %v4803 = vpack.c.b16 %v4671, %v4667
    %v4804 = vpack.c.b16 %v4672, %v4668
    %v4805 = vpack.c.b16 %v4673, %v4669
    %v4806 = vpack.c.b16 %v4674, %v4670
    %v4807 = vpack.c.b16 %v4679, %v4675
    %v4808 = vpack.c.b16 %v4680, %v4676
    %v4809 = vpack.c.b16 %v4681, %v4677
    %v4810 = vpack.c.b16 %v4682, %v4678
    %4939 = vmatprep.subr.bf16.mxu0 %v4684
    %4940 = vmatpush1.bf16.msra.mxu0 %v4683
    %4941 = vmatprep.subr.bf16.mxu0 %v4688
    %4942 = vmatpush1.bf16.msra.mxu0 %v4687
    %4943 = vmatprep.subr.bf16.mxu0 %v4692
    %4944 = vmatpush1.bf16.msra.mxu0 %v4691
    %4945 = vmatprep.subr.bf16.mxu0 %v4696
    %4946 = vmatpush1.bf16.msra.mxu0 %v4695
    %4947 = vmatprep.subr.bf16.mxu0 %v4700
    %4948 = vmatpush1.bf16.msra.mxu0 %v4699
    %4949 = vmatprep.subr.bf16.mxu0 %v4704
    %4950 = vmatpush1.bf16.msra.mxu0 %v4703
    %4951 = vmatprep.subr.bf16.mxu0 %v4708
    %4952 = vmatpush1.bf16.msra.mxu0 %v4707
    %4953 = vmatprep.subr.bf16.mxu0 %v4712
    %4954 = vmatpush1.bf16.msra.mxu0 %v4711
    %4955 = vmatprep.subr.bf16.mxu0 %v4716
    %4956 = vmatpush1.bf16.msra.mxu0 %v4715
    %4957 = vmatprep.subr.bf16.mxu0 %v4720
    %4958 = vmatpush1.bf16.msra.mxu0 %v4719
    %4959 = vmatprep.subr.bf16.mxu0 %v4724
    %4960 = vmatpush1.bf16.msra.mxu0 %v4723
    %4961 = vmatprep.subr.bf16.mxu0 %v4728
    %4962 = vmatpush1.bf16.msra.mxu0 %v4727
    %4963 = vmatprep.subr.bf16.mxu0 %v4732
    %4964 = vmatpush1.bf16.msra.mxu0 %v4731
    %4965 = vmatprep.subr.bf16.mxu0 %v4736
    %4966 = vmatpush1.bf16.msra.mxu0 %v4735
    %4967 = vmatprep.subr.bf16.mxu0 %v4740
    %4968 = vmatpush1.bf16.msra.mxu0 %v4739
    %4969 = vmatprep.subr.bf16.mxu0 %v4744
    %4970 = vmatpush1.bf16.msra.mxu0 %v4743
    %4971 = vmatprep.mubr.bf16.mxu0 %v4146
    %4972 = vmatmul.mubr.bf16.gmra.mrb[0].mxu0 %v4145
    %v4973 = vpop.f32.mrb[0].mxu0
    %v4974 = vadd.f32 %v4282, %v4973
    %v4975 = vpop.f32.mrb[0].mxu0
    %v4976 = vadd.f32 %v4286, %v4975
    %v4977 = vpop.f32.mrb[0].mxu0
    %v4978 = vpop.f32.mrb[0].mxu0
    %4979 = vdwg.mxu0
    %4980 = vmatprep.subr.bf16.mxu0 %v4748
    %4981 = vmatpush1.bf16.msra.mxu0 %v4747
    %4982 = vmatprep.subr.bf16.mxu0 %v4752
    %4983 = vmatpush1.bf16.msra.mxu0 %v4751
    %4984 = vmatprep.subr.bf16.mxu0 %v4756
    %4985 = vmatpush1.bf16.msra.mxu0 %v4755
    %4986 = vmatprep.subr.bf16.mxu0 %v4760
    %4987 = vmatpush1.bf16.msra.mxu0 %v4759
    %4988 = vmatprep.subr.bf16.mxu0 %v4764
    %4989 = vmatpush1.bf16.msra.mxu0 %v4763
    %4990 = vmatprep.subr.bf16.mxu0 %v4768
    %4991 = vmatpush1.bf16.msra.mxu0 %v4767
    %4992 = vmatprep.subr.bf16.mxu0 %v4772
    %4993 = vmatpush1.bf16.msra.mxu0 %v4771
    %4994 = vmatprep.subr.bf16.mxu0 %v4776
    %4995 = vmatpush1.bf16.msra.mxu0 %v4775
    %4996 = vmatprep.subr.bf16.mxu0 %v4780
    %4997 = vmatpush1.bf16.msra.mxu0 %v4779
    %4998 = vmatprep.subr.bf16.mxu0 %v4784
    %4999 = vmatpush1.bf16.msra.mxu0 %v4783
    %5000 = vmatprep.subr.bf16.mxu0 %v4788
    %5001 = vmatpush1.bf16.msra.mxu0 %v4787
    %5002 = vmatprep.subr.bf16.mxu0 %v4792
    %5003 = vmatpush1.bf16.msra.mxu0 %v4791
    %5004 = vmatprep.subr.bf16.mxu0 %v4796
    %5005 = vmatpush1.bf16.msra.mxu0 %v4795
    %5006 = vmatprep.subr.bf16.mxu0 %v4800
    %5007 = vmatpush1.bf16.msra.mxu0 %v4799
    %5008 = vmatprep.subr.bf16.mxu0 %v4804
    %5009 = vmatpush1.bf16.msra.mxu0 %v4803
    %5010 = vmatprep.subr.bf16.mxu0 %v4808
    %5011 = vmatpush1.bf16.msra.mxu0 %v4807
    %5012 = vmatprep.mubr.bf16.mxu0 %v4148
    %5013 = vmatmul.mubr.bf16.gmra.mrb[0].mxu0 %v4147
    %v5014 = vpop.f32.mrb[0].mxu0
    %v5015 = vadd.f32 %v4974, %v5014
    %v5016 = vpop.f32.mrb[0].mxu0
    %v5017 = vadd.f32 %v4976, %v5016
    %v5018 = vpop.f32.mrb[0].mxu0
    %v5019 = vpop.f32.mrb[0].mxu0
    %5020 = vdwg.mxu0
    %5021 = vmatprep.subr.bf16.mxu0 %v4686
    %5022 = vmatpush1.bf16.msra.mxu0 %v4685
    %5023 = vmatprep.subr.bf16.mxu0 %v4690
    %5024 = vmatpush1.bf16.msra.mxu0 %v4689
    %5025 = vmatprep.subr.bf16.mxu0 %v4694
    %5026 = vmatpush1.bf16.msra.mxu0 %v4693
    %5027 = vmatprep.subr.bf16.mxu0 %v4698
    %5028 = vmatpush1.bf16.msra.mxu0 %v4697
    %5029 = vmatprep.subr.bf16.mxu0 %v4702
    %5030 = vmatpush1.bf16.msra.mxu0 %v4701
    %5031 = vmatprep.subr.bf16.mxu0 %v4706
    %5032 = vmatpush1.bf16.msra.mxu0 %v4705
    %5033 = vmatprep.subr.bf16.mxu0 %v4710
    %5034 = vmatpush1.bf16.msra.mxu0 %v4709
    %5035 = vmatprep.subr.bf16.mxu0 %v4714
    %5036 = vmatpush1.bf16.msra.mxu0 %v4713
    %5037 = vmatprep.subr.bf16.mxu0 %v4718
    %5038 = vmatpush1.bf16.msra.mxu0 %v4717
    %5039 = vmatprep.subr.bf16.mxu0 %v4722
    %5040 = vmatpush1.bf16.msra.mxu0 %v4721
    %5041 = vmatprep.subr.bf16.mxu0 %v4726
    %5042 = vmatpush1.bf16.msra.mxu0 %v4725
    %5043 = vmatprep.subr.bf16.mxu0 %v4730
    %5044 = vmatpush1.bf16.msra.mxu0 %v4729
    %5045 = vmatprep.subr.bf16.mxu0 %v4734
    %5046 = vmatpush1.bf16.msra.mxu0 %v4733
    %5047 = vmatprep.subr.bf16.mxu0 %v4738
    %5048 = vmatpush1.bf16.msra.mxu0 %v4737
    %5049 = vmatprep.subr.bf16.mxu0 %v4742
    %5050 = vmatpush1.bf16.msra.mxu0 %v4741
    %5051 = vmatprep.subr.bf16.mxu0 %v4746
    %5052 = vmatpush1.bf16.msra.mxu0 %v4745
    %5053 = vmatprep.mubr.bf16.mxu0 %v4146
    %5054 = vmatmul.mubr.bf16.gmra.mrb[0].mxu0 %v4145
    %v5055 = vpop.f32.mrb[0].mxu0
    %v5056 = vadd.f32 %v4290, %v5055
    %v5057 = vpop.f32.mrb[0].mxu0
    %v5058 = vadd.f32 %v4294, %v5057
    %v5059 = vpop.f32.mrb[0].mxu0
    %v5060 = vpop.f32.mrb[0].mxu0
    %5061 = vdwg.mxu0
    %5062 = vmatprep.subr.bf16.mxu0 %v4750
    %5063 = vmatpush1.bf16.msra.mxu0 %v4749
    %5064 = vmatprep.subr.bf16.mxu0 %v4754
    %5065 = vmatpush1.bf16.msra.mxu0 %v4753
    %5066 = vmatprep.subr.bf16.mxu0 %v4758
    %5067 = vmatpush1.bf16.msra.mxu0 %v4757
    %5068 = vmatprep.subr.bf16.mxu0 %v4762
    %5069 = vmatpush1.bf16.msra.mxu0 %v4761
    %5070 = vmatprep.subr.bf16.mxu0 %v4766
    %5071 = vmatpush1.bf16.msra.mxu0 %v4765
    %5072 = vmatprep.subr.bf16.mxu0 %v4770
    %5073 = vmatpush1.bf16.msra.mxu0 %v4769
    %5074 = vmatprep.subr.bf16.mxu0 %v4774
    %5075 = vmatpush1.bf16.msra.mxu0 %v4773
    %5076 = vmatprep.subr.bf16.mxu0 %v4778
    %5077 = vmatpush1.bf16.msra.mxu0 %v4777
    %5078 = vmatprep.subr.bf16.mxu0 %v4782
    %5079 = vmatpush1.bf16.msra.mxu0 %v4781
    %5080 = vmatprep.subr.bf16.mxu0 %v4786
    %5081 = vmatpush1.bf16.msra.mxu0 %v4785
    %5082 = vmatprep.subr.bf16.mxu0 %v4790
    %5083 = vmatpush1.bf16.msra.mxu0 %v4789
    %5084 = vmatprep.subr.bf16.mxu0 %v4794
    %5085 = vmatpush1.bf16.msra.mxu0 %v4793
    %5086 = vmatprep.subr.bf16.mxu0 %v4798
    %5087 = vmatpush1.bf16.msra.mxu0 %v4797
    %5088 = vmatprep.subr.bf16.mxu0 %v4802
    %5089 = vmatpush1.bf16.msra.mxu0 %v4801
    %5090 = vmatprep.subr.bf16.mxu0 %v4806
    %5091 = vmatpush1.bf16.msra.mxu0 %v4805
    %5092 = vmatprep.subr.bf16.mxu0 %v4810
    %5093 = vmatpush1.bf16.msra.mxu0 %v4809
    %5094 = vmatprep.mubr.bf16.mxu0 %v4148
    %5095 = vmatmul.mubr.bf16.gmra.mrb[0].mxu0 %v4147
    %v5096 = vpop.f32.mrb[0].mxu0
    %v5097 = vadd.f32 %v5056, %v5096
    %v5098 = vpop.f32.mrb[0].mxu0
    %v5099 = vadd.f32 %v5058, %v5098
    %v5100 = vpop.f32.mrb[0].mxu0
    %v5101 = vpop.f32.mrb[0].mxu0
    %5102 = vdwg.mxu0
    %v5103 = vmax.f32 %v5015, 0.0
    %v5104 = vmax.f32 %v5017, 0.0
    %v5105 = vmax.f32 %v5097, 0.0
    %v5106 = vmax.f32 %v5099, 0.0
    %v5107 = vpack.c.bf16 %v5103, %v5103
    %v5108 = vpack.c.bf16 %v5104, %v5104
    %v5109 = vpack.c.bf16 %v5105, %v5105
    %v5110 = vpack.c.bf16 %v5106, %v5106
    %v5111 = vld [vmem:[#allocation14] sm:$0xf]
    %v5112 = vld [vmem:[#allocation14 + $0x4] sm:$0xf]
    %v5113 = vld [vmem:[#allocation14 + $0x8] sm:$0xf]
    %v5114 = vld [vmem:[#allocation14 + $0xc] sm:$0xf]
    %v5115 = vld [vmem:[#allocation14 + $0x10] sm:$0xf]
    %v5116 = vld [vmem:[#allocation14 + $0x14] sm:$0xf]
    %v5117 = vld [vmem:[#allocation14 + $0x18] sm:$0xf]
    %v5118 = vld [vmem:[#allocation14 + $0x1c] sm:$0xf]
    %v5119 = vld [vmem:[#allocation14 + $0x20] sm:$0xf]
    %v5120 = vld [vmem:[#allocation14 + $0x24] sm:$0xf]
    %v5121 = vld [vmem:[#allocation14 + $0x28] sm:$0xf]
    %v5122 = vld [vmem:[#allocation14 + $0x2c] sm:$0xf]
    %v5123 = vld [vmem:[#allocation14 + $0x30] sm:$0xf]
    %v5124 = vld [vmem:[#allocation14 + $0x34] sm:$0xf]
    %v5125 = vld [vmem:[#allocation14 + $0x38] sm:$0xf]
    %v5126 = vld [vmem:[#allocation14 + $0x3c] sm:$0xf]
    %v5127 = vld [vmem:[#allocation14 + $0x40] sm:$0xf]
    %v5128 = vld [vmem:[#allocation14 + $0x44] sm:$0xf]
    %v5129 = vld [vmem:[#allocation14 + $0x48] sm:$0xf]
    %v5130 = vld [vmem:[#allocation14 + $0x4c] sm:$0xf]
    %v5131 = vld [vmem:[#allocation14 + $0x50] sm:$0xf]
    %v5132 = vld [vmem:[#allocation14 + $0x54] sm:$0xf]
    %v5133 = vld [vmem:[#allocation14 + $0x58] sm:$0xf]
    %v5134 = vld [vmem:[#allocation14 + $0x5c] sm:$0xf]
    %v5135 = vld [vmem:[#allocation14 + $0x60] sm:$0xf]
    %v5136 = vld [vmem:[#allocation14 + $0x64] sm:$0xf]
    %v5137 = vld [vmem:[#allocation14 + $0x68] sm:$0xf]
    %v5138 = vld [vmem:[#allocation14 + $0x6c] sm:$0xf]
    %v5139 = vld [vmem:[#allocation14 + $0x70] sm:$0xf]
    %v5140 = vld [vmem:[#allocation14 + $0x74] sm:$0xf]
    %v5141 = vld [vmem:[#allocation14 + $0x78] sm:$0xf]
    %v5142 = vld [vmem:[#allocation14 + $0x7c] sm:$0xf]
    %v5143 = vld [vmem:[#allocation14 + $0x80] sm:$0xf]
    %v5144 = vld [vmem:[#allocation14 + $0x84] sm:$0xf]
    %v5145 = vld [vmem:[#allocation14 + $0x88] sm:$0xf]
    %v5146 = vld [vmem:[#allocation14 + $0x8c] sm:$0xf]
    %v5147 = vld [vmem:[#allocation14 + $0x90] sm:$0xf]
    %v5148 = vld [vmem:[#allocation14 + $0x94] sm:$0xf]
    %v5149 = vld [vmem:[#allocation14 + $0x98] sm:$0xf]
    %v5150 = vld [vmem:[#allocation14 + $0x9c] sm:$0xf]
    %v5151 = vld [vmem:[#allocation14 + $0xa0] sm:$0xf]
    %v5152 = vld [vmem:[#allocation14 + $0xa4] sm:$0xf]
    %v5153 = vld [vmem:[#allocation14 + $0xa8] sm:$0xf]
    %v5154 = vld [vmem:[#allocation14 + $0xac] sm:$0xf]
    %v5155 = vld [vmem:[#allocation14 + $0xb0] sm:$0xf]
    %v5156 = vld [vmem:[#allocation14 + $0xb4] sm:$0xf]
    %v5157 = vld [vmem:[#allocation14 + $0xb8] sm:$0xf]
    %v5158 = vld [vmem:[#allocation14 + $0xbc] sm:$0xf]
    %v5159 = vld [vmem:[#allocation14 + $0xc0] sm:$0xf]
    %v5160 = vld [vmem:[#allocation14 + $0xc4] sm:$0xf]
    %v5161 = vld [vmem:[#allocation14 + $0xc8] sm:$0xf]
    %v5162 = vld [vmem:[#allocation14 + $0xcc] sm:$0xf]
    %v5163 = vld [vmem:[#allocation14 + $0xd0] sm:$0xf]
    %v5164 = vld [vmem:[#allocation14 + $0xd4] sm:$0xf]
    %v5165 = vld [vmem:[#allocation14 + $0xd8] sm:$0xf]
    %v5166 = vld [vmem:[#allocation14 + $0xdc] sm:$0xf]
    %v5167 = vld [vmem:[#allocation14 + $0xe0] sm:$0xf]
    %v5168 = vld [vmem:[#allocation14 + $0xe4] sm:$0xf]
    %v5169 = vld [vmem:[#allocation14 + $0xe8] sm:$0xf]
    %v5170 = vld [vmem:[#allocation14 + $0xec] sm:$0xf]
    %v5171 = vld [vmem:[#allocation14 + $0xf0] sm:$0xf]
    %v5172 = vld [vmem:[#allocation14 + $0xf4] sm:$0xf]
    %v5173 = vld [vmem:[#allocation14 + $0xf8] sm:$0xf]
    %v5174 = vld [vmem:[#allocation14 + $0xfc] sm:$0xf]
    %v5175 = vld [vmem:[%s14] sm:$0x1]
    %v5177 = vlaneseq
    %v5178 = vshrl.u32 %v5177, 7
    %v5179 = vsub.s32 0, %v5178
    %v5180 = vrot.slane %v5175, %v5179
    %v5246 = vunpack.c.l.b16 %v5111
    %v5247 = vunpack.c.l.b16 %v5112
    %v5248 = vunpack.c.l.b16 %v5113
    %v5249 = vunpack.c.l.b16 %v5114
    %v5250 = vunpack.c.l.b16 %v5115
    %v5251 = vunpack.c.l.b16 %v5116
    %v5252 = vunpack.c.l.b16 %v5117
    %v5253 = vunpack.c.l.b16 %v5118
    %v5254 = vunpack.c.l.b16 %v5119
    %v5255 = vunpack.c.l.b16 %v5120
    %v5256 = vunpack.c.l.b16 %v5121
    %v5257 = vunpack.c.l.b16 %v5122
    %v5258 = vunpack.c.l.b16 %v5123
    %v5259 = vunpack.c.l.b16 %v5124
    %v5260 = vunpack.c.l.b16 %v5125
    %v5261 = vunpack.c.l.b16 %v5126
    %v5262 = vunpack.c.l.b16 %v5127
    %v5263 = vunpack.c.l.b16 %v5128
    %v5264 = vunpack.c.l.b16 %v5129
    %v5265 = vunpack.c.l.b16 %v5130
    %v5266 = vunpack.c.l.b16 %v5131
    %v5267 = vunpack.c.l.b16 %v5132
    %v5268 = vunpack.c.l.b16 %v5133
    %v5269 = vunpack.c.l.b16 %v5134
    %v5270 = vunpack.c.l.b16 %v5135
    %v5271 = vunpack.c.l.b16 %v5136
    %v5272 = vunpack.c.l.b16 %v5137
    %v5273 = vunpack.c.l.b16 %v5138
    %v5274 = vunpack.c.l.b16 %v5139
    %v5275 = vunpack.c.l.b16 %v5140
    %v5276 = vunpack.c.l.b16 %v5141
    %v5277 = vunpack.c.l.b16 %v5142
    %v5278 = vunpack.c.l.b16 %v5143
    %v5279 = vunpack.c.l.b16 %v5144
    %v5280 = vunpack.c.l.b16 %v5145
    %v5281 = vunpack.c.l.b16 %v5146
    %v5282 = vunpack.c.l.b16 %v5147
    %v5283 = vunpack.c.l.b16 %v5148
    %v5284 = vunpack.c.l.b16 %v5149
    %v5285 = vunpack.c.l.b16 %v5150
    %v5286 = vunpack.c.l.b16 %v5151
    %v5287 = vunpack.c.l.b16 %v5152
    %v5288 = vunpack.c.l.b16 %v5153
    %v5289 = vunpack.c.l.b16 %v5154
    %v5290 = vunpack.c.l.b16 %v5155
    %v5291 = vunpack.c.l.b16 %v5156
    %v5292 = vunpack.c.l.b16 %v5157
    %v5293 = vunpack.c.l.b16 %v5158
    %v5294 = vunpack.c.l.b16 %v5159
    %v5295 = vunpack.c.l.b16 %v5160
    %v5296 = vunpack.c.l.b16 %v5161
    %v5297 = vunpack.c.l.b16 %v5162
    %v5298 = vunpack.c.l.b16 %v5163
    %v5299 = vunpack.c.l.b16 %v5164
    %v5300 = vunpack.c.l.b16 %v5165
    %v5301 = vunpack.c.l.b16 %v5166
    %v5302 = vunpack.c.l.b16 %v5167
    %v5303 = vunpack.c.l.b16 %v5168
    %v5304 = vunpack.c.l.b16 %v5169
    %v5305 = vunpack.c.l.b16 %v5170
    %v5306 = vunpack.c.l.b16 %v5171
    %v5307 = vunpack.c.l.b16 %v5172
    %v5308 = vunpack.c.l.b16 %v5173
    %v5309 = vunpack.c.l.b16 %v5174
    %v5310 = vpack.c.b16 %v5247, %v5246
    %v5311 = vpack.c.b16 %v5249, %v5248
    %v5312 = vpack.c.b16 %v5251, %v5250
    %v5313 = vpack.c.b16 %v5253, %v5252
    %v5314 = vpack.c.b16 %v5255, %v5254
    %v5315 = vpack.c.b16 %v5257, %v5256
    %v5316 = vpack.c.b16 %v5259, %v5258
    %v5317 = vpack.c.b16 %v5261, %v5260
    %v5318 = vpack.c.b16 %v5263, %v5262
    %v5319 = vpack.c.b16 %v5265, %v5264
    %v5320 = vpack.c.b16 %v5267, %v5266
    %v5321 = vpack.c.b16 %v5269, %v5268
    %v5322 = vpack.c.b16 %v5271, %v5270
    %v5323 = vpack.c.b16 %v5273, %v5272
    %v5324 = vpack.c.b16 %v5275, %v5274
    %v5325 = vpack.c.b16 %v5277, %v5276
    %v5326 = vpack.c.b16 %v5279, %v5278
    %v5327 = vpack.c.b16 %v5281, %v5280
    %v5328 = vpack.c.b16 %v5283, %v5282
    %v5329 = vpack.c.b16 %v5285, %v5284
    %v5330 = vpack.c.b16 %v5287, %v5286
    %v5331 = vpack.c.b16 %v5289, %v5288
    %v5332 = vpack.c.b16 %v5291, %v5290
    %v5333 = vpack.c.b16 %v5293, %v5292
    %v5334 = vpack.c.b16 %v5295, %v5294
    %v5335 = vpack.c.b16 %v5297, %v5296
    %v5336 = vpack.c.b16 %v5299, %v5298
    %v5337 = vpack.c.b16 %v5301, %v5300
    %v5338 = vpack.c.b16 %v5303, %v5302
    %v5339 = vpack.c.b16 %v5305, %v5304
    %v5340 = vpack.c.b16 %v5307, %v5306
    %v5341 = vpack.c.b16 %v5309, %v5308
    %5374 = vmatprep.subr.bf16.mxu0 0
    %5375 = vmatpush1.bf16.msra.mxu0 %v5310
    %5376 = vmatprep.subr.bf16.mxu0 0
    %5377 = vmatpush1.bf16.msra.mxu0 %v5311
    %5378 = vmatprep.subr.bf16.mxu0 0
    %5379 = vmatpush1.bf16.msra.mxu0 %v5312
    %5380 = vmatprep.subr.bf16.mxu0 0
    %5381 = vmatpush1.bf16.msra.mxu0 %v5313
    %5382 = vmatprep.subr.bf16.mxu0 0
    %5383 = vmatpush1.bf16.msra.mxu0 %v5314
    %5384 = vmatprep.subr.bf16.mxu0 0
    %5385 = vmatpush1.bf16.msra.mxu0 %v5315
    %5386 = vmatprep.subr.bf16.mxu0 0
    %5387 = vmatpush1.bf16.msra.mxu0 %v5316
    %5388 = vmatprep.subr.bf16.mxu0 0
    %5389 = vmatpush1.bf16.msra.mxu0 %v5317
    %5390 = vmatprep.subr.bf16.mxu0 0
    %5391 = vmatpush1.bf16.msra.mxu0 %v5318
    %5392 = vmatprep.subr.bf16.mxu0 0
    %5393 = vmatpush1.bf16.msra.mxu0 %v5319
    %5394 = vmatprep.subr.bf16.mxu0 0
    %5395 = vmatpush1.bf16.msra.mxu0 %v5320
    %5396 = vmatprep.subr.bf16.mxu0 0
    %5397 = vmatpush1.bf16.msra.mxu0 %v5321
    %5398 = vmatprep.subr.bf16.mxu0 0
    %5399 = vmatpush1.bf16.msra.mxu0 %v5322
    %5400 = vmatprep.subr.bf16.mxu0 0
    %5401 = vmatpush1.bf16.msra.mxu0 %v5323
    %5402 = vmatprep.subr.bf16.mxu0 0
    %5403 = vmatpush1.bf16.msra.mxu0 %v5324
    %5404 = vmatprep.subr.bf16.mxu0 0
    %5405 = vmatpush1.bf16.msra.mxu0 %v5325
    %5406 = vmatprep.mubr.bf16.mxu0 %v5108
    %5407 = vmatmul.mubr.bf16.gmra.mrb[0].mxu0 %v5107
    %v5408 = vpop.f32.mrb[0].mxu0
    %v5409 = vadd.f32 %v5180, %v5408
    %v5410 = vpop.f32.mrb[0].mxu0
    %v5411 = vpop.f32.mrb[0].mxu0
    %v5412 = vpop.f32.mrb[0].mxu0
    %5413 = vdwg.mxu0
    %5414 = vmatprep.subr.bf16.mxu0 0
    %5415 = vmatpush1.bf16.msra.mxu0 %v5326
    %5416 = vmatprep.subr.bf16.mxu0 0
    %5417 = vmatpush1.bf16.msra.mxu0 %v5327
    %5418 = vmatprep.subr.bf16.mxu0 0
    %5419 = vmatpush1.bf16.msra.mxu0 %v5328
    %5420 = vmatprep.subr.bf16.mxu0 0
    %5421 = vmatpush1.bf16.msra.mxu0 %v5329
    %5422 = vmatprep.subr.bf16.mxu0 0
    %5423 = vmatpush1.bf16.msra.mxu0 %v5330
    %5424 = vmatprep.subr.bf16.mxu0 0
    %5425 = vmatpush1.bf16.msra.mxu0 %v5331
    %5426 = vmatprep.subr.bf16.mxu0 0
    %5427 = vmatpush1.bf16.msra.mxu0 %v5332
    %5428 = vmatprep.subr.bf16.mxu0 0
    %5429 = vmatpush1.bf16.msra.mxu0 %v5333
    %5430 = vmatprep.subr.bf16.mxu0 0
    %5431 = vmatpush1.bf16.msra.mxu0 %v5334
    %5432 = vmatprep.subr.bf16.mxu0 0
    %5433 = vmatpush1.bf16.msra.mxu0 %v5335
    %5434 = vmatprep.subr.bf16.mxu0 0
    %5435 = vmatpush1.bf16.msra.mxu0 %v5336
    %5436 = vmatprep.subr.bf16.mxu0 0
    %5437 = vmatpush1.bf16.msra.mxu0 %v5337
    %5438 = vmatprep.subr.bf16.mxu0 0
    %5439 = vmatpush1.bf16.msra.mxu0 %v5338
    %5440 = vmatprep.subr.bf16.mxu0 0
    %5441 = vmatpush1.bf16.msra.mxu0 %v5339
    %5442 = vmatprep.subr.bf16.mxu0 0
    %5443 = vmatpush1.bf16.msra.mxu0 %v5340
    %5444 = vmatprep.subr.bf16.mxu0 0
    %5445 = vmatpush1.bf16.msra.mxu0 %v5341
    %5446 = vmatprep.mubr.bf16.mxu0 %v5110
    %5447 = vmatmul.mubr.bf16.gmra.mrb[0].mxu0 %v5109
    %v5448 = vpop.f32.mrb[0].mxu0
    %v5449 = vadd.f32 %v5409, %v5448
    %v5450 = vpop.f32.mrb[0].mxu0
    %v5451 = vpop.f32.mrb[0].mxu0
    %v5452 = vpop.f32.mrb[0].mxu0
    %5453 = vdwg.mxu0
    %5454 = vst [vmem:[#allocation16] sm:$0xff] %v5449
    // Predicated region
    $region94: #{tpu_custom_call.1} parent=1 // pred_check
      _
    $region95: #{tpu_custom_call.1} parent=1 // pred_check_branch
      %5456 = sbr.rel (0) target = $region97
    $region96: #{tpu_custom_call.1} parent=1 // pred_region
      %s5458 = ssub.s32 128, 128
      %5459 = vsyncadd [#allocation4], %s5458
      %s5461 = sshll.u32 [#allocation16], 4
      %s5462 = int_to_ptr.vmem [resolvable:$true] %s5461
      %5464 = dma.vmem_to_hbm [thread:$0]  %s5462, 128, %s15, [#allocation4]
    $region97: #{tpu_custom_call.1} parent=1 // pred_fallthru
      _
    // Predicated region
    $region98: #{tpu_custom_call.1} parent=1 // pred_check
      _
    $region99: #{tpu_custom_call.1} parent=1 // pred_check_branch
      %5466 = sbr.rel (0) target = $region101
    $region100: #{tpu_custom_call.1} parent=1 // pred_region
      %5467 = dma.done [#allocation4], 128
    $region101: #{tpu_custom_call.1} parent=1 // pred_fallthru
      _
    %5468 = vsyncpa [#allocation3], 1
    %5469 = vsyncpa [#allocation6], 1
    %5470 = vsyncpa [#allocation9], 1
    %5471 = vsyncpa [#allocation12], 1
    %5472 = vsyncpa [#allocation15], 1
    %5473 = vsyncpa [#allocation4], 1

</llo_original>
